<compile_context>
chip_gen: v7x
topology: tpu7x:2x2x1
jax: 0.10.0
libtpu: 0.0.40
codegen_flags: <defaults>
</compile_context>

<pallas_src>
import functools
import math

import jax
import jax.numpy as jnp
from jax.experimental import pallas as pl
from jax.experimental.pallas import tpu as pltpu

_BT = jnp.bfloat16

# dot_general dimension numbers (leading batch dim = sequences in the block).
_DN_QK = (((2,), (2,)), ((0,), (0,)))   # (S,N,d) x (S,M,d) -> (S,N,M)
_DN_AV = (((2,), (1,)), ((0,), (0,)))   # (S,N,M) x (S,M,d) -> (S,N,d)


# ----------------------------- in-kernel helpers -----------------------------

def _layernorm(x, gamma, beta, eps=1e-5):
    # torch.nn.LayerNorm: biased variance, eps inside sqrt, affine.
    mean = jnp.mean(x, axis=-1, keepdims=True)
    var = jnp.mean((x - mean) ** 2, axis=-1, keepdims=True)
    return (x - mean) * jax.lax.rsqrt(var + eps) * gamma + beta


def _erf(x):
    # Abramowitz & Stegun 7.1.26 rational approximation (max abs err ~1.5e-7).
    p = 0.3275911
    a1, a2, a3, a4, a5 = (0.254829592, -0.284496736, 1.421413741,
                          -1.453152027, 1.061405429)
    s = jnp.where(x >= 0.0, 1.0, -1.0)
    z = jnp.abs(x)
    t = 1.0 / (1.0 + p * z)
    poly = ((((a5 * t + a4) * t + a3) * t + a2) * t + a1) * t
    return s * (1.0 - poly * jnp.exp(-z * z))


def _gelu_exact(x):
    # torch.nn.GELU() default = exact erf-based GELU (f32; v5e has no bf16 VPU).
    return 0.5 * x * (1.0 + _erf(x * (1.0 / math.sqrt(2.0))))


# --------------------------------- kernel ------------------------------------

def _transformer_kernel(x_ref, wqkv_ref, wo_ref, w1_ref, w2_ref,
                        vecs_ref, bb1_ref, o_ref,
                        *, heads, dim_head, seq_len, resident):
    d = pl.program_id(1)            # layer index ("arbitrary" axis)
    li = d if resident else 0       # weight index inside the (possibly full-depth) block

    R, D = o_ref.shape
    N = seq_len
    SB = R // N                     # whole sequences in this row block
    dh = dim_head
    inner = heads * dh

    # First layer for this row block: load activation into the resident output
    # buffer (output block index is constant along the depth axis, so o_ref
    # lives in VMEM until the block's depth sweep finishes).
    @pl.when(d == 0)
    def _():
        o_ref[...] = x_ref[...]

    x = o_ref[...]                                  # (R, D) f32 resident activation

    vs = vecs_ref[li]                               # (6, D) f32 packed per-layer vectors
    g1, b1 = vs[0:1, :], vs[1:2, :]
    bo = vs[2:3, :]
    g2, b2 = vs[3:4, :], vs[4:5, :]
    b_ff2 = vs[5:6, :]

    # ---- PreNorm + multi-head self-attention + residual ----
    xn = _layernorm(x, g1, b1)                      # (R, D) f32
    # Fused, lane-dense QKV projection (softmax scale folded into Q columns).
    qkv = jnp.dot(xn.astype(_BT), wqkv_ref[li],
                  preferred_element_type=jnp.float32)        # (R, 3*inner) f32

    oh_heads = []
    for h in range(heads):                          # static unroll; heads is small
        qh = qkv[:, h * dh:(h + 1) * dh].reshape(SB, N, dh).astype(_BT)
        kh = qkv[:, inner + h * dh:inner + (h + 1) * dh].reshape(SB, N, dh).astype(_BT)
        vh = qkv[:, 2 * inner + h * dh:2 * inner + (h + 1) * dh].reshape(SB, N, dh).astype(_BT)
        # Per-sequence attention (leading batch dim = sequences in the block).
        dots = jax.lax.dot_general(qh, kh, _DN_QK,
                                   preferred_element_type=jnp.float32)   # (SB,N,N)
        dots = dots - jnp.max(dots, axis=-1, keepdims=True)
        e = jnp.exp(dots)
        attn = e * pl.reciprocal(jnp.sum(e, axis=-1, keepdims=True), approx=True)
        oh = jax.lax.dot_general(attn.astype(_BT), vh, _DN_AV,
                                 preferred_element_type=jnp.float32)     # (SB,N,dh)
        oh_heads.append(oh)

    # concat-heads followed by the output Linear: one lane-dense matmul with
    # K = inner (joint contraction over heads and dim_head).
    oh_cat = jnp.concatenate(oh_heads, axis=-1).reshape(R, inner)
    proj = jnp.dot(oh_cat.astype(_BT), wo_ref[li],
                   preferred_element_type=jnp.float32)                   # (R, D)
    x = proj + bo + x                                                    # + residual

    # ---- PreNorm + Linear(D->H) -> GELU -> Linear(H->D) + residual ----
    xn2 = _layernorm(x, g2, b2)
    hpre = jnp.dot(xn2.astype(_BT), w1_ref[li],
                   preferred_element_type=jnp.float32) + bb1_ref[li]     # (R, H)
    hact = _gelu_exact(hpre)                                             # f32 VPU/EUP
    y = jnp.dot(hact.astype(_BT), w2_ref[li],
                preferred_element_type=jnp.float32) + b_ff2              # (R, D)
    x = y + x                                                            # + residual
    # TODO(synk): nn.Dropout layers have p=0.0 (identity in forward) -> omitted.

    o_ref[...] = x


# --------------------------------- wrapper -----------------------------------

def transformer_forward(x, w, *, heads, dim_head):
    """x: (B, N, D) float32.  w: packed params (see pack_params)."""
    B, N, D = x.shape
    depth = w["wqkv"].shape[0]
    three_inner = w["wqkv"].shape[-1]
    inner = heads * dim_head
    H = w["w1"].shape[-1]
    BN = B * N

    # ---------- VMEM-budgeted block sizing (per perf review) ----------
    vmem_budget = 48 * 1024 * 1024        # conservative across v5e/v6e/v7x
    wt_bytes_layer = sum(int(w[k].shape[1]) * int(w[k].shape[2]) * w[k].dtype.itemsize
                         for k in ("wqkv", "wo", "w1", "w2", "vecs", "bb1"))
    wt_bytes_total = depth * wt_bytes_layer
    # Full weight stack resident in VMEM (DMA'd once) when it fits with room to spare;
    # account 2x for the pipeline's default double-buffered allocation.
    resident = 2 * wt_bytes_total <= vmem_budget // 2
    wt_vmem = 2 * (wt_bytes_total if resident else wt_bytes_layer)

    # Rough f32 activation bytes live per sequence inside one block.
    per_seq = 4 * (6 * N * D + N * three_inner + heads * N * N
                   + 3 * N * H + 2 * N * inner)
    per_seq = int(per_seq * 3 // 2)       # safety slack
    max_sb = max(1, (vmem_budget - wt_vmem) // max(per_seq, 1))

    # Row blocks hold WHOLE sequences (attention correctness); prefer >= 2
    # blocks so v7x's two TensorCores both get work on the "parallel" axis.
    divisors = [c for c in range(1, B + 1) if B % c == 0 and c <= max_sb]
    pref = [c for c in divisors if B // c >= 2]
    sb = max(pref) if pref else max(divisors)
    R = sb * N
    PB = B // sb

    x2d = x.reshape(BN, D)

    def wspec(tail):
        if resident:
            return pl.BlockSpec((depth,) + tail, lambda i, d: (0,) * (1 + len(tail)))
        return pl.BlockSpec((1,) + tail, lambda i, d: (d,) + (0,) * len(tail))

    grid_spec = pltpu.PrefetchScalarGridSpec(
        num_scalar_prefetch=0,
        grid=(PB, depth),
        in_specs=[
            pl.BlockSpec((R, D), lambda i, d: (i, 0)),   # x rows (whole sequences)
            wspec((D, three_inner)),                     # W_qkv (Q cols pre-scaled)
            wspec((inner, D)),                           # W_out
            wspec((D, H)),                               # W1
            wspec((H, D)),                               # W2
            wspec((6, D)),                               # ln1 g/b, b_out, ln2 g/b, b2
            wspec((1, H)),                               # b1 (MLP hidden bias)
        ],
        out_specs=pl.BlockSpec((R, D), lambda i, d: (i, 0)),
    )

    # Advisory cost estimate so XLA can schedule around the fused call.
    flops = depth * (2 * BN * D * 3 * inner                 # fused qkv projection
                     + 4 * B * heads * N * N * dim_head     # q k^T and attn v
                     + 2 * BN * inner * D                   # output projection
                     + 4 * BN * D * H)                      # MLP
    transcendentals = depth * (B * heads * N * N + BN * H + BN)
    bytes_accessed = 2 * BN * D * 4 + wt_bytes_total * (1 if resident else PB)

    vmem_limit = int(min(64 * 1024 * 1024,
                         max(32 * 1024 * 1024, 2 * (wt_vmem + sb * per_seq))))

    out2d = pl.pallas_call(
        functools.partial(_transformer_kernel, heads=heads, dim_head=dim_head,
                          seq_len=N, resident=resident),
        out_shape=jax.ShapeDtypeStruct((BN, D), jnp.float32),
        grid_spec=grid_spec,
        compiler_params=pltpu.CompilerParams(
            dimension_semantics=("parallel", "arbitrary"),
            vmem_limit_bytes=vmem_limit),
        cost_estimate=pl.CostEstimate(flops=flops,
                                      transcendentals=transcendentals,
                                      bytes_accessed=bytes_accessed),
    )(x2d, w["wqkv"], w["wo"], w["w1"], w["w2"], w["vecs"], w["bb1"])
    return out2d.reshape(B, N, D)


def pack_params(params, *, heads, dim_head):
    """Stack per-layer params along a leading depth axis, pre-shaped for the
    kernel: bf16 matmul weights, the 1/sqrt(dh) scale folded into the Q columns
    of w_qkv, and the six length-D vectors packed into one (depth, 6, D) slab."""
    inner = heads * dim_head
    scale = dim_head ** -0.5

    def qkv_scaled(p):
        w = p["w_qkv"]                                   # (D, 3*inner)
        return jnp.concatenate([w[:, :inner] * scale, w[:, inner:]], axis=1)

    wqkv = jnp.stack([qkv_scaled(p) for p in params]).astype(jnp.bfloat16)
    wo = jnp.stack([p["w_out"] for p in params]).astype(jnp.bfloat16)
    w1 = jnp.stack([p["w1"] for p in params]).astype(jnp.bfloat16)
    w2 = jnp.stack([p["w2"] for p in params]).astype(jnp.bfloat16)
    vecs = jnp.stack([jnp.concatenate([p["ln1_g"], p["ln1_b"], p["b_out"],
                                       p["ln2_g"], p["ln2_b"], p["b2"]], axis=0)
                      for p in params]).astype(jnp.float32)       # (depth, 6, D)
    bb1 = jnp.stack([p["b1"] for p in params]).astype(jnp.float32)  # (depth, 1, H)
    return {"wqkv": wqkv, "wo": wo, "w1": w1, "w2": w2, "vecs": vecs, "bb1": bb1}


# ---------------------------- pure-JAX reference -----------------------------

def _reference_forward(x, params, *, heads, dim_head):
    def ln(v, g, b):
        m = jnp.mean(v, -1, keepdims=True)
        var = jnp.mean((v - m) ** 2, -1, keepdims=True)
        return (v - m) / jnp.sqrt(var + 1e-5) * g + b

    B, N, D = x.shape
    inner = heads * dim_head
    for p in params:
        xn = ln(x, p["ln1_g"][0], p["ln1_b"][0])
        qkv = xn @ p["w_qkv"]
        q, k, v = jnp.split(qkv, 3, axis=-1)
        rs = lambda t: t.reshape(B, N, heads, dim_head).transpose(0, 2, 1, 3)
        q, k, v = rs(q), rs(k), rs(v)
        dots = jnp.einsum("bhnd,bhmd->bhnm", q, k) * (dim_head ** -0.5)
        attn = jax.nn.softmax(dots, axis=-1)
        out = jnp.einsum("bhnm,bhmd->bhnd", attn, v)
        out = out.transpose(0, 2, 1, 3).reshape(B, N, inner)
        x = out @ p["w_out"] + p["b_out"][0] + x
        xn = ln(x, p["ln2_g"][0], p["ln2_b"][0])
        h = jax.nn.gelu(xn @ p["w1"] + p["b1"][0], approximate=False)
        x = h @ p["w2"] + p["b2"][0] + x
    return x


# ----------------------------------- main -------------------------------------

def _init_params(key, depth, dim, heads, dim_head, mlp_dim):
    inner = heads * dim_head
    params = []
    for d in range(depth):
        keys = jax.random.split(jax.random.fold_in(key, d), 6)
        params.append({
            "ln1_g": jnp.ones((1, dim), jnp.float32),
            "ln1_b": jnp.zeros((1, dim), jnp.float32),
            "w_qkv": 0.02 * jax.random.normal(keys[0], (dim, 3 * inner), jnp.float32),
            "w_out": 0.02 * jax.random.normal(keys[1], (inner, dim), jnp.float32),
            "b_out": 0.02 * jax.random.normal(keys[2], (1, dim), jnp.float32),
            "ln2_g": jnp.ones((1, dim), jnp.float32),
            "ln2_b": jnp.zeros((1, dim), jnp.float32),
            "w1": 0.02 * jax.random.normal(keys[3], (dim, mlp_dim), jnp.float32),
            "b1": 0.02 * jax.random.normal(keys[4], (1, mlp_dim), jnp.float32),
            "w2": 0.02 * jax.random.normal(keys[5], (mlp_dim, dim), jnp.float32),
            "b2": jnp.zeros((1, dim), jnp.float32),
        })
    return params


if __name__ == "__main__":
    B, N = 2, 8                    # batch, tokens
    dim, depth, heads, dim_head = 32, 2, 4, 16
    mlp_dim = 2048                 # hard-coded in the PyTorch __init__

    key = jax.random.PRNGKey(0)
    kx, kp = jax.random.split(key)
    x = jax.random.normal(kx, (B, N, dim), jnp.float32)
    params = _init_params(kp, depth, dim, heads, dim_head, mlp_dim)
    packed = pack_params(params, heads=heads, dim_head=dim_head)

    fwd = jax.jit(functools.partial(transformer_forward,
                                    heads=heads, dim_head=dim_head))
    out = jax.block_until_ready(fwd(x, packed))

    ref = _reference_forward(x, params, heads=heads, dim_head=dim_head)
    assert out.shape == (B, N, dim)
    # Tolerance reflects bf16 MXU inputs (f32 accumulation) vs the f32 reference.
    assert jnp.allclose(out, ref, atol=2e-2, rtol=2e-2), "mismatch vs reference"

    print("KERNEL_OK")
</pallas_src>

<mosaic_0001>
module attributes {stable_mosaic.version = 11 : i64} {
  func.func @_transformer_kernel(%arg0: i32, %arg1: i32, %arg2: memref<8x32xf32, #tpu.memory_space<vmem>>, %arg3: memref<2x32x192xbf16, #tpu.memory_space<vmem>>, %arg4: memref<2x64x32xbf16, #tpu.memory_space<vmem>>, %arg5: memref<2x32x2048xbf16, #tpu.memory_space<vmem>>, %arg6: memref<2x2048x32xbf16, #tpu.memory_space<vmem>>, %arg7: memref<2x6x32xf32, #tpu.memory_space<vmem>>, %arg8: memref<2x1x2048xf32, #tpu.memory_space<vmem>>, %arg9: memref<8x32xf32, #tpu.memory_space<vmem>>) attributes {dimension_semantics = [#tpu.dimension_semantics<parallel>, #tpu.dimension_semantics<arbitrary>], iteration_bounds = array<i64: 2, 2>, scalar_prefetch = 0 : i64, scratch_operands = 0 : i64, tpu.core_type = #tpu.core_type<tc>, window_params = [{transform_indices = @transform_0, window_bounds = array<i64: 8, 32>}, {pipeline_mode = #tpu.pipeline_mode<synchronous>, transform_indices = @transform_1, window_bounds = array<i64: 2, 32, 192>}, {pipeline_mode = #tpu.pipeline_mode<synchronous>, transform_indices = @transform_2, window_bounds = array<i64: 2, 64, 32>}, {pipeline_mode = #tpu.pipeline_mode<synchronous>, transform_indices = @transform_3, window_bounds = array<i64: 2, 32, 2048>}, {pipeline_mode = #tpu.pipeline_mode<synchronous>, transform_indices = @transform_4, window_bounds = array<i64: 2, 2048, 32>}, {pipeline_mode = #tpu.pipeline_mode<synchronous>, transform_indices = @transform_5, window_bounds = array<i64: 2, 6, 32>}, {pipeline_mode = #tpu.pipeline_mode<synchronous>, transform_indices = @transform_6, window_bounds = array<i64: 2, 1, 2048>}, {transform_indices = @transform_7, window_bounds = array<i64: 8, 32>}]} {
    %c0_i32 = arith.constant 0 : i32
    %0 = arith.cmpi eq, %arg1, %c0_i32 : i32
    %1 = arith.extui %0 : i1 to i32
    %c0_i32_0 = arith.constant 0 : i32
    %2 = arith.cmpi ne, %1, %c0_i32_0 : i32
    scf.if %2 {
      %c0_61 = arith.constant 0 : index
      %c0_62 = arith.constant 0 : index
      %220 = vector.load %arg2[%c0_61, %c0_62] : memref<8x32xf32, #tpu.memory_space<vmem>>, vector<8x32xf32>
      %c0_63 = arith.constant 0 : index
      %c0_64 = arith.constant 0 : index
      %221 = vector.load %arg9[%c0_63, %c0_64] : memref<8x32xf32, #tpu.memory_space<vmem>>, vector<8x32xf32>
      tpu.vector_store %arg9[%c0_63, %c0_64], %220 {strides = array<i32>} : memref<8x32xf32, #tpu.memory_space<vmem>>, vector<8x32xf32>,
    } else {
    }
    %c0 = arith.constant 0 : index
    %c0_1 = arith.constant 0 : index
    %3 = vector.load %arg9[%c0, %c0_1] : memref<8x32xf32, #tpu.memory_space<vmem>>, vector<8x32xf32>
    %4 = arith.index_cast %arg1 : i32 to index
    %c0_2 = arith.constant 0 : index
    %c0_3 = arith.constant 0 : index
    %5 = vector.load %arg7[%4, %c0_2, %c0_3] : memref<2x6x32xf32, #tpu.memory_space<vmem>>, vector<1x6x32xf32>
    %6 = vector.shape_cast %5 : vector<1x6x32xf32> to vector<6x32xf32>
    %7 = vector.extract_strided_slice %6 {offsets = [0, 0], sizes = [1, 32], strides = [1, 1]} : vector<6x32xf32> to vector<1x32xf32>
    %8 = vector.extract_strided_slice %6 {offsets = [1, 0], sizes = [1, 32], strides = [1, 1]} : vector<6x32xf32> to vector<1x32xf32>
    %9 = vector.extract_strided_slice %6 {offsets = [2, 0], sizes = [1, 32], strides = [1, 1]} : vector<6x32xf32> to vector<1x32xf32>
    %10 = vector.extract_strided_slice %6 {offsets = [3, 0], sizes = [1, 32], strides = [1, 1]} : vector<6x32xf32> to vector<1x32xf32>
    %11 = vector.extract_strided_slice %6 {offsets = [4, 0], sizes = [1, 32], strides = [1, 1]} : vector<6x32xf32> to vector<1x32xf32>
    %12 = vector.extract_strided_slice %6 {offsets = [5, 0], sizes = [1, 32], strides = [1, 1]} : vector<6x32xf32> to vector<1x32xf32>
    %cst = arith.constant dense<0.000000e+00> : vector<8xf32>
    %13 = vector.multi_reduction <add>, %3, %cst [1] : vector<8x32xf32> to vector<8xf32>
    %14 = vector.shape_cast %13 : vector<8xf32> to vector<8x1xf32>
    %cst_4 = arith.constant 3.200000e+01 : f32
    %15 = vector.broadcast %cst_4 : f32 to vector<8x1xf32>
    %16 = arith.divf %14, %15 : vector<8x1xf32>
    %17 = vector.broadcast %16 : vector<8x1xf32> to vector<8x32xf32>
    %18 = arith.subf %3, %17 : vector<8x32xf32>
    %19 = arith.mulf %18, %18 : vector<8x32xf32>
    %cst_5 = arith.constant dense<0.000000e+00> : vector<8xf32>
    %20 = vector.multi_reduction <add>, %19, %cst_5 [1] : vector<8x32xf32> to vector<8xf32>
    %21 = vector.shape_cast %20 : vector<8xf32> to vector<8x1xf32>
    %cst_6 = arith.constant 3.200000e+01 : f32
    %22 = vector.broadcast %cst_6 : f32 to vector<8x1xf32>
    %23 = arith.divf %21, %22 : vector<8x1xf32>
    %24 = vector.broadcast %16 : vector<8x1xf32> to vector<8x32xf32>
    %25 = arith.subf %3, %24 : vector<8x32xf32>
    %cst_7 = arith.constant 9.99999974E-6 : f32
    %26 = vector.broadcast %cst_7 : f32 to vector<8x1xf32>
    %27 = arith.addf %23, %26 : vector<8x1xf32>
    %28 = math.rsqrt %27 : vector<8x1xf32>
    %29 = vector.broadcast %28 : vector<8x1xf32> to vector<8x32xf32>
    %30 = arith.mulf %25, %29 : vector<8x32xf32>
    %31 = vector.broadcast %7 : vector<1x32xf32> to vector<8x32xf32>
    %32 = arith.mulf %30, %31 : vector<8x32xf32>
    %33 = vector.broadcast %8 : vector<1x32xf32> to vector<8x32xf32>
    %34 = arith.addf %32, %33 : vector<8x32xf32>
    %35 = arith.truncf %34 : vector<8x32xf32> to vector<8x32xbf16>
    %36 = arith.index_cast %arg1 : i32 to index
    %c0_8 = arith.constant 0 : index
    %c0_9 = arith.constant 0 : index
    %37 = vector.load %arg3[%36, %c0_8, %c0_9] : memref<2x32x192xbf16, #tpu.memory_space<vmem>>, vector<1x32x192xbf16>
    %38 = vector.shape_cast %37 : vector<1x32x192xbf16> to vector<32x192xbf16>
    %cst_10 = arith.constant dense<0.000000e+00> : vector<8x192xf32>
    %39 = tpu.matmul %35, %38, %cst_10 {dimension_numbers = #tpu.dot_dimension_numbers<[1], [0], [0], [1], [0, 0, 1, 1], [], []>} : vector<8x32xbf16>, vector<32x192xbf16>, vector<8x192xf32> -> vector<8x192xf32>
    %40 = vector.extract_strided_slice %39 {offsets = [0, 0], sizes = [8, 16], strides = [1, 1]} : vector<8x192xf32> to vector<8x16xf32>
    %41 = vector.shape_cast %40 : vector<8x16xf32> to vector<1x8x16xf32>
    %42 = arith.truncf %41 : vector<1x8x16xf32> to vector<1x8x16xbf16>
    %43 = vector.extract_strided_slice %39 {offsets = [0, 64], sizes = [8, 16], strides = [1, 1]} : vector<8x192xf32> to vector<8x16xf32>
    %44 = vector.shape_cast %43 : vector<8x16xf32> to vector<1x8x16xf32>
    %45 = arith.truncf %44 : vector<1x8x16xf32> to vector<1x8x16xbf16>
    %46 = vector.extract_strided_slice %39 {offsets = [0, 128], sizes = [8, 16], strides = [1, 1]} : vector<8x192xf32> to vector<8x16xf32>
    %47 = vector.shape_cast %46 : vector<8x16xf32> to vector<1x8x16xf32>
    %48 = arith.truncf %47 : vector<1x8x16xf32> to vector<1x8x16xbf16>
    %cst_11 = arith.constant dense<0.000000e+00> : vector<1x8x8xf32>
    %49 = tpu.matmul %42, %45, %cst_11 {dimension_numbers = #tpu.dot_dimension_numbers<[2], [2], [1], [1], [0, 0, 0, 1, 1, 1], [0], [0]>} : vector<1x8x16xbf16>, vector<1x8x16xbf16>, vector<1x8x8xf32> -> vector<1x8x8xf32>
    %cst_12 = arith.constant dense<0xFF800000> : vector<1x8xf32>
    %50 = vector.multi_reduction <maximumf>, %49, %cst_12 [2] : vector<1x8x8xf32> to vector<1x8xf32>
    %51 = vector.shape_cast %50 : vector<1x8xf32> to vector<1x8x1xf32>
    %52 = vector.broadcast %51 : vector<1x8x1xf32> to vector<1x8x8xf32>
    %53 = arith.subf %49, %52 : vector<1x8x8xf32>
    %54 = math.exp %53 : vector<1x8x8xf32>
    %cst_13 = arith.constant dense<0.000000e+00> : vector<1x8xf32>
    %55 = vector.multi_reduction <add>, %54, %cst_13 [2] : vector<1x8x8xf32> to vector<1x8xf32>
    %56 = vector.shape_cast %55 : vector<1x8xf32> to vector<1x8x1xf32>
    %57 = tpu.reciprocal %56 {approx = true} : vector<1x8x1xf32> -> vector<1x8x1xf32>
    %58 = vector.broadcast %57 : vector<1x8x1xf32> to vector<1x8x8xf32>
    %59 = arith.mulf %54, %58 : vector<1x8x8xf32>
    %60 = arith.truncf %59 : vector<1x8x8xf32> to vector<1x8x8xbf16>
    %cst_14 = arith.constant dense<0.000000e+00> : vector<1x8x16xf32>
    %61 = tpu.matmul %60, %48, %cst_14 {dimension_numbers = #tpu.dot_dimension_numbers<[2], [1], [1], [2], [0, 0, 0, 1, 1, 2], [0], [0]>} : vector<1x8x8xbf16>, vector<1x8x16xbf16>, vector<1x8x16xf32> -> vector<1x8x16xf32>
    %62 = vector.extract_strided_slice %39 {offsets = [0, 16], sizes = [8, 16], strides = [1, 1]} : vector<8x192xf32> to vector<8x16xf32>
    %63 = vector.shape_cast %62 : vector<8x16xf32> to vector<1x8x16xf32>
    %64 = arith.truncf %63 : vector<1x8x16xf32> to vector<1x8x16xbf16>
    %65 = vector.extract_strided_slice %39 {offsets = [0, 80], sizes = [8, 16], strides = [1, 1]} : vector<8x192xf32> to vector<8x16xf32>
    %66 = vector.shape_cast %65 : vector<8x16xf32> to vector<1x8x16xf32>
    %67 = arith.truncf %66 : vector<1x8x16xf32> to vector<1x8x16xbf16>
    %68 = vector.extract_strided_slice %39 {offsets = [0, 144], sizes = [8, 16], strides = [1, 1]} : vector<8x192xf32> to vector<8x16xf32>
    %69 = vector.shape_cast %68 : vector<8x16xf32> to vector<1x8x16xf32>
    %70 = arith.truncf %69 : vector<1x8x16xf32> to vector<1x8x16xbf16>
    %cst_15 = arith.constant dense<0.000000e+00> : vector<1x8x8xf32>
    %71 = tpu.matmul %64, %67, %cst_15 {dimension_numbers = #tpu.dot_dimension_numbers<[2], [2], [1], [1], [0, 0, 0, 1, 1, 1], [0], [0]>} : vector<1x8x16xbf16>, vector<1x8x16xbf16>, vector<1x8x8xf32> -> vector<1x8x8xf32>
    %cst_16 = arith.constant dense<0xFF800000> : vector<1x8xf32>
    %72 = vector.multi_reduction <maximumf>, %71, %cst_16 [2] : vector<1x8x8xf32> to vector<1x8xf32>
    %73 = vector.shape_cast %72 : vector<1x8xf32> to vector<1x8x1xf32>
    %74 = vector.broadcast %73 : vector<1x8x1xf32> to vector<1x8x8xf32>
    %75 = arith.subf %71, %74 : vector<1x8x8xf32>
    %76 = math.exp %75 : vector<1x8x8xf32>
    %cst_17 = arith.constant dense<0.000000e+00> : vector<1x8xf32>
    %77 = vector.multi_reduction <add>, %76, %cst_17 [2] : vector<1x8x8xf32> to vector<1x8xf32>
    %78 = vector.shape_cast %77 : vector<1x8xf32> to vector<1x8x1xf32>
    %79 = tpu.reciprocal %78 {approx = true} : vector<1x8x1xf32> -> vector<1x8x1xf32>
    %80 = vector.broadcast %79 : vector<1x8x1xf32> to vector<1x8x8xf32>
    %81 = arith.mulf %76, %80 : vector<1x8x8xf32>
    %82 = arith.truncf %81 : vector<1x8x8xf32> to vector<1x8x8xbf16>
    %cst_18 = arith.constant dense<0.000000e+00> : vector<1x8x16xf32>
    %83 = tpu.matmul %82, %70, %cst_18 {dimension_numbers = #tpu.dot_dimension_numbers<[2], [1], [1], [2], [0, 0, 0, 1, 1, 2], [0], [0]>} : vector<1x8x8xbf16>, vector<1x8x16xbf16>, vector<1x8x16xf32> -> vector<1x8x16xf32>
    %84 = vector.extract_strided_slice %39 {offsets = [0, 32], sizes = [8, 16], strides = [1, 1]} : vector<8x192xf32> to vector<8x16xf32>
    %85 = vector.shape_cast %84 : vector<8x16xf32> to vector<1x8x16xf32>
    %86 = arith.truncf %85 : vector<1x8x16xf32> to vector<1x8x16xbf16>
    %87 = vector.extract_strided_slice %39 {offsets = [0, 96], sizes = [8, 16], strides = [1, 1]} : vector<8x192xf32> to vector<8x16xf32>
    %88 = vector.shape_cast %87 : vector<8x16xf32> to vector<1x8x16xf32>
    %89 = arith.truncf %88 : vector<1x8x16xf32> to vector<1x8x16xbf16>
    %90 = vector.extract_strided_slice %39 {offsets = [0, 160], sizes = [8, 16], strides = [1, 1]} : vector<8x192xf32> to vector<8x16xf32>
    %91 = vector.shape_cast %90 : vector<8x16xf32> to vector<1x8x16xf32>
    %92 = arith.truncf %91 : vector<1x8x16xf32> to vector<1x8x16xbf16>
    %cst_19 = arith.constant dense<0.000000e+00> : vector<1x8x8xf32>
    %93 = tpu.matmul %86, %89, %cst_19 {dimension_numbers = #tpu.dot_dimension_numbers<[2], [2], [1], [1], [0, 0, 0, 1, 1, 1], [0], [0]>} : vector<1x8x16xbf16>, vector<1x8x16xbf16>, vector<1x8x8xf32> -> vector<1x8x8xf32>
    %cst_20 = arith.constant dense<0xFF800000> : vector<1x8xf32>
    %94 = vector.multi_reduction <maximumf>, %93, %cst_20 [2] : vector<1x8x8xf32> to vector<1x8xf32>
    %95 = vector.shape_cast %94 : vector<1x8xf32> to vector<1x8x1xf32>
    %96 = vector.broadcast %95 : vector<1x8x1xf32> to vector<1x8x8xf32>
    %97 = arith.subf %93, %96 : vector<1x8x8xf32>
    %98 = math.exp %97 : vector<1x8x8xf32>
    %cst_21 = arith.constant dense<0.000000e+00> : vector<1x8xf32>
    %99 = vector.multi_reduction <add>, %98, %cst_21 [2] : vector<1x8x8xf32> to vector<1x8xf32>
    %100 = vector.shape_cast %99 : vector<1x8xf32> to vector<1x8x1xf32>
    %101 = tpu.reciprocal %100 {approx = true} : vector<1x8x1xf32> -> vector<1x8x1xf32>
    %102 = vector.broadcast %101 : vector<1x8x1xf32> to vector<1x8x8xf32>
    %103 = arith.mulf %98, %102 : vector<1x8x8xf32>
    %104 = arith.truncf %103 : vector<1x8x8xf32> to vector<1x8x8xbf16>
    %cst_22 = arith.constant dense<0.000000e+00> : vector<1x8x16xf32>
    %105 = tpu.matmul %104, %92, %cst_22 {dimension_numbers = #tpu.dot_dimension_numbers<[2], [1], [1], [2], [0, 0, 0, 1, 1, 2], [0], [0]>} : vector<1x8x8xbf16>, vector<1x8x16xbf16>, vector<1x8x16xf32> -> vector<1x8x16xf32>
    %106 = vector.extract_strided_slice %39 {offsets = [0, 48], sizes = [8, 16], strides = [1, 1]} : vector<8x192xf32> to vector<8x16xf32>
    %107 = vector.shape_cast %106 : vector<8x16xf32> to vector<1x8x16xf32>
    %108 = arith.truncf %107 : vector<1x8x16xf32> to vector<1x8x16xbf16>
    %109 = vector.extract_strided_slice %39 {offsets = [0, 112], sizes = [8, 16], strides = [1, 1]} : vector<8x192xf32> to vector<8x16xf32>
    %110 = vector.shape_cast %109 : vector<8x16xf32> to vector<1x8x16xf32>
    %111 = arith.truncf %110 : vector<1x8x16xf32> to vector<1x8x16xbf16>
    %112 = vector.extract_strided_slice %39 {offsets = [0, 176], sizes = [8, 16], strides = [1, 1]} : vector<8x192xf32> to vector<8x16xf32>
    %113 = vector.shape_cast %112 : vector<8x16xf32> to vector<1x8x16xf32>
    %114 = arith.truncf %113 : vector<1x8x16xf32> to vector<1x8x16xbf16>
    %cst_23 = arith.constant dense<0.000000e+00> : vector<1x8x8xf32>
    %115 = tpu.matmul %108, %111, %cst_23 {dimension_numbers = #tpu.dot_dimension_numbers<[2], [2], [1], [1], [0, 0, 0, 1, 1, 1], [0], [0]>} : vector<1x8x16xbf16>, vector<1x8x16xbf16>, vector<1x8x8xf32> -> vector<1x8x8xf32>
    %cst_24 = arith.constant dense<0xFF800000> : vector<1x8xf32>
    %116 = vector.multi_reduction <maximumf>, %115, %cst_24 [2] : vector<1x8x8xf32> to vector<1x8xf32>
    %117 = vector.shape_cast %116 : vector<1x8xf32> to vector<1x8x1xf32>
    %118 = vector.broadcast %117 : vector<1x8x1xf32> to vector<1x8x8xf32>
    %119 = arith.subf %115, %118 : vector<1x8x8xf32>
    %120 = math.exp %119 : vector<1x8x8xf32>
    %cst_25 = arith.constant dense<0.000000e+00> : vector<1x8xf32>
    %121 = vector.multi_reduction <add>, %120, %cst_25 [2] : vector<1x8x8xf32> to vector<1x8xf32>
    %122 = vector.shape_cast %121 : vector<1x8xf32> to vector<1x8x1xf32>
    %123 = tpu.reciprocal %122 {approx = true} : vector<1x8x1xf32> -> vector<1x8x1xf32>
    %124 = vector.broadcast %123 : vector<1x8x1xf32> to vector<1x8x8xf32>
    %125 = arith.mulf %120, %124 : vector<1x8x8xf32>
    %126 = arith.truncf %125 : vector<1x8x8xf32> to vector<1x8x8xbf16>
    %cst_26 = arith.constant dense<0.000000e+00> : vector<1x8x16xf32>
    %127 = tpu.matmul %126, %114, %cst_26 {dimension_numbers = #tpu.dot_dimension_numbers<[2], [1], [1], [2], [0, 0, 0, 1, 1, 2], [0], [0]>} : vector<1x8x8xbf16>, vector<1x8x16xbf16>, vector<1x8x16xf32> -> vector<1x8x16xf32>
    %128 = tpu.concatenate %61, %83, %105, %127 in 2 : vector<1x8x16xf32>, vector<1x8x16xf32>, vector<1x8x16xf32>, vector<1x8x16xf32> -> vector<1x8x64xf32>
    %129 = vector.shape_cast %128 : vector<1x8x64xf32> to vector<8x64xf32>
    %130 = arith.truncf %129 : vector<8x64xf32> to vector<8x64xbf16>
    %131 = arith.index_cast %arg1 : i32 to index
    %c0_27 = arith.constant 0 : index
    %c0_28 = arith.constant 0 : index
    %132 = vector.load %arg4[%131, %c0_27, %c0_28] : memref<2x64x32xbf16, #tpu.memory_space<vmem>>, vector<1x64x32xbf16>
    %133 = vector.shape_cast %132 : vector<1x64x32xbf16> to vector<64x32xbf16>
    %cst_29 = arith.constant dense<0.000000e+00> : vector<8x32xf32>
    %134 = tpu.matmul %130, %133, %cst_29 {dimension_numbers = #tpu.dot_dimension_numbers<[1], [0], [0], [1], [0, 0, 1, 1], [], []>} : vector<8x64xbf16>, vector<64x32xbf16>, vector<8x32xf32> -> vector<8x32xf32>
    %135 = vector.broadcast %9 : vector<1x32xf32> to vector<8x32xf32>
    %136 = arith.addf %134, %135 : vector<8x32xf32>
    %137 = arith.addf %136, %3 : vector<8x32xf32>
    %cst_30 = arith.constant dense<0.000000e+00> : vector<8xf32>
    %138 = vector.multi_reduction <add>, %137, %cst_30 [1] : vector<8x32xf32> to vector<8xf32>
    %139 = vector.shape_cast %138 : vector<8xf32> to vector<8x1xf32>
    %cst_31 = arith.constant 3.200000e+01 : f32
    %140 = vector.broadcast %cst_31 : f32 to vector<8x1xf32>
    %141 = arith.divf %139, %140 : vector<8x1xf32>
    %142 = vector.broadcast %141 : vector<8x1xf32> to vector<8x32xf32>
    %143 = arith.subf %137, %142 : vector<8x32xf32>
    %144 = arith.mulf %143, %143 : vector<8x32xf32>
    %cst_32 = arith.constant dense<0.000000e+00> : vector<8xf32>
    %145 = vector.multi_reduction <add>, %144, %cst_32 [1] : vector<8x32xf32> to vector<8xf32>
    %146 = vector.shape_cast %145 : vector<8xf32> to vector<8x1xf32>
    %cst_33 = arith.constant 3.200000e+01 : f32
    %147 = vector.broadcast %cst_33 : f32 to vector<8x1xf32>
    %148 = arith.divf %146, %147 : vector<8x1xf32>
    %149 = vector.broadcast %141 : vector<8x1xf32> to vector<8x32xf32>
    %150 = arith.subf %137, %149 : vector<8x32xf32>
    %cst_34 = arith.constant 9.99999974E-6 : f32
    %151 = vector.broadcast %cst_34 : f32 to vector<8x1xf32>
    %152 = arith.addf %148, %151 : vector<8x1xf32>
    %153 = math.rsqrt %152 : vector<8x1xf32>
    %154 = vector.broadcast %153 : vector<8x1xf32> to vector<8x32xf32>
    %155 = arith.mulf %150, %154 : vector<8x32xf32>
    %156 = vector.broadcast %10 : vector<1x32xf32> to vector<8x32xf32>
    %157 = arith.mulf %155, %156 : vector<8x32xf32>
    %158 = vector.broadcast %11 : vector<1x32xf32> to vector<8x32xf32>
    %159 = arith.addf %157, %158 : vector<8x32xf32>
    %160 = arith.truncf %159 : vector<8x32xf32> to vector<8x32xbf16>
    %161 = arith.index_cast %arg1 : i32 to index
    %c0_35 = arith.constant 0 : index
    %c0_36 = arith.constant 0 : index
    %162 = vector.load %arg5[%161, %c0_35, %c0_36] : memref<2x32x2048xbf16, #tpu.memory_space<vmem>>, vector<1x32x2048xbf16>
    %163 = vector.shape_cast %162 : vector<1x32x2048xbf16> to vector<32x2048xbf16>
    %cst_37 = arith.constant dense<0.000000e+00> : vector<8x2048xf32>
    %164 = tpu.matmul %160, %163, %cst_37 {dimension_numbers = #tpu.dot_dimension_numbers<[1], [0], [0], [1], [0, 0, 1, 1], [], []>} : vector<8x32xbf16>, vector<32x2048xbf16>, vector<8x2048xf32> -> vector<8x2048xf32>
    %165 = arith.index_cast %arg1 : i32 to index
    %c0_38 = arith.constant 0 : index
    %c0_39 = arith.constant 0 : index
    %166 = vector.load %arg8[%165, %c0_38, %c0_39] : memref<2x1x2048xf32, #tpu.memory_space<vmem>>, vector<1x1x2048xf32>
    %167 = vector.shape_cast %166 : vector<1x1x2048xf32> to vector<1x2048xf32>
    %168 = vector.broadcast %167 : vector<1x2048xf32> to vector<8x2048xf32>
    %169 = arith.addf %164, %168 : vector<8x2048xf32>
    %cst_40 = arith.constant 5.000000e-01 : f32
    %170 = vector.broadcast %cst_40 : f32 to vector<8x2048xf32>
    %171 = arith.mulf %170, %169 : vector<8x2048xf32>
    %cst_41 = arith.constant 0.707106769 : f32
    %172 = vector.broadcast %cst_41 : f32 to vector<8x2048xf32>
    %173 = arith.mulf %169, %172 : vector<8x2048xf32>
    %cst_42 = arith.constant 0.000000e+00 : f32
    %174 = vector.broadcast %cst_42 : f32 to vector<8x2048xf32>
    %175 = arith.cmpf oge, %173, %174 : vector<8x2048xf32>
    %cst_43 = arith.constant 1.000000e+00 : f32
    %cst_44 = arith.constant -1.000000e+00 : f32
    %176 = vector.broadcast %cst_43 : f32 to vector<8x2048xf32>
    %177 = vector.broadcast %cst_44 : f32 to vector<8x2048xf32>
    %178 = arith.select %175, %176, %177 : vector<8x2048xi1>, vector<8x2048xf32>
    %179 = math.absf %173 : vector<8x2048xf32>
    %cst_45 = arith.constant 0.327591091 : f32
    %180 = vector.broadcast %cst_45 : f32 to vector<8x2048xf32>
    %181 = arith.mulf %180, %179 : vector<8x2048xf32>
    %cst_46 = arith.constant 1.000000e+00 : f32
    %182 = vector.broadcast %cst_46 : f32 to vector<8x2048xf32>
    %183 = arith.addf %182, %181 : vector<8x2048xf32>
    %cst_47 = arith.constant 1.000000e+00 : f32
    %184 = vector.broadcast %cst_47 : f32 to vector<8x2048xf32>
    %185 = arith.divf %184, %183 : vector<8x2048xf32>
    %cst_48 = arith.constant 1.06140542 : f32
    %186 = vector.broadcast %cst_48 : f32 to vector<8x2048xf32>
    %187 = arith.mulf %186, %185 : vector<8x2048xf32>
    %cst_49 = arith.constant -1.45315206 : f32
    %188 = vector.broadcast %cst_49 : f32 to vector<8x2048xf32>
    %189 = arith.addf %187, %188 : vector<8x2048xf32>
    %190 = arith.mulf %189, %185 : vector<8x2048xf32>
    %cst_50 = arith.constant 1.42141378 : f32
    %191 = vector.broadcast %cst_50 : f32 to vector<8x2048xf32>
    %192 = arith.addf %190, %191 : vector<8x2048xf32>
    %193 = arith.mulf %192, %185 : vector<8x2048xf32>
    %cst_51 = arith.constant -0.284496725 : f32
    %194 = vector.broadcast %cst_51 : f32 to vector<8x2048xf32>
    %195 = arith.addf %193, %194 : vector<8x2048xf32>
    %196 = arith.mulf %195, %185 : vector<8x2048xf32>
    %cst_52 = arith.constant 0.254829586 : f32
    %197 = vector.broadcast %cst_52 : f32 to vector<8x2048xf32>
    %198 = arith.addf %196, %197 : vector<8x2048xf32>
    %199 = arith.mulf %198, %185 : vector<8x2048xf32>
    %cst_53 = arith.constant 0.000000e+00 : f32
    %200 = vector.broadcast %cst_53 : f32 to vector<8x2048xf32>
    %201 = arith.subf %200, %179 : vector<8x2048xf32>
    %202 = arith.mulf %201, %179 : vector<8x2048xf32>
    %203 = math.exp %202 : vector<8x2048xf32>
    %204 = arith.mulf %199, %203 : vector<8x2048xf32>
    %cst_54 = arith.constant 1.000000e+00 : f32
    %205 = vector.broadcast %cst_54 : f32 to vector<8x2048xf32>
    %206 = arith.subf %205, %204 : vector<8x2048xf32>
    %207 = arith.mulf %178, %206 : vector<8x2048xf32>
    %cst_55 = arith.constant 1.000000e+00 : f32
    %208 = vector.broadcast %cst_55 : f32 to vector<8x2048xf32>
    %209 = arith.addf %208, %207 : vector<8x2048xf32>
    %210 = arith.mulf %171, %209 : vector<8x2048xf32>
    %211 = arith.truncf %210 : vector<8x2048xf32> to vector<8x2048xbf16>
    %212 = arith.index_cast %arg1 : i32 to index
    %c0_56 = arith.constant 0 : index
    %c0_57 = arith.constant 0 : index
    %213 = vector.load %arg6[%212, %c0_56, %c0_57] : memref<2x2048x32xbf16, #tpu.memory_space<vmem>>, vector<1x2048x32xbf16>
    %214 = vector.shape_cast %213 : vector<1x2048x32xbf16> to vector<2048x32xbf16>
    %cst_58 = arith.constant dense<0.000000e+00> : vector<8x32xf32>
    %215 = tpu.matmul %211, %214, %cst_58 {dimension_numbers = #tpu.dot_dimension_numbers<[1], [0], [0], [1], [0, 0, 1, 1], [], []>} : vector<8x2048xbf16>, vector<2048x32xbf16>, vector<8x32xf32> -> vector<8x32xf32>
    %216 = vector.broadcast %12 : vector<1x32xf32> to vector<8x32xf32>
    %217 = arith.addf %215, %216 : vector<8x32xf32>
    %218 = arith.addf %217, %137 : vector<8x32xf32>
    %c0_59 = arith.constant 0 : index
    %c0_60 = arith.constant 0 : index
    %219 = vector.load %arg9[%c0_59, %c0_60] : memref<8x32xf32, #tpu.memory_space<vmem>>, vector<8x32xf32>
    tpu.vector_store %arg9[%c0_59, %c0_60], %218 {strides = array<i32>} : memref<8x32xf32, #tpu.memory_space<vmem>>, vector<8x32xf32>,
    return
  }
  func.func @transform_0(%arg0: i32, %arg1: i32) -> (i32, i32) {
    %c0_i32 = arith.constant 0 : i32
    %c0_i32_0 = arith.constant 0 : i32
    return %arg0, %c0_i32 : i32, i32
  }
  func.func @transform_1(%arg0: i32, %arg1: i32) -> (i32, i32, i32) {
    %c0_i32 = arith.constant 0 : i32
    %c0_i32_0 = arith.constant 0 : i32
    %c0_i32_1 = arith.constant 0 : i32
    %c0_i32_2 = arith.constant 0 : i32
    return %c0_i32, %c0_i32_0, %c0_i32_1 : i32, i32, i32
  }
  func.func @transform_2(%arg0: i32, %arg1: i32) -> (i32, i32, i32) {
    %c0_i32 = arith.constant 0 : i32
    %c0_i32_0 = arith.constant 0 : i32
    %c0_i32_1 = arith.constant 0 : i32
    %c0_i32_2 = arith.constant 0 : i32
    return %c0_i32, %c0_i32_0, %c0_i32_1 : i32, i32, i32
  }
  func.func @transform_3(%arg0: i32, %arg1: i32) -> (i32, i32, i32) {
    %c0_i32 = arith.constant 0 : i32
    %c0_i32_0 = arith.constant 0 : i32
    %c0_i32_1 = arith.constant 0 : i32
    %c0_i32_2 = arith.constant 0 : i32
    return %c0_i32, %c0_i32_0, %c0_i32_1 : i32, i32, i32
  }
  func.func @transform_4(%arg0: i32, %arg1: i32) -> (i32, i32, i32) {
    %c0_i32 = arith.constant 0 : i32
    %c0_i32_0 = arith.constant 0 : i32
    %c0_i32_1 = arith.constant 0 : i32
    %c0_i32_2 = arith.constant 0 : i32
    return %c0_i32, %c0_i32_0, %c0_i32_1 : i32, i32, i32
  }
  func.func @transform_5(%arg0: i32, %arg1: i32) -> (i32, i32, i32) {
    %c0_i32 = arith.constant 0 : i32
    %c0_i32_0 = arith.constant 0 : i32
    %c0_i32_1 = arith.constant 0 : i32
    %c0_i32_2 = arith.constant 0 : i32
    return %c0_i32, %c0_i32_0, %c0_i32_1 : i32, i32, i32
  }
  func.func @transform_6(%arg0: i32, %arg1: i32) -> (i32, i32, i32) {
    %c0_i32 = arith.constant 0 : i32
    %c0_i32_0 = arith.constant 0 : i32
    %c0_i32_1 = arith.constant 0 : i32
    %c0_i32_2 = arith.constant 0 : i32
    return %c0_i32, %c0_i32_0, %c0_i32_1 : i32, i32, i32
  }
  func.func @transform_7(%arg0: i32, %arg1: i32) -> (i32, i32) {
    %c0_i32 = arith.constant 0 : i32
    %c0_i32_0 = arith.constant 0 : i32
    return %arg0, %c0_i32 : i32, i32
  }
}

</mosaic_0001>

<llo_original>
// kernel: transformer_forward.1
$region0: #{transformer_forward.1}
  #allocation0 [shape = 'u32[]', space=smem, size = 0x4, offset = 0x4, fixed_abs, tag = 'smem constant byte address 0x4 - core index']
  #allocation1 [shape = 'u32[144,128]{1,0:T(1,128)}', space=vmem, size = 0x12000, scoped, tag = 'internal scratch']
  %s0 = inlined_call_operand.vmem [shape: f32[16,32], index: 0, kind: input, shape index: {}]
  %s1 = inlined_call_operand.vmem [shape: bf16[2,32,192], index: 1, kind: input, shape index: {}]
  %s2 = inlined_call_operand.vmem [shape: bf16[2,64,32], index: 2, kind: input, shape index: {}]
  %s3 = inlined_call_operand.vmem [shape: bf16[2,32,2048], index: 3, kind: input, shape index: {}]
  %s4 = inlined_call_operand.vmem [shape: bf16[2,2048,32], index: 4, kind: input, shape index: {}]
  %s5 = inlined_call_operand.vmem [shape: f32[2,6,32], index: 5, kind: input, shape index: {}]
  %s6 = inlined_call_operand.vmem [shape: f32[2,1,2048], index: 6, kind: input, shape index: {}]
  %s7 = inlined_call_operand.hbm [shape: f32[16,32], index: 7, kind: output, shape index: {}]
  %s8 = sld [smem:[#allocation0]]
  $region65: #{transformer_forward.1} parent=0
    _
  %s10 = ssub.s32 1, %s8
  %s11 = scalar_select 0, %s10, %s8
  $region1: #{transformer_forward.1} parent=0
    #allocation2 [shape = 'u8[8192]{0}', space=vmem, size = 0x2000, scoped, tag = 'output window, operand 0']
    #allocation3 [shape = 's32[2]{0}', space=sflag, size = 0x8, scoped, tag = 'scoped memory for transformer_forward.1']
    %12 = vsyncpa [#allocation3], 0
    %s13 = scalar_lea.sflag [#allocation3], 1
    %14 = vsyncpa %s13, 0
    loop: start=0, step=1, limit=6
    $region2: #{transformer_forward.1} parent=1 // loop_pre_header
      _
    $region3: #{transformer_forward.1} parent=1 // loop_header
      %s16 = sphi 0, %s20
      %p17 = scmp.ge.s32.totalorder %s16, 6
      %s23 = sphi 0, %s35
      %s24 = sphi 0, %s31
      %s25 = sphi 0, %s23
      %s26 = sphi 0, %s24
      %s27 = sphi 0, %s25
      %s28 = sphi 0, %s26
      %s38 = sphi 0, %s40
      %s41 = sphi 0, %s38
      %s42 = sphi 0, %s41
      %s58 = sphi 0, %s42
      %s62 = sphi 0, %s62
      %s64 = sphi 0, %s62
      %s65 = sphi 0, %s64
      %s79 = sphi 0, %s65
      %s83 = sphi 0, %s83
      %s85 = sphi 0, %s83
      %s86 = sphi 0, %s85
      %s100 = sphi 0, %s86
      %s104 = sphi 0, %s104
      %s106 = sphi 0, %s104
      %s107 = sphi 0, %s106
      %s121 = sphi 0, %s107
      %s125 = sphi 0, %s125
      %s127 = sphi 0, %s125
      %s128 = sphi 0, %s127
      %s142 = sphi 0, %s128
      %s146 = sphi 0, %s146
      %s148 = sphi 0, %s146
      %s149 = sphi 0, %s148
      %s163 = sphi 0, %s149
      %s167 = sphi 0, %s167
      %s169 = sphi 0, %s167
      %s170 = sphi 0, %s169
      %s184 = sphi 0, %s170
      %s190 = sphi 0, %s192
      %s193 = sphi 0, %s190
      %s194 = sphi 0, %s193
      %s210 = sphi 0, %s194
    $region4: #{transformer_forward.1} parent=1 // loop_header_branch
      %19 = sbr.rel (%p17) target = $region8
    $region5: #{transformer_forward.1} parent=1 // loop_body
      %s21 = ssub.s32 %s16, 1
      %s22 = ssub.s32 %s16, 2
      %s29 = sadd.s32 1, %s24
      %p30 = scmp.ge.s32.totalorder %s29, 2
      %s31 = scalar_select %p30, 0, %s29
      %s32 = sadd.s32 1, %s23
      %s33 = scalar_select %p30, %s32, %s23
      %p34 = scmp.ge.s32.totalorder %s33, 2
      %s35 = scalar_select %p34, 0, %s33
      %s36 = ssub.s32 %s23, %s35
      %p37 = scmp.eq.s32.totalorder %s36, 0
      %s39 = sadd.s32 %s38, 1
      %s40 = scalar_select %p37, %s38, %s39
      %p43 = pneg %p37
      %p44 = scmp.eq.s32.totalorder %s16, 3
      %p45 = por %p43, %p44
      %p46 = scmp.ne.s32.totalorder %s38, %s41
      %p47 = scmp.eq.s32.totalorder %s16, 0
      %p48 = por %p46, %p47
      %p49 = scmp.ne.s32.totalorder %s38, %s41
      %p50 = scmp.eq.s32.totalorder %s21, 3
      %p51 = por %p49, %p50
      %p52 = scmp.ne.s32.totalorder %s41, %s42
      %p53 = scmp.eq.s32.totalorder %s21, 0
      %p54 = por %p52, %p53
      %p55 = scmp.ne.s32.totalorder %s41, %s42
      %p56 = scmp.eq.s32.totalorder %s22, 3
      %p57 = por %p55, %p56
      %p59 = scmp.ne.s32.totalorder %s42, %s58
      %p60 = scmp.eq.s32.totalorder %s22, 0
      %p61 = por %p59, %p60
      %s63 = sadd.s32 %s62, 1
      %p66 = scmp.eq.s32.totalorder %s16, 3
      %p67 = scmp.ne.s32.totalorder %s62, %s64
      %p68 = scmp.eq.s32.totalorder %s16, 0
      %p69 = por %p67, %p68
      %p70 = scmp.ne.s32.totalorder %s62, %s64
      %p71 = scmp.eq.s32.totalorder %s21, 3
      %p72 = por %p70, %p71
      %p73 = scmp.ne.s32.totalorder %s64, %s65
      %p74 = scmp.eq.s32.totalorder %s21, 0
      %p75 = por %p73, %p74
      %p76 = scmp.ne.s32.totalorder %s64, %s65
      %p77 = scmp.eq.s32.totalorder %s22, 3
      %p78 = por %p76, %p77
      %p80 = scmp.ne.s32.totalorder %s65, %s79
      %p81 = scmp.eq.s32.totalorder %s22, 0
      %p82 = por %p80, %p81
      %s84 = sadd.s32 %s83, 1
      %p87 = scmp.eq.s32.totalorder %s16, 3
      %p88 = scmp.ne.s32.totalorder %s83, %s85
      %p89 = scmp.eq.s32.totalorder %s16, 0
      %p90 = por %p88, %p89
      %p91 = scmp.ne.s32.totalorder %s83, %s85
      %p92 = scmp.eq.s32.totalorder %s21, 3
      %p93 = por %p91, %p92
      %p94 = scmp.ne.s32.totalorder %s85, %s86
      %p95 = scmp.eq.s32.totalorder %s21, 0
      %p96 = por %p94, %p95
      %p97 = scmp.ne.s32.totalorder %s85, %s86
      %p98 = scmp.eq.s32.totalorder %s22, 3
      %p99 = por %p97, %p98
      %p101 = scmp.ne.s32.totalorder %s86, %s100
      %p102 = scmp.eq.s32.totalorder %s22, 0
      %p103 = por %p101, %p102
      %s105 = sadd.s32 %s104, 1
      %p108 = scmp.eq.s32.totalorder %s16, 3
      %p109 = scmp.ne.s32.totalorder %s104, %s106
      %p110 = scmp.eq.s32.totalorder %s16, 0
      %p111 = por %p109, %p110
      %p112 = scmp.ne.s32.totalorder %s104, %s106
      %p113 = scmp.eq.s32.totalorder %s21, 3
      %p114 = por %p112, %p113
      %p115 = scmp.ne.s32.totalorder %s106, %s107
      %p116 = scmp.eq.s32.totalorder %s21, 0
      %p117 = por %p115, %p116
      %p118 = scmp.ne.s32.totalorder %s106, %s107
      %p119 = scmp.eq.s32.totalorder %s22, 3
      %p120 = por %p118, %p119
      %p122 = scmp.ne.s32.totalorder %s107, %s121
      %p123 = scmp.eq.s32.totalorder %s22, 0
      %p124 = por %p122, %p123
      %s126 = sadd.s32 %s125, 1
      %p129 = scmp.eq.s32.totalorder %s16, 3
      %p130 = scmp.ne.s32.totalorder %s125, %s127
      %p131 = scmp.eq.s32.totalorder %s16, 0
      %p132 = por %p130, %p131
      %p133 = scmp.ne.s32.totalorder %s125, %s127
      %p134 = scmp.eq.s32.totalorder %s21, 3
      %p135 = por %p133, %p134
      %p136 = scmp.ne.s32.totalorder %s127, %s128
      %p137 = scmp.eq.s32.totalorder %s21, 0
      %p138 = por %p136, %p137
      %p139 = scmp.ne.s32.totalorder %s127, %s128
      %p140 = scmp.eq.s32.totalorder %s22, 3
      %p141 = por %p139, %p140
      %p143 = scmp.ne.s32.totalorder %s128, %s142
      %p144 = scmp.eq.s32.totalorder %s22, 0
      %p145 = por %p143, %p144
      %s147 = sadd.s32 %s146, 1
      %p150 = scmp.eq.s32.totalorder %s16, 3
      %p151 = scmp.ne.s32.totalorder %s146, %s148
      %p152 = scmp.eq.s32.totalorder %s16, 0
      %p153 = por %p151, %p152
      %p154 = scmp.ne.s32.totalorder %s146, %s148
      %p155 = scmp.eq.s32.totalorder %s21, 3
      %p156 = por %p154, %p155
      %p157 = scmp.ne.s32.totalorder %s148, %s149
      %p158 = scmp.eq.s32.totalorder %s21, 0
      %p159 = por %p157, %p158
      %p160 = scmp.ne.s32.totalorder %s148, %s149
      %p161 = scmp.eq.s32.totalorder %s22, 3
      %p162 = por %p160, %p161
      %p164 = scmp.ne.s32.totalorder %s149, %s163
      %p165 = scmp.eq.s32.totalorder %s22, 0
      %p166 = por %p164, %p165
      %s168 = sadd.s32 %s167, 1
      %p171 = scmp.eq.s32.totalorder %s16, 3
      %p172 = scmp.ne.s32.totalorder %s167, %s169
      %p173 = scmp.eq.s32.totalorder %s16, 0
      %p174 = por %p172, %p173
      %p175 = scmp.ne.s32.totalorder %s167, %s169
      %p176 = scmp.eq.s32.totalorder %s21, 3
      %p177 = por %p175, %p176
      %p178 = scmp.ne.s32.totalorder %s169, %s170
      %p179 = scmp.eq.s32.totalorder %s21, 0
      %p180 = por %p178, %p179
      %p181 = scmp.ne.s32.totalorder %s169, %s170
      %p182 = scmp.eq.s32.totalorder %s22, 3
      %p183 = por %p181, %p182
      %p185 = scmp.ne.s32.totalorder %s170, %s184
      %p186 = scmp.eq.s32.totalorder %s22, 0
      %p187 = por %p185, %p186
      %s188 = ssub.s32 %s23, %s35
      %p189 = scmp.eq.s32.totalorder %s188, 0
      %s191 = sadd.s32 %s190, 1
      %s192 = scalar_select %p189, %s190, %s191
      %p195 = pneg %p189
      %p196 = scmp.eq.s32.totalorder %s16, 3
      %p197 = por %p195, %p196
      %p198 = scmp.ne.s32.totalorder %s190, %s193
      %p199 = scmp.eq.s32.totalorder %s16, 0
      %p200 = por %p198, %p199
      %p201 = scmp.ne.s32.totalorder %s190, %s193
      %p202 = scmp.eq.s32.totalorder %s21, 3
      %p203 = por %p201, %p202
      %p204 = scmp.ne.s32.totalorder %s193, %s194
      %p205 = scmp.eq.s32.totalorder %s21, 0
      %p206 = por %p204, %p205
      %p207 = scmp.ne.s32.totalorder %s193, %s194
      %p208 = scmp.eq.s32.totalorder %s22, 3
      %p209 = por %p207, %p208
      %p211 = scmp.ne.s32.totalorder %s194, %s210
      %p212 = scmp.eq.s32.totalorder %s22, 0
      %p213 = por %p211, %p212
      %p214 = scmp.le.s32.totalorder 1, %s16
      %p215 = scmp.lt.s32.totalorder %s16, 5
      %p216 = pnand %p214, %p215
      %p217 = pneg %p216
      // Predicated region
      $region9: #{transformer_forward.1} parent=5 // pred_check
        _
      $region10: #{transformer_forward.1} parent=5 // pred_check_branch
        %219 = sbr.rel (%p216) target = $region12
      $region11: #{transformer_forward.1} parent=5 // pred_region
        %s220 = ssub.s32 %s16, 1
        // Predicated region
        $region13: #{transformer_forward.1} parent=11 // pred_check
          %p221 = pneg %p75
        $region14: #{transformer_forward.1} parent=11 // pred_check_branch
          %223 = sbr.rel (%p221) target = $region16
        $region15: #{transformer_forward.1} parent=11 // pred_region
          _
        $region16: #{transformer_forward.1} parent=11 // pred_fallthru
          _
        // Predicated region
        $region17: #{transformer_forward.1} parent=11 // pred_check
          %p224 = pneg %p96
        $region18: #{transformer_forward.1} parent=11 // pred_check_branch
          %226 = sbr.rel (%p224) target = $region20
        $region19: #{transformer_forward.1} parent=11 // pred_region
          _
        $region20: #{transformer_forward.1} parent=11 // pred_fallthru
          _
        // Predicated region
        $region21: #{transformer_forward.1} parent=11 // pred_check
          %p227 = pneg %p117
        $region22: #{transformer_forward.1} parent=11 // pred_check_branch
          %229 = sbr.rel (%p227) target = $region24
        $region23: #{transformer_forward.1} parent=11 // pred_region
          _
        $region24: #{transformer_forward.1} parent=11 // pred_fallthru
          _
        // Predicated region
        $region25: #{transformer_forward.1} parent=11 // pred_check
          %p230 = pneg %p138
        $region26: #{transformer_forward.1} parent=11 // pred_check_branch
          %232 = sbr.rel (%p230) target = $region28
        $region27: #{transformer_forward.1} parent=11 // pred_region
          _
        $region28: #{transformer_forward.1} parent=11 // pred_fallthru
          _
        // Predicated region
        $region29: #{transformer_forward.1} parent=11 // pred_check
          %p233 = pneg %p159
        $region30: #{transformer_forward.1} parent=11 // pred_check_branch
          %235 = sbr.rel (%p233) target = $region32
        $region31: #{transformer_forward.1} parent=11 // pred_region
          _
        $region32: #{transformer_forward.1} parent=11 // pred_fallthru
          _
        // Predicated region
        $region33: #{transformer_forward.1} parent=11 // pred_check
          %p236 = pneg %p180
        $region34: #{transformer_forward.1} parent=11 // pred_check_branch
          %238 = sbr.rel (%p236) target = $region36
        $region35: #{transformer_forward.1} parent=11 // pred_region
          _
        $region36: #{transformer_forward.1} parent=11 // pred_fallthru
          _
      $region12: #{transformer_forward.1} parent=5 // pred_fallthru
        _
      %p239 = scmp.lt.s32.totalorder %s16, 4
      // Predicated region
      $region37: #{transformer_forward.1} parent=5 // pred_check
        %p240 = pneg %p239
      $region38: #{transformer_forward.1} parent=5 // pred_check_branch
        %242 = sbr.rel (%p240) target = $region40
      $region39: #{transformer_forward.1} parent=5 // pred_region
        // Predicated region
        $region41: #{transformer_forward.1} parent=39 // pred_check
          %p243 = pneg %p48
        $region42: #{transformer_forward.1} parent=39 // pred_check_branch
          %245 = sbr.rel (%p243) target = $region44
        $region43: #{transformer_forward.1} parent=39 // pred_region
          %p246 = scmp.lt.s32.totalorder %s23, 1
          %s247 = scalar_select %p246, %s23, 1
          %s248 = smul.addr %s247, 8
          %s249 = scalar_lea.vmem %s0, %s248
        $region44: #{transformer_forward.1} parent=39 // pred_fallthru
          _
      $region40: #{transformer_forward.1} parent=5 // pred_fallthru
        _
      %p250 = scmp.le.s32.totalorder 1, %s16
      %p251 = scmp.lt.s32.totalorder %s16, 5
      %p252 = pnand %p250, %p251
      %p253 = pneg %p252
      // Predicated region
      $region45: #{transformer_forward.1} parent=5 // pred_check
        _
      $region46: #{transformer_forward.1} parent=5 // pred_check_branch
        %255 = sbr.rel (%p252) target = $region48
      $region47: #{transformer_forward.1} parent=5 // pred_region
        %s256 = ssub.s32 %s16, 1
        %p257 = scmp.lt.s32.totalorder %s25, 1
        %s258 = scalar_select %p257, %s25, 1
        %s259 = smul.addr %s258, 8
        %s260 = scalar_lea.vmem %s0, %s259
        %p261 = pneg %p54
        %p262 = pneg %p51
        %p263 = pneg %p75
        %p264 = pneg %p72
        %p265 = pneg %p96
        %p266 = pneg %p93
        %p267 = pneg %p117
        %p268 = pneg %p114
        %p269 = pneg %p138
        %p270 = pneg %p135
        %p271 = pneg %p159
        %p272 = pneg %p156
        %p273 = pneg %p180
        %p274 = pneg %p177
        %p275 = pneg %p206
        %p276 = pneg %p203
        %s277 = sand.u32 %s193, 1
        %s278 = scalar_lea.sflag [#allocation3], %s277
        %s279 = sand.u32 %s193, 1
        %s280 = smul.addr %s279, 8
        %s281 = scalar_lea.vmem [#allocation2], %s280
        %p282 = scmp.lt.s32.totalorder %s25, 1
        %s283 = scalar_select %p282, %s25, 1
        %s284 = smul.addr %s283, 8
        %s285 = scalar_lea.vmem %s0, %s284
        %p287 = scmp.eq.s32.totalorder %s26, 0
        // Predicated region
        $region49: #{transformer_forward.1} parent=47 // pred_check
          %p288 = pneg %p287
        $region50: #{transformer_forward.1} parent=47 // pred_check_branch
          %290 = sbr.rel (%p288) target = $region52
        $region51: #{transformer_forward.1} parent=47 // pred_region
          %v291 = vld [vmem:[%s285] sm:$0xff]
          %vm292 = vcmask 261120
          %293 = vst.msk [vmem:[%s281] sm:$0xff] %vm292, %v291
        $region52: #{transformer_forward.1} parent=47 // pred_fallthru
          _
        %v294 = vld [vmem:[%s281] sm:$0xff]
        %s295 = smul.u32 %s26, 8
        %s296 = scalar_lea.vmem %s5, %s295
        %v297 = vld [vmem:[%s296] sm:$0x3f]
        %vm298 = vcmask 261120
        %v299 = vsel %vm298, %v294, 0.0
        %300 = vadd.xlane.f32.xlu0 %v299
        %v301 = vpop.xlane.xlu0 %300
        %v302 = vrcp.pop 32.0
        %v303 = vmul.f32 %v301, %v302
        %v304 = vsub.f32 %v294, %v303
        %v305 = vmul.f32 %v304, %v304
        %v306 = vsel %vm298, %v305, 0.0
        %307 = vadd.xlane.f32.xlu0 %v306
        %v308 = vpop.xlane.xlu0 %307
        %v309 = vmul.f32 %v308, %v302
        %v310 = vadd.f32 %v309, 1e-05
        %v311 = vrsqrt.pop %v310
        %v312 = vmul.f32 %v304, %v311
        %v313 = vlaneseq
        %v314 = vshrl.u32 %v313, 7
        %v315 = vsub.s32 0, %v314
        %v316 = vrot.slane %v297, %v315
        %v317 = vmul.f32 %v312, %v316
        %v318 = vlaneseq
        %v319 = vshrl.u32 %v318, 7
        %v320 = vsub.s32 1, %v319
        %v321 = vrot.slane %v297, %v320
        %v322 = vadd.f32 %v317, %v321
        %v323 = vpack.c.bf16 %v322, %v322
        %s324 = smul.addr %s295, 4
        %s325 = scalar_lea.vmem %s1, %s324
        %v326 = vld [vmem:[%s325] sm:$0xff]
        %v327 = vld [vmem:[%s325 + $0x8] sm:$0xff]
        %v328 = vld [vmem:[%s325 + $0x10] sm:$0xff]
        %v329 = vld [vmem:[%s325 + $0x18] sm:$0xff]
        %v334 = vunpack.c.l.b16 %v326
        %v335 = vunpack.c.h.b16 %v326
        %v336 = vunpack.c.l.b16 %v327
        %v337 = vunpack.c.h.b16 %v327
        %v338 = vunpack.c.l.b16 %v328
        %v339 = vunpack.c.h.b16 %v328
        %v340 = vunpack.c.l.b16 %v329
        %v341 = vunpack.c.h.b16 %v329
        %v342 = vpack.c.b16 %v336, %v334
        %v343 = vpack.c.b16 %v337, %v335
        %v344 = vpack.c.b16 %v340, %v338
        %v345 = vpack.c.b16 %v341, %v339
        %v351 = vsel %vm298, %v323, 0
        %353 = vmatprep.subr.bf16.mxu0 %v343
        %354 = vmatpush1.bf16.msra.mxu0 %v342
        %355 = vmatprep.subr.bf16.mxu0 %v345
        %356 = vmatpush1.bf16.msra.mxu0 %v344
        %357 = vmatprep.subr.bf16.mxu0 0
        %358 = vmatpush1.bf16.msra.mxu0 0
        %359 = vmatprep.subr.bf16.mxu0 0
        %360 = vmatpush1.bf16.msra.mxu0 0
        %361 = vmatprep.subr.bf16.mxu0 0
        %362 = vmatpush1.bf16.msra.mxu0 0
        %363 = vmatprep.subr.bf16.mxu0 0
        %364 = vmatpush1.bf16.msra.mxu0 0
        %365 = vmatprep.subr.bf16.mxu0 0
        %366 = vmatpush1.bf16.msra.mxu0 0
        %367 = vmatprep.subr.bf16.mxu0 0
        %368 = vmatpush1.bf16.msra.mxu0 0
        %369 = vmatprep.subr.bf16.mxu0 0
        %370 = vmatpush1.bf16.msra.mxu0 0
        %371 = vmatprep.subr.bf16.mxu0 0
        %372 = vmatpush1.bf16.msra.mxu0 0
        %373 = vmatprep.subr.bf16.mxu0 0
        %374 = vmatpush1.bf16.msra.mxu0 0
        %375 = vmatprep.subr.bf16.mxu0 0
        %376 = vmatpush1.bf16.msra.mxu0 0
        %377 = vmatprep.subr.bf16.mxu0 0
        %378 = vmatpush1.bf16.msra.mxu0 0
        %379 = vmatprep.subr.bf16.mxu0 0
        %380 = vmatpush1.bf16.msra.mxu0 0
        %381 = vmatprep.subr.bf16.mxu0 0
        %382 = vmatpush1.bf16.msra.mxu0 0
        %383 = vmatprep.subr.bf16.mxu0 0
        %384 = vmatpush1.bf16.msra.mxu0 0
        %385 = vmatprep.mubr.bf16.mxu0 0
        %386 = vmatmul.mubr.bf16.gmra.mrb[0].mxu0 %v351
        %v387 = vpop.f32.mrb[0].mxu0
        %v388 = vadd.f32 0.0, %v387
        %v389 = vpop.f32.mrb[0].mxu0
        %v390 = vadd.f32 0.0, %v389
        %v391 = vpop.f32.mrb[0].mxu0
        %v392 = vpop.f32.mrb[0].mxu0
        %393 = vdwg.mxu0
        %v394 = vpack.c.bf16 %v388, %v388
        %v395 = vpack.c.bf16 %v390, %v390
        %397 = vrot.lane.b32.xlu0 %v394, 64
        %v398 = vpop.permute.xlu0 %397
        %vm399 = vcmask 130048
        %v401 = vsel %vm399, %v394, 0
        %v404 = vsel %vm399, %v398, 0
        %406 = vmatprep.subr.bf16.mxu0 0
        %407 = vmatpush1.bf16.xpose.msra.mxu0 %v404
        %408 = vmatprep.subr.bf16.mxu0 0
        %409 = vmatpush1.bf16.xpose.msra.mxu0 0
        %410 = vmatprep.subr.bf16.mxu0 0
        %411 = vmatpush1.bf16.xpose.msra.mxu0 0
        %412 = vmatprep.subr.bf16.mxu0 0
        %413 = vmatpush1.bf16.xpose.msra.mxu0 0
        %414 = vmatprep.subr.bf16.mxu0 0
        %415 = vmatpush1.bf16.xpose.msra.mxu0 0
        %416 = vmatprep.subr.bf16.mxu0 0
        %417 = vmatpush1.bf16.xpose.msra.mxu0 0
        %418 = vmatprep.subr.bf16.mxu0 0
        %419 = vmatpush1.bf16.xpose.msra.mxu0 0
        %420 = vmatprep.subr.bf16.mxu0 0
        %421 = vmatpush1.bf16.xpose.msra.mxu0 0
        %422 = vmatprep.subr.bf16.mxu0 0
        %423 = vmatpush1.bf16.xpose.msra.mxu0 0
        %424 = vmatprep.subr.bf16.mxu0 0
        %425 = vmatpush1.bf16.xpose.msra.mxu0 0
        %426 = vmatprep.subr.bf16.mxu0 0
        %427 = vmatpush1.bf16.xpose.msra.mxu0 0
        %428 = vmatprep.subr.bf16.mxu0 0
        %429 = vmatpush1.bf16.xpose.msra.mxu0 0
        %430 = vmatprep.subr.bf16.mxu0 0
        %431 = vmatpush1.bf16.xpose.msra.mxu0 0
        %432 = vmatprep.subr.bf16.mxu0 0
        %433 = vmatpush1.bf16.xpose.msra.mxu0 0
        %434 = vmatprep.subr.bf16.mxu0 0
        %435 = vmatpush1.bf16.xpose.msra.mxu0 0
        %436 = vmatprep.subr.bf16.mxu0 0
        %437 = vmatpush1.bf16.xpose.msra.mxu0 0
        %438 = vmatprep.mubr.bf16.mxu0 0
        %439 = vmatmul.mubr.bf16.gmra.mrb[0].mxu0 %v401
        %v440 = vpop.f32.mrb[0].mxu0
        %v441 = vadd.f32 0.0, %v440
        %v442 = vpop.f32.mrb[0].mxu0
        %v443 = vpop.f32.mrb[0].mxu0
        %v444 = vpop.f32.mrb[0].mxu0
        %445 = vdwg.mxu0
        %vm446 = vcmask 64512
        %v447 = vsel %vm446, %v441, -inf
        %448 = vmax.xlane.f32.xlu0 %v447
        %v449 = vpop.xlane.xlu0 %448
        %v450 = vsub.f32 %v441, %v449
        %v451 = vmul.f32 %v450, 1.442695
        %v452 = vpow.pop %v451
        %v453 = vsel %vm446, %v452, 0.0
        %454 = vadd.xlane.f32.xlu0 %v453
        %v455 = vpop.xlane.xlu0 %454
        %v456 = vrcp.pop %v455
        %v457 = vmul.f32 %v452, %v456
        %v458 = vpack.c.bf16 %v457, %v457
        %v460 = vsel %vm446, %v458, 0
        %vm462 = vcmask 1043456
        %v464 = vsel %vm462, %v395, 0
        %466 = vmatprep.subr.bf16.mxu0 0
        %467 = vmatpush1.bf16.msra.mxu0 %v464
        %468 = vmatprep.subr.bf16.mxu0 0
        %469 = vmatpush1.bf16.msra.mxu0 0
        %470 = vmatprep.subr.bf16.mxu0 0
        %471 = vmatpush1.bf16.msra.mxu0 0
        %472 = vmatprep.subr.bf16.mxu0 0
        %473 = vmatpush1.bf16.msra.mxu0 0
        %474 = vmatprep.subr.bf16.mxu0 0
        %475 = vmatpush1.bf16.msra.mxu0 0
        %476 = vmatprep.subr.bf16.mxu0 0
        %477 = vmatpush1.bf16.msra.mxu0 0
        %478 = vmatprep.subr.bf16.mxu0 0
        %479 = vmatpush1.bf16.msra.mxu0 0
        %480 = vmatprep.subr.bf16.mxu0 0
        %481 = vmatpush1.bf16.msra.mxu0 0
        %482 = vmatprep.subr.bf16.mxu0 0
        %483 = vmatpush1.bf16.msra.mxu0 0
        %484 = vmatprep.subr.bf16.mxu0 0
        %485 = vmatpush1.bf16.msra.mxu0 0
        %486 = vmatprep.subr.bf16.mxu0 0
        %487 = vmatpush1.bf16.msra.mxu0 0
        %488 = vmatprep.subr.bf16.mxu0 0
        %489 = vmatpush1.bf16.msra.mxu0 0
        %490 = vmatprep.subr.bf16.mxu0 0
        %491 = vmatpush1.bf16.msra.mxu0 0
        %492 = vmatprep.subr.bf16.mxu0 0
        %493 = vmatpush1.bf16.msra.mxu0 0
        %494 = vmatprep.subr.bf16.mxu0 0
        %495 = vmatpush1.bf16.msra.mxu0 0
        %496 = vmatprep.subr.bf16.mxu0 0
        %497 = vmatpush1.bf16.msra.mxu0 0
        %498 = vmatprep.mubr.bf16.mxu0 0
        %499 = vmatmul.mubr.bf16.gmra.mrb[0].mxu0 %v460
        %v500 = vpop.f32.mrb[0].mxu0
        %v501 = vadd.f32 0.0, %v500
        %v502 = vpop.f32.mrb[0].mxu0
        %v503 = vpop.f32.mrb[0].mxu0
        %v504 = vpop.f32.mrb[0].mxu0
        %505 = vdwg.mxu0
        %506 = vrot.lane.b32.xlu0 %v394, 112
        %v507 = vpop.permute.xlu0 %506
        %508 = vrot.lane.b32.xlu0 %v394, 48
        %v509 = vpop.permute.xlu0 %508
        %v511 = vsel %vm399, %v507, 0
        %v514 = vsel %vm399, %v509, 0
        %516 = vmatprep.subr.bf16.mxu0 0
        %517 = vmatpush1.bf16.xpose.msra.mxu0 %v514
        %518 = vmatprep.subr.bf16.mxu0 0
        %519 = vmatpush1.bf16.xpose.msra.mxu0 0
        %520 = vmatprep.subr.bf16.mxu0 0
        %521 = vmatpush1.bf16.xpose.msra.mxu0 0
        %522 = vmatprep.subr.bf16.mxu0 0
        %523 = vmatpush1.bf16.xpose.msra.mxu0 0
        %524 = vmatprep.subr.bf16.mxu0 0
        %525 = vmatpush1.bf16.xpose.msra.mxu0 0
        %526 = vmatprep.subr.bf16.mxu0 0
        %527 = vmatpush1.bf16.xpose.msra.mxu0 0
        %528 = vmatprep.subr.bf16.mxu0 0
        %529 = vmatpush1.bf16.xpose.msra.mxu0 0
        %530 = vmatprep.subr.bf16.mxu0 0
        %531 = vmatpush1.bf16.xpose.msra.mxu0 0
        %532 = vmatprep.subr.bf16.mxu0 0
        %533 = vmatpush1.bf16.xpose.msra.mxu0 0
        %534 = vmatprep.subr.bf16.mxu0 0
        %535 = vmatpush1.bf16.xpose.msra.mxu0 0
        %536 = vmatprep.subr.bf16.mxu0 0
        %537 = vmatpush1.bf16.xpose.msra.mxu0 0
        %538 = vmatprep.subr.bf16.mxu0 0
        %539 = vmatpush1.bf16.xpose.msra.mxu0 0
        %540 = vmatprep.subr.bf16.mxu0 0
        %541 = vmatpush1.bf16.xpose.msra.mxu0 0
        %542 = vmatprep.subr.bf16.mxu0 0
        %543 = vmatpush1.bf16.xpose.msra.mxu0 0
        %544 = vmatprep.subr.bf16.mxu0 0
        %545 = vmatpush1.bf16.xpose.msra.mxu0 0
        %546 = vmatprep.subr.bf16.mxu0 0
        %547 = vmatpush1.bf16.xpose.msra.mxu0 0
        %548 = vmatprep.mubr.bf16.mxu0 0
        %549 = vmatmul.mubr.bf16.gmra.mrb[0].mxu0 %v511
        %v550 = vpop.f32.mrb[0].mxu0
        %v551 = vadd.f32 0.0, %v550
        %v552 = vpop.f32.mrb[0].mxu0
        %v553 = vpop.f32.mrb[0].mxu0
        %v554 = vpop.f32.mrb[0].mxu0
        %555 = vdwg.mxu0
        %v556 = vsel %vm446, %v551, -inf
        %557 = vmax.xlane.f32.xlu0 %v556
        %v558 = vpop.xlane.xlu0 %557
        %v559 = vsub.f32 %v551, %v558
        %v560 = vmul.f32 %v559, 1.442695
        %v561 = vpow.pop %v560
        %v562 = vsel %vm446, %v561, 0.0
        %563 = vadd.xlane.f32.xlu0 %v562
        %v564 = vpop.xlane.xlu0 %563
        %v565 = vrcp.pop %v564
        %v566 = vmul.f32 %v561, %v565
        %v567 = vpack.c.bf16 %v566, %v566
        %569 = vrot.lane.b32.xlu0 %v395, 112
        %v570 = vpop.permute.xlu0 %569
        %v572 = vsel %vm446, %v567, 0
        %v575 = vsel %vm462, %v570, 0
        %577 = vmatprep.subr.bf16.mxu0 0
        %578 = vmatpush1.bf16.msra.mxu0 %v575
        %579 = vmatprep.subr.bf16.mxu0 0
        %580 = vmatpush1.bf16.msra.mxu0 0
        %581 = vmatprep.subr.bf16.mxu0 0
        %582 = vmatpush1.bf16.msra.mxu0 0
        %583 = vmatprep.subr.bf16.mxu0 0
        %584 = vmatpush1.bf16.msra.mxu0 0
        %585 = vmatprep.subr.bf16.mxu0 0
        %586 = vmatpush1.bf16.msra.mxu0 0
        %587 = vmatprep.subr.bf16.mxu0 0
        %588 = vmatpush1.bf16.msra.mxu0 0
        %589 = vmatprep.subr.bf16.mxu0 0
        %590 = vmatpush1.bf16.msra.mxu0 0
        %591 = vmatprep.subr.bf16.mxu0 0
        %592 = vmatpush1.bf16.msra.mxu0 0
        %593 = vmatprep.subr.bf16.mxu0 0
        %594 = vmatpush1.bf16.msra.mxu0 0
        %595 = vmatprep.subr.bf16.mxu0 0
        %596 = vmatpush1.bf16.msra.mxu0 0
        %597 = vmatprep.subr.bf16.mxu0 0
        %598 = vmatpush1.bf16.msra.mxu0 0
        %599 = vmatprep.subr.bf16.mxu0 0
        %600 = vmatpush1.bf16.msra.mxu0 0
        %601 = vmatprep.subr.bf16.mxu0 0
        %602 = vmatpush1.bf16.msra.mxu0 0
        %603 = vmatprep.subr.bf16.mxu0 0
        %604 = vmatpush1.bf16.msra.mxu0 0
        %605 = vmatprep.subr.bf16.mxu0 0
        %606 = vmatpush1.bf16.msra.mxu0 0
        %607 = vmatprep.subr.bf16.mxu0 0
        %608 = vmatpush1.bf16.msra.mxu0 0
        %609 = vmatprep.mubr.bf16.mxu0 0
        %610 = vmatmul.mubr.bf16.gmra.mrb[0].mxu0 %v572
        %v611 = vpop.f32.mrb[0].mxu0
        %v612 = vadd.f32 0.0, %v611
        %v613 = vpop.f32.mrb[0].mxu0
        %v614 = vpop.f32.mrb[0].mxu0
        %v615 = vpop.f32.mrb[0].mxu0
        %616 = vdwg.mxu0
        %617 = vrot.lane.b32.xlu0 %v394, 96
        %v618 = vpop.permute.xlu0 %617
        %619 = vrot.lane.b32.xlu0 %v394, 32
        %v620 = vpop.permute.xlu0 %619
        %v622 = vsel %vm399, %v618, 0
        %v625 = vsel %vm399, %v620, 0
        %627 = vmatprep.subr.bf16.mxu0 0
        %628 = vmatpush1.bf16.xpose.msra.mxu0 %v625
        %629 = vmatprep.subr.bf16.mxu0 0
        %630 = vmatpush1.bf16.xpose.msra.mxu0 0
        %631 = vmatprep.subr.bf16.mxu0 0
        %632 = vmatpush1.bf16.xpose.msra.mxu0 0
        %633 = vmatprep.subr.bf16.mxu0 0
        %634 = vmatpush1.bf16.xpose.msra.mxu0 0
        %635 = vmatprep.subr.bf16.mxu0 0
        %636 = vmatpush1.bf16.xpose.msra.mxu0 0
        %637 = vmatprep.subr.bf16.mxu0 0
        %638 = vmatpush1.bf16.xpose.msra.mxu0 0
        %639 = vmatprep.subr.bf16.mxu0 0
        %640 = vmatpush1.bf16.xpose.msra.mxu0 0
        %641 = vmatprep.subr.bf16.mxu0 0
        %642 = vmatpush1.bf16.xpose.msra.mxu0 0
        %643 = vmatprep.subr.bf16.mxu0 0
        %644 = vmatpush1.bf16.xpose.msra.mxu0 0
        %645 = vmatprep.subr.bf16.mxu0 0
        %646 = vmatpush1.bf16.xpose.msra.mxu0 0
        %647 = vmatprep.subr.bf16.mxu0 0
        %648 = vmatpush1.bf16.xpose.msra.mxu0 0
        %649 = vmatprep.subr.bf16.mxu0 0
        %650 = vmatpush1.bf16.xpose.msra.mxu0 0
        %651 = vmatprep.subr.bf16.mxu0 0
        %652 = vmatpush1.bf16.xpose.msra.mxu0 0
        %653 = vmatprep.subr.bf16.mxu0 0
        %654 = vmatpush1.bf16.xpose.msra.mxu0 0
        %655 = vmatprep.subr.bf16.mxu0 0
        %656 = vmatpush1.bf16.xpose.msra.mxu0 0
        %657 = vmatprep.subr.bf16.mxu0 0
        %658 = vmatpush1.bf16.xpose.msra.mxu0 0
        %659 = vmatprep.mubr.bf16.mxu0 0
        %660 = vmatmul.mubr.bf16.gmra.mrb[0].mxu0 %v622
        %v661 = vpop.f32.mrb[0].mxu0
        %v662 = vadd.f32 0.0, %v661
        %v663 = vpop.f32.mrb[0].mxu0
        %v664 = vpop.f32.mrb[0].mxu0
        %v665 = vpop.f32.mrb[0].mxu0
        %666 = vdwg.mxu0
        %v667 = vsel %vm446, %v662, -inf
        %668 = vmax.xlane.f32.xlu0 %v667
        %v669 = vpop.xlane.xlu0 %668
        %v670 = vsub.f32 %v662, %v669
        %v671 = vmul.f32 %v670, 1.442695
        %v672 = vpow.pop %v671
        %v673 = vsel %vm446, %v672, 0.0
        %674 = vadd.xlane.f32.xlu0 %v673
        %v675 = vpop.xlane.xlu0 %674
        %v676 = vrcp.pop %v675
        %v677 = vmul.f32 %v672, %v676
        %v678 = vpack.c.bf16 %v677, %v677
        %679 = vrot.lane.b32.xlu0 %v395, 96
        %v680 = vpop.permute.xlu0 %679
        %v682 = vsel %vm446, %v678, 0
        %v685 = vsel %vm462, %v680, 0
        %687 = vmatprep.subr.bf16.mxu0 0
        %688 = vmatpush1.bf16.msra.mxu0 %v685
        %689 = vmatprep.subr.bf16.mxu0 0
        %690 = vmatpush1.bf16.msra.mxu0 0
        %691 = vmatprep.subr.bf16.mxu0 0
        %692 = vmatpush1.bf16.msra.mxu0 0
        %693 = vmatprep.subr.bf16.mxu0 0
        %694 = vmatpush1.bf16.msra.mxu0 0
        %695 = vmatprep.subr.bf16.mxu0 0
        %696 = vmatpush1.bf16.msra.mxu0 0
        %697 = vmatprep.subr.bf16.mxu0 0
        %698 = vmatpush1.bf16.msra.mxu0 0
        %699 = vmatprep.subr.bf16.mxu0 0
        %700 = vmatpush1.bf16.msra.mxu0 0
        %701 = vmatprep.subr.bf16.mxu0 0
        %702 = vmatpush1.bf16.msra.mxu0 0
        %703 = vmatprep.subr.bf16.mxu0 0
        %704 = vmatpush1.bf16.msra.mxu0 0
        %705 = vmatprep.subr.bf16.mxu0 0
        %706 = vmatpush1.bf16.msra.mxu0 0
        %707 = vmatprep.subr.bf16.mxu0 0
        %708 = vmatpush1.bf16.msra.mxu0 0
        %709 = vmatprep.subr.bf16.mxu0 0
        %710 = vmatpush1.bf16.msra.mxu0 0
        %711 = vmatprep.subr.bf16.mxu0 0
        %712 = vmatpush1.bf16.msra.mxu0 0
        %713 = vmatprep.subr.bf16.mxu0 0
        %714 = vmatpush1.bf16.msra.mxu0 0
        %715 = vmatprep.subr.bf16.mxu0 0
        %716 = vmatpush1.bf16.msra.mxu0 0
        %717 = vmatprep.subr.bf16.mxu0 0
        %718 = vmatpush1.bf16.msra.mxu0 0
        %719 = vmatprep.mubr.bf16.mxu0 0
        %720 = vmatmul.mubr.bf16.gmra.mrb[0].mxu0 %v682
        %v721 = vpop.f32.mrb[0].mxu0
        %v722 = vadd.f32 0.0, %v721
        %v723 = vpop.f32.mrb[0].mxu0
        %v724 = vpop.f32.mrb[0].mxu0
        %v725 = vpop.f32.mrb[0].mxu0
        %726 = vdwg.mxu0
        %727 = vrot.lane.b32.xlu0 %v394, 80
        %v728 = vpop.permute.xlu0 %727
        %729 = vrot.lane.b32.xlu0 %v394, 16
        %v730 = vpop.permute.xlu0 %729
        %v732 = vsel %vm399, %v728, 0
        %v735 = vsel %vm399, %v730, 0
        %737 = vmatprep.subr.bf16.mxu0 0
        %738 = vmatpush1.bf16.xpose.msra.mxu0 %v735
        %739 = vmatprep.subr.bf16.mxu0 0
        %740 = vmatpush1.bf16.xpose.msra.mxu0 0
        %741 = vmatprep.subr.bf16.mxu0 0
        %742 = vmatpush1.bf16.xpose.msra.mxu0 0
        %743 = vmatprep.subr.bf16.mxu0 0
        %744 = vmatpush1.bf16.xpose.msra.mxu0 0
        %745 = vmatprep.subr.bf16.mxu0 0
        %746 = vmatpush1.bf16.xpose.msra.mxu0 0
        %747 = vmatprep.subr.bf16.mxu0 0
        %748 = vmatpush1.bf16.xpose.msra.mxu0 0
        %749 = vmatprep.subr.bf16.mxu0 0
        %750 = vmatpush1.bf16.xpose.msra.mxu0 0
        %751 = vmatprep.subr.bf16.mxu0 0
        %752 = vmatpush1.bf16.xpose.msra.mxu0 0
        %753 = vmatprep.subr.bf16.mxu0 0
        %754 = vmatpush1.bf16.xpose.msra.mxu0 0
        %755 = vmatprep.subr.bf16.mxu0 0
        %756 = vmatpush1.bf16.xpose.msra.mxu0 0
        %757 = vmatprep.subr.bf16.mxu0 0
        %758 = vmatpush1.bf16.xpose.msra.mxu0 0
        %759 = vmatprep.subr.bf16.mxu0 0
        %760 = vmatpush1.bf16.xpose.msra.mxu0 0
        %761 = vmatprep.subr.bf16.mxu0 0
        %762 = vmatpush1.bf16.xpose.msra.mxu0 0
        %763 = vmatprep.subr.bf16.mxu0 0
        %764 = vmatpush1.bf16.xpose.msra.mxu0 0
        %765 = vmatprep.subr.bf16.mxu0 0
        %766 = vmatpush1.bf16.xpose.msra.mxu0 0
        %767 = vmatprep.subr.bf16.mxu0 0
        %768 = vmatpush1.bf16.xpose.msra.mxu0 0
        %769 = vmatprep.mubr.bf16.mxu0 0
        %770 = vmatmul.mubr.bf16.gmra.mrb[0].mxu0 %v732
        %v771 = vpop.f32.mrb[0].mxu0
        %v772 = vadd.f32 0.0, %v771
        %v773 = vpop.f32.mrb[0].mxu0
        %v774 = vpop.f32.mrb[0].mxu0
        %v775 = vpop.f32.mrb[0].mxu0
        %776 = vdwg.mxu0
        %v777 = vsel %vm446, %v772, -inf
        %778 = vmax.xlane.f32.xlu0 %v777
        %v779 = vpop.xlane.xlu0 %778
        %v780 = vsub.f32 %v772, %v779
        %v781 = vmul.f32 %v780, 1.442695
        %v782 = vpow.pop %v781
        %v783 = vsel %vm446, %v782, 0.0
        %784 = vadd.xlane.f32.xlu0 %v783
        %v785 = vpop.xlane.xlu0 %784
        %v786 = vrcp.pop %v785
        %v787 = vmul.f32 %v782, %v786
        %v788 = vpack.c.bf16 %v787, %v787
        %789 = vrot.lane.b32.xlu0 %v395, 80
        %v790 = vpop.permute.xlu0 %789
        %v792 = vsel %vm446, %v788, 0
        %v795 = vsel %vm462, %v790, 0
        %797 = vmatprep.subr.bf16.mxu0 0
        %798 = vmatpush1.bf16.msra.mxu0 %v795
        %799 = vmatprep.subr.bf16.mxu0 0
        %800 = vmatpush1.bf16.msra.mxu0 0
        %801 = vmatprep.subr.bf16.mxu0 0
        %802 = vmatpush1.bf16.msra.mxu0 0
        %803 = vmatprep.subr.bf16.mxu0 0
        %804 = vmatpush1.bf16.msra.mxu0 0
        %805 = vmatprep.subr.bf16.mxu0 0
        %806 = vmatpush1.bf16.msra.mxu0 0
        %807 = vmatprep.subr.bf16.mxu0 0
        %808 = vmatpush1.bf16.msra.mxu0 0
        %809 = vmatprep.subr.bf16.mxu0 0
        %810 = vmatpush1.bf16.msra.mxu0 0
        %811 = vmatprep.subr.bf16.mxu0 0
        %812 = vmatpush1.bf16.msra.mxu0 0
        %813 = vmatprep.subr.bf16.mxu0 0
        %814 = vmatpush1.bf16.msra.mxu0 0
        %815 = vmatprep.subr.bf16.mxu0 0
        %816 = vmatpush1.bf16.msra.mxu0 0
        %817 = vmatprep.subr.bf16.mxu0 0
        %818 = vmatpush1.bf16.msra.mxu0 0
        %819 = vmatprep.subr.bf16.mxu0 0
        %820 = vmatpush1.bf16.msra.mxu0 0
        %821 = vmatprep.subr.bf16.mxu0 0
        %822 = vmatpush1.bf16.msra.mxu0 0
        %823 = vmatprep.subr.bf16.mxu0 0
        %824 = vmatpush1.bf16.msra.mxu0 0
        %825 = vmatprep.subr.bf16.mxu0 0
        %826 = vmatpush1.bf16.msra.mxu0 0
        %827 = vmatprep.subr.bf16.mxu0 0
        %828 = vmatpush1.bf16.msra.mxu0 0
        %829 = vmatprep.mubr.bf16.mxu0 0
        %830 = vmatmul.mubr.bf16.gmra.mrb[0].mxu0 %v792
        %v831 = vpop.f32.mrb[0].mxu0
        %v832 = vadd.f32 0.0, %v831
        %v833 = vpop.f32.mrb[0].mxu0
        %v834 = vpop.f32.mrb[0].mxu0
        %v835 = vpop.f32.mrb[0].mxu0
        %836 = vdwg.mxu0
        %838 = vrot.lane.b32.xlu0 %v612, 16
        %v839 = vpop.permute.xlu0 %838
        %842 = vrot.lane.b32.xlu0 %v722, 32
        %v843 = vpop.permute.xlu0 %842
        %846 = vrot.lane.b32.xlu0 %v832, 48
        %v847 = vpop.permute.xlu0 %846
        %v849 = vsel %vm399, %v501, %v839
        %v850 = vsel %vm298, %v849, %v843
        %vm851 = vcmask 392192
        %v852 = vsel %vm851, %v850, %v847
        %v853 = vpack.c.bf16 %v852, %v852
        %s854 = smul.addr %s295, 4
        %s855 = scalar_lea.vmem %s2, %s854
        %v856 = vld [vmem:[%s855] sm:$0xf]
        %v857 = vld [vmem:[%s855 + $0x4] sm:$0xf]
        %v858 = vld [vmem:[%s855 + $0x8] sm:$0xf]
        %v859 = vld [vmem:[%s855 + $0xc] sm:$0xf]
        %v860 = vld [vmem:[%s855 + $0x10] sm:$0xf]
        %v861 = vld [vmem:[%s855 + $0x14] sm:$0xf]
        %v862 = vld [vmem:[%s855 + $0x18] sm:$0xf]
        %v863 = vld [vmem:[%s855 + $0x1c] sm:$0xf]
        %v864 = vlaneseq
        %v865 = vshrl.u32 %v864, 7
        %v866 = vsub.s32 2, %v865
        %v867 = vrot.slane %v297, %v866
        %v876 = vunpack.c.l.b16 %v856
        %v877 = vunpack.c.l.b16 %v857
        %v878 = vunpack.c.l.b16 %v858
        %v879 = vunpack.c.l.b16 %v859
        %v880 = vunpack.c.l.b16 %v860
        %v881 = vunpack.c.l.b16 %v861
        %v882 = vunpack.c.l.b16 %v862
        %v883 = vunpack.c.l.b16 %v863
        %v884 = vpack.c.b16 %v877, %v876
        %v885 = vpack.c.b16 %v879, %v878
        %v886 = vpack.c.b16 %v881, %v880
        %v887 = vpack.c.b16 %v883, %v882
        %vm892 = vcmask 523264
        %v894 = vsel %vm892, %v853, 0
        %896 = vmatprep.subr.bf16.mxu0 0
        %897 = vmatpush1.bf16.msra.mxu0 %v884
        %898 = vmatprep.subr.bf16.mxu0 0
        %899 = vmatpush1.bf16.msra.mxu0 %v885
        %900 = vmatprep.subr.bf16.mxu0 0
        %901 = vmatpush1.bf16.msra.mxu0 %v886
        %902 = vmatprep.subr.bf16.mxu0 0
        %903 = vmatpush1.bf16.msra.mxu0 %v887
        %904 = vmatprep.subr.bf16.mxu0 0
        %905 = vmatpush1.bf16.msra.mxu0 0
        %906 = vmatprep.subr.bf16.mxu0 0
        %907 = vmatpush1.bf16.msra.mxu0 0
        %908 = vmatprep.subr.bf16.mxu0 0
        %909 = vmatpush1.bf16.msra.mxu0 0
        %910 = vmatprep.subr.bf16.mxu0 0
        %911 = vmatpush1.bf16.msra.mxu0 0
        %912 = vmatprep.subr.bf16.mxu0 0
        %913 = vmatpush1.bf16.msra.mxu0 0
        %914 = vmatprep.subr.bf16.mxu0 0
        %915 = vmatpush1.bf16.msra.mxu0 0
        %916 = vmatprep.subr.bf16.mxu0 0
        %917 = vmatpush1.bf16.msra.mxu0 0
        %918 = vmatprep.subr.bf16.mxu0 0
        %919 = vmatpush1.bf16.msra.mxu0 0
        %920 = vmatprep.subr.bf16.mxu0 0
        %921 = vmatpush1.bf16.msra.mxu0 0
        %922 = vmatprep.subr.bf16.mxu0 0
        %923 = vmatpush1.bf16.msra.mxu0 0
        %924 = vmatprep.subr.bf16.mxu0 0
        %925 = vmatpush1.bf16.msra.mxu0 0
        %926 = vmatprep.subr.bf16.mxu0 0
        %927 = vmatpush1.bf16.msra.mxu0 0
        %928 = vmatprep.mubr.bf16.mxu0 0
        %929 = vmatmul.mubr.bf16.gmra.mrb[0].mxu0 %v894
        %v930 = vpop.f32.mrb[0].mxu0
        %v931 = vadd.f32 %v867, %v930
        %v932 = vpop.f32.mrb[0].mxu0
        %v933 = vpop.f32.mrb[0].mxu0
        %v934 = vpop.f32.mrb[0].mxu0
        %935 = vdwg.mxu0
        %v936 = vadd.f32 %v931, %v294
        %v937 = vsel %vm298, %v936, 0.0
        %938 = vadd.xlane.f32.xlu0 %v937
        %v939 = vpop.xlane.xlu0 %938
        %v940 = vmul.f32 %v939, %v302
        %v941 = vsub.f32 %v936, %v940
        %v942 = vmul.f32 %v941, %v941
        %v943 = vsel %vm298, %v942, 0.0
        %944 = vadd.xlane.f32.xlu0 %v943
        %v945 = vpop.xlane.xlu0 %944
        %v946 = vmul.f32 %v945, %v302
        %v947 = vadd.f32 %v946, 1e-05
        %v948 = vrsqrt.pop %v947
        %v949 = vmul.f32 %v941, %v948
        %v950 = vlaneseq
        %v951 = vshrl.u32 %v950, 7
        %v952 = vsub.s32 3, %v951
        %v953 = vrot.slane %v297, %v952
        %v954 = vmul.f32 %v949, %v953
        %v955 = vlaneseq
        %v956 = vshrl.u32 %v955, 7
        %v957 = vsub.s32 4, %v956
        %v958 = vrot.slane %v297, %v957
        %v959 = vadd.f32 %v954, %v958
        %v960 = vpack.c.bf16 %v959, %v959
        %s961 = smul.u32 %s26, 64
        %s962 = smul.addr %s961, 4
        %s963 = scalar_lea.vmem %s3, %s962
        %v964 = vld [vmem:[%s963] sm:$0xff]
        %v965 = vld [vmem:[%s963 + $0x8] sm:$0xff]
        %v966 = vld [vmem:[%s963 + $0x10] sm:$0xff]
        %v967 = vld [vmem:[%s963 + $0x18] sm:$0xff]
        %v968 = vld [vmem:[%s963 + $0x20] sm:$0xff]
        %v969 = vld [vmem:[%s963 + $0x28] sm:$0xff]
        %v970 = vld [vmem:[%s963 + $0x30] sm:$0xff]
        %v971 = vld [vmem:[%s963 + $0x38] sm:$0xff]
        %v972 = vld [vmem:[%s963 + $0x40] sm:$0xff]
        %v973 = vld [vmem:[%s963 + $0x48] sm:$0xff]
        %v974 = vld [vmem:[%s963 + $0x50] sm:$0xff]
        %v975 = vld [vmem:[%s963 + $0x58] sm:$0xff]
        %v976 = vld [vmem:[%s963 + $0x60] sm:$0xff]
        %v977 = vld [vmem:[%s963 + $0x68] sm:$0xff]
        %v978 = vld [vmem:[%s963 + $0x70] sm:$0xff]
        %v979 = vld [vmem:[%s963 + $0x78] sm:$0xff]
        %v980 = vld [vmem:[%s963 + $0x80] sm:$0xff]
        %v981 = vld [vmem:[%s963 + $0x88] sm:$0xff]
        %v982 = vld [vmem:[%s963 + $0x90] sm:$0xff]
        %v983 = vld [vmem:[%s963 + $0x98] sm:$0xff]
        %v984 = vld [vmem:[%s963 + $0xa0] sm:$0xff]
        %v985 = vld [vmem:[%s963 + $0xa8] sm:$0xff]
        %v986 = vld [vmem:[%s963 + $0xb0] sm:$0xff]
        %v987 = vld [vmem:[%s963 + $0xb8] sm:$0xff]
        %v988 = vld [vmem:[%s963 + $0xc0] sm:$0xff]
        %v989 = vld [vmem:[%s963 + $0xc8] sm:$0xff]
        %v990 = vld [vmem:[%s963 + $0xd0] sm:$0xff]
        %v991 = vld [vmem:[%s963 + $0xd8] sm:$0xff]
        %v992 = vld [vmem:[%s963 + $0xe0] sm:$0xff]
        %v993 = vld [vmem:[%s963 + $0xe8] sm:$0xff]
        %v994 = vld [vmem:[%s963 + $0xf0] sm:$0xff]
        %v995 = vld [vmem:[%s963 + $0xf8] sm:$0xff]
        %s996 = smul.u32 %s26, 16
        %s997 = scalar_lea.vmem %s6, %s996
        %v998 = vld [vmem:[%s997] sm:$0xff]
        %v999 = vld [vmem:[%s997 + $0x8] sm:$0xff]
        %v1002 = vlaneseq
        %v1003 = vshrl.u32 %v1002, 7
        %v1004 = vsub.s32 0, %v1003
        %v1005 = vrot.slane %v998, %v1004
        %v1006 = vlaneseq
        %v1007 = vshrl.u32 %v1006, 7
        %v1008 = vsub.s32 1, %v1007
        %v1009 = vrot.slane %v998, %v1008
        %v1010 = vlaneseq
        %v1011 = vshrl.u32 %v1010, 7
        %v1012 = vsub.s32 2, %v1011
        %v1013 = vrot.slane %v998, %v1012
        %v1014 = vlaneseq
        %v1015 = vshrl.u32 %v1014, 7
        %v1016 = vsub.s32 3, %v1015
        %v1017 = vrot.slane %v998, %v1016
        %v1018 = vlaneseq
        %v1019 = vshrl.u32 %v1018, 7
        %v1020 = vsub.s32 4, %v1019
        %v1021 = vrot.slane %v998, %v1020
        %v1022 = vlaneseq
        %v1023 = vshrl.u32 %v1022, 7
        %v1024 = vsub.s32 5, %v1023
        %v1025 = vrot.slane %v998, %v1024
        %v1026 = vlaneseq
        %v1027 = vshrl.u32 %v1026, 7
        %v1028 = vsub.s32 6, %v1027
        %v1029 = vrot.slane %v998, %v1028
        %v1030 = vlaneseq
        %v1031 = vshrl.u32 %v1030, 7
        %v1032 = vsub.s32 7, %v1031
        %v1033 = vrot.slane %v998, %v1032
        %v1034 = vlaneseq
        %v1035 = vshrl.u32 %v1034, 7
        %v1036 = vsub.s32 0, %v1035
        %v1037 = vrot.slane %v999, %v1036
        %v1038 = vlaneseq
        %v1039 = vshrl.u32 %v1038, 7
        %v1040 = vsub.s32 1, %v1039
        %v1041 = vrot.slane %v999, %v1040
        %v1042 = vlaneseq
        %v1043 = vshrl.u32 %v1042, 7
        %v1044 = vsub.s32 2, %v1043
        %v1045 = vrot.slane %v999, %v1044
        %v1046 = vlaneseq
        %v1047 = vshrl.u32 %v1046, 7
        %v1048 = vsub.s32 3, %v1047
        %v1049 = vrot.slane %v999, %v1048
        %v1050 = vlaneseq
        %v1051 = vshrl.u32 %v1050, 7
        %v1052 = vsub.s32 4, %v1051
        %v1053 = vrot.slane %v999, %v1052
        %v1054 = vlaneseq
        %v1055 = vshrl.u32 %v1054, 7
        %v1056 = vsub.s32 5, %v1055
        %v1057 = vrot.slane %v999, %v1056
        %v1058 = vlaneseq
        %v1059 = vshrl.u32 %v1058, 7
        %v1060 = vsub.s32 6, %v1059
        %v1061 = vrot.slane %v999, %v1060
        %v1062 = vlaneseq
        %v1063 = vshrl.u32 %v1062, 7
        %v1064 = vsub.s32 7, %v1063
        %v1065 = vrot.slane %v999, %v1064
        %v1114 = vunpack.c.l.b16 %v964
        %v1115 = vunpack.c.h.b16 %v964
        %v1116 = vunpack.c.l.b16 %v965
        %v1117 = vunpack.c.h.b16 %v965
        %v1118 = vunpack.c.l.b16 %v966
        %v1119 = vunpack.c.h.b16 %v966
        %v1120 = vunpack.c.l.b16 %v967
        %v1121 = vunpack.c.h.b16 %v967
        %v1122 = vunpack.c.l.b16 %v968
        %v1123 = vunpack.c.h.b16 %v968
        %v1124 = vunpack.c.l.b16 %v969
        %v1125 = vunpack.c.h.b16 %v969
        %v1126 = vunpack.c.l.b16 %v970
        %v1127 = vunpack.c.h.b16 %v970
        %v1128 = vunpack.c.l.b16 %v971
        %v1129 = vunpack.c.h.b16 %v971
        %v1130 = vunpack.c.l.b16 %v972
        %v1131 = vunpack.c.h.b16 %v972
        %v1132 = vunpack.c.l.b16 %v973
        %v1133 = vunpack.c.h.b16 %v973
        %v1134 = vunpack.c.l.b16 %v974
        %v1135 = vunpack.c.h.b16 %v974
        %v1136 = vunpack.c.l.b16 %v975
        %v1137 = vunpack.c.h.b16 %v975
        %v1138 = vunpack.c.l.b16 %v976
        %v1139 = vunpack.c.h.b16 %v976
        %v1140 = vunpack.c.l.b16 %v977
        %v1141 = vunpack.c.h.b16 %v977
        %v1142 = vunpack.c.l.b16 %v978
        %v1143 = vunpack.c.h.b16 %v978
        %v1144 = vunpack.c.l.b16 %v979
        %v1145 = vunpack.c.h.b16 %v979
        %v1146 = vunpack.c.l.b16 %v980
        %v1147 = vunpack.c.h.b16 %v980
        %v1148 = vunpack.c.l.b16 %v981
        %v1149 = vunpack.c.h.b16 %v981
        %v1150 = vunpack.c.l.b16 %v982
        %v1151 = vunpack.c.h.b16 %v982
        %v1152 = vunpack.c.l.b16 %v983
        %v1153 = vunpack.c.h.b16 %v983
        %v1154 = vunpack.c.l.b16 %v984
        %v1155 = vunpack.c.h.b16 %v984
        %v1156 = vunpack.c.l.b16 %v985
        %v1157 = vunpack.c.h.b16 %v985
        %v1158 = vunpack.c.l.b16 %v986
        %v1159 = vunpack.c.h.b16 %v986
        %v1160 = vunpack.c.l.b16 %v987
        %v1161 = vunpack.c.h.b16 %v987
        %v1162 = vunpack.c.l.b16 %v988
        %v1163 = vunpack.c.h.b16 %v988
        %v1164 = vunpack.c.l.b16 %v989
        %v1165 = vunpack.c.h.b16 %v989
        %v1166 = vunpack.c.l.b16 %v990
        %v1167 = vunpack.c.h.b16 %v990
        %v1168 = vunpack.c.l.b16 %v991
        %v1169 = vunpack.c.h.b16 %v991
        %v1170 = vunpack.c.l.b16 %v992
        %v1171 = vunpack.c.h.b16 %v992
        %v1172 = vunpack.c.l.b16 %v993
        %v1173 = vunpack.c.h.b16 %v993
        %v1174 = vunpack.c.l.b16 %v994
        %v1175 = vunpack.c.h.b16 %v994
        %v1176 = vunpack.c.l.b16 %v995
        %v1177 = vunpack.c.h.b16 %v995
        %v1178 = vpack.c.b16 %v1130, %v1114
        %v1179 = vpack.c.b16 %v1131, %v1115
        %v1180 = vpack.c.b16 %v1132, %v1116
        %v1181 = vpack.c.b16 %v1133, %v1117
        %v1182 = vpack.c.b16 %v1134, %v1118
        %v1183 = vpack.c.b16 %v1135, %v1119
        %v1184 = vpack.c.b16 %v1136, %v1120
        %v1185 = vpack.c.b16 %v1137, %v1121
        %v1186 = vpack.c.b16 %v1138, %v1122
        %v1187 = vpack.c.b16 %v1139, %v1123
        %v1188 = vpack.c.b16 %v1140, %v1124
        %v1189 = vpack.c.b16 %v1141, %v1125
        %v1190 = vpack.c.b16 %v1142, %v1126
        %v1191 = vpack.c.b16 %v1143, %v1127
        %v1192 = vpack.c.b16 %v1144, %v1128
        %v1193 = vpack.c.b16 %v1145, %v1129
        %v1194 = vpack.c.b16 %v1162, %v1146
        %v1195 = vpack.c.b16 %v1163, %v1147
        %v1196 = vpack.c.b16 %v1164, %v1148
        %v1197 = vpack.c.b16 %v1165, %v1149
        %v1198 = vpack.c.b16 %v1166, %v1150
        %v1199 = vpack.c.b16 %v1167, %v1151
        %v1200 = vpack.c.b16 %v1168, %v1152
        %v1201 = vpack.c.b16 %v1169, %v1153
        %v1202 = vpack.c.b16 %v1170, %v1154
        %v1203 = vpack.c.b16 %v1171, %v1155
        %v1204 = vpack.c.b16 %v1172, %v1156
        %v1205 = vpack.c.b16 %v1173, %v1157
        %v1206 = vpack.c.b16 %v1174, %v1158
        %v1207 = vpack.c.b16 %v1175, %v1159
        %v1208 = vpack.c.b16 %v1176, %v1160
        %v1209 = vpack.c.b16 %v1177, %v1161
        %v1243 = vsel %vm298, %v960, 0
        %1245 = vmatprep.subr.bf16.mxu0 %v1179
        %1246 = vmatpush1.bf16.msra.mxu0 %v1178
        %1247 = vmatprep.subr.bf16.mxu0 %v1195
        %1248 = vmatpush1.bf16.msra.mxu0 %v1194
        %1249 = vmatprep.subr.bf16.mxu0 0
        %1250 = vmatpush1.bf16.msra.mxu0 0
        %1251 = vmatprep.subr.bf16.mxu0 0
        %1252 = vmatpush1.bf16.msra.mxu0 0
        %1253 = vmatprep.subr.bf16.mxu0 0
        %1254 = vmatpush1.bf16.msra.mxu0 0
        %1255 = vmatprep.subr.bf16.mxu0 0
        %1256 = vmatpush1.bf16.msra.mxu0 0
        %1257 = vmatprep.subr.bf16.mxu0 0
        %1258 = vmatpush1.bf16.msra.mxu0 0
        %1259 = vmatprep.subr.bf16.mxu0 0
        %1260 = vmatpush1.bf16.msra.mxu0 0
        %1261 = vmatprep.subr.bf16.mxu0 0
        %1262 = vmatpush1.bf16.msra.mxu0 0
        %1263 = vmatprep.subr.bf16.mxu0 0
        %1264 = vmatpush1.bf16.msra.mxu0 0
        %1265 = vmatprep.subr.bf16.mxu0 0
        %1266 = vmatpush1.bf16.msra.mxu0 0
        %1267 = vmatprep.subr.bf16.mxu0 0
        %1268 = vmatpush1.bf16.msra.mxu0 0
        %1269 = vmatprep.subr.bf16.mxu0 0
        %1270 = vmatpush1.bf16.msra.mxu0 0
        %1271 = vmatprep.subr.bf16.mxu0 0
        %1272 = vmatpush1.bf16.msra.mxu0 0
        %1273 = vmatprep.subr.bf16.mxu0 0
        %1274 = vmatpush1.bf16.msra.mxu0 0
        %1275 = vmatprep.subr.bf16.mxu0 0
        %1276 = vmatpush1.bf16.msra.mxu0 0
        %1277 = vmatprep.mubr.bf16.mxu0 0
        %1278 = vmatmul.mubr.bf16.gmra.mrb[0].mxu0 %v1243
        %v1279 = vpop.f32.mrb[0].mxu0
        %v1280 = vadd.f32 %v1005, %v1279
        %v1281 = vpop.f32.mrb[0].mxu0
        %v1282 = vadd.f32 %v1009, %v1281
        %v1283 = vpop.f32.mrb[0].mxu0
        %v1284 = vpop.f32.mrb[0].mxu0
        %1285 = vdwg.mxu0
        %1286 = vmatprep.subr.bf16.mxu0 %v1181
        %1287 = vmatpush1.bf16.msra.mxu0 %v1180
        %1288 = vmatprep.subr.bf16.mxu0 %v1197
        %1289 = vmatpush1.bf16.msra.mxu0 %v1196
        %1290 = vmatprep.subr.bf16.mxu0 0
        %1291 = vmatpush1.bf16.msra.mxu0 0
        %1292 = vmatprep.subr.bf16.mxu0 0
        %1293 = vmatpush1.bf16.msra.mxu0 0
        %1294 = vmatprep.subr.bf16.mxu0 0
        %1295 = vmatpush1.bf16.msra.mxu0 0
        %1296 = vmatprep.subr.bf16.mxu0 0
        %1297 = vmatpush1.bf16.msra.mxu0 0
        %1298 = vmatprep.subr.bf16.mxu0 0
        %1299 = vmatpush1.bf16.msra.mxu0 0
        %1300 = vmatprep.subr.bf16.mxu0 0
        %1301 = vmatpush1.bf16.msra.mxu0 0
        %1302 = vmatprep.subr.bf16.mxu0 0
        %1303 = vmatpush1.bf16.msra.mxu0 0
        %1304 = vmatprep.subr.bf16.mxu0 0
        %1305 = vmatpush1.bf16.msra.mxu0 0
        %1306 = vmatprep.subr.bf16.mxu0 0
        %1307 = vmatpush1.bf16.msra.mxu0 0
        %1308 = vmatprep.subr.bf16.mxu0 0
        %1309 = vmatpush1.bf16.msra.mxu0 0
        %1310 = vmatprep.subr.bf16.mxu0 0
        %1311 = vmatpush1.bf16.msra.mxu0 0
        %1312 = vmatprep.subr.bf16.mxu0 0
        %1313 = vmatpush1.bf16.msra.mxu0 0
        %1314 = vmatprep.subr.bf16.mxu0 0
        %1315 = vmatpush1.bf16.msra.mxu0 0
        %1316 = vmatprep.subr.bf16.mxu0 0
        %1317 = vmatpush1.bf16.msra.mxu0 0
        %1318 = vmatprep.mubr.bf16.mxu0 0
        %1319 = vmatmul.mubr.bf16.gmra.mrb[0].mxu0 %v1243
        %v1320 = vpop.f32.mrb[0].mxu0
        %v1321 = vadd.f32 %v1013, %v1320
        %v1322 = vpop.f32.mrb[0].mxu0
        %v1323 = vadd.f32 %v1017, %v1322
        %v1324 = vpop.f32.mrb[0].mxu0
        %v1325 = vpop.f32.mrb[0].mxu0
        %1326 = vdwg.mxu0
        %1327 = vmatprep.subr.bf16.mxu0 %v1183
        %1328 = vmatpush1.bf16.msra.mxu0 %v1182
        %1329 = vmatprep.subr.bf16.mxu0 %v1199
        %1330 = vmatpush1.bf16.msra.mxu0 %v1198
        %1331 = vmatprep.subr.bf16.mxu0 0
        %1332 = vmatpush1.bf16.msra.mxu0 0
        %1333 = vmatprep.subr.bf16.mxu0 0
        %1334 = vmatpush1.bf16.msra.mxu0 0
        %1335 = vmatprep.subr.bf16.mxu0 0
        %1336 = vmatpush1.bf16.msra.mxu0 0
        %1337 = vmatprep.subr.bf16.mxu0 0
        %1338 = vmatpush1.bf16.msra.mxu0 0
        %1339 = vmatprep.subr.bf16.mxu0 0
        %1340 = vmatpush1.bf16.msra.mxu0 0
        %1341 = vmatprep.subr.bf16.mxu0 0
        %1342 = vmatpush1.bf16.msra.mxu0 0
        %1343 = vmatprep.subr.bf16.mxu0 0
        %1344 = vmatpush1.bf16.msra.mxu0 0
        %1345 = vmatprep.subr.bf16.mxu0 0
        %1346 = vmatpush1.bf16.msra.mxu0 0
        %1347 = vmatprep.subr.bf16.mxu0 0
        %1348 = vmatpush1.bf16.msra.mxu0 0
        %1349 = vmatprep.subr.bf16.mxu0 0
        %1350 = vmatpush1.bf16.msra.mxu0 0
        %1351 = vmatprep.subr.bf16.mxu0 0
        %1352 = vmatpush1.bf16.msra.mxu0 0
        %1353 = vmatprep.subr.bf16.mxu0 0
        %1354 = vmatpush1.bf16.msra.mxu0 0
        %1355 = vmatprep.subr.bf16.mxu0 0
        %1356 = vmatpush1.bf16.msra.mxu0 0
        %1357 = vmatprep.subr.bf16.mxu0 0
        %1358 = vmatpush1.bf16.msra.mxu0 0
        %1359 = vmatprep.mubr.bf16.mxu0 0
        %1360 = vmatmul.mubr.bf16.gmra.mrb[0].mxu0 %v1243
        %v1361 = vpop.f32.mrb[0].mxu0
        %v1362 = vadd.f32 %v1021, %v1361
        %v1363 = vpop.f32.mrb[0].mxu0
        %v1364 = vadd.f32 %v1025, %v1363
        %v1365 = vpop.f32.mrb[0].mxu0
        %v1366 = vpop.f32.mrb[0].mxu0
        %1367 = vdwg.mxu0
        %1368 = vmatprep.subr.bf16.mxu0 %v1185
        %1369 = vmatpush1.bf16.msra.mxu0 %v1184
        %1370 = vmatprep.subr.bf16.mxu0 %v1201
        %1371 = vmatpush1.bf16.msra.mxu0 %v1200
        %1372 = vmatprep.subr.bf16.mxu0 0
        %1373 = vmatpush1.bf16.msra.mxu0 0
        %1374 = vmatprep.subr.bf16.mxu0 0
        %1375 = vmatpush1.bf16.msra.mxu0 0
        %1376 = vmatprep.subr.bf16.mxu0 0
        %1377 = vmatpush1.bf16.msra.mxu0 0
        %1378 = vmatprep.subr.bf16.mxu0 0
        %1379 = vmatpush1.bf16.msra.mxu0 0
        %1380 = vmatprep.subr.bf16.mxu0 0
        %1381 = vmatpush1.bf16.msra.mxu0 0
        %1382 = vmatprep.subr.bf16.mxu0 0
        %1383 = vmatpush1.bf16.msra.mxu0 0
        %1384 = vmatprep.subr.bf16.mxu0 0
        %1385 = vmatpush1.bf16.msra.mxu0 0
        %1386 = vmatprep.subr.bf16.mxu0 0
        %1387 = vmatpush1.bf16.msra.mxu0 0
        %1388 = vmatprep.subr.bf16.mxu0 0
        %1389 = vmatpush1.bf16.msra.mxu0 0
        %1390 = vmatprep.subr.bf16.mxu0 0
        %1391 = vmatpush1.bf16.msra.mxu0 0
        %1392 = vmatprep.subr.bf16.mxu0 0
        %1393 = vmatpush1.bf16.msra.mxu0 0
        %1394 = vmatprep.subr.bf16.mxu0 0
        %1395 = vmatpush1.bf16.msra.mxu0 0
        %1396 = vmatprep.subr.bf16.mxu0 0
        %1397 = vmatpush1.bf16.msra.mxu0 0
        %1398 = vmatprep.subr.bf16.mxu0 0
        %1399 = vmatpush1.bf16.msra.mxu0 0
        %1400 = vmatprep.mubr.bf16.mxu0 0
        %1401 = vmatmul.mubr.bf16.gmra.mrb[0].mxu0 %v1243
        %v1402 = vpop.f32.mrb[0].mxu0
        %v1403 = vadd.f32 %v1029, %v1402
        %v1404 = vpop.f32.mrb[0].mxu0
        %v1405 = vadd.f32 %v1033, %v1404
        %v1406 = vpop.f32.mrb[0].mxu0
        %v1407 = vpop.f32.mrb[0].mxu0
        %1408 = vdwg.mxu0
        %1409 = vmatprep.subr.bf16.mxu0 %v1187
        %1410 = vmatpush1.bf16.msra.mxu0 %v1186
        %1411 = vmatprep.subr.bf16.mxu0 %v1203
        %1412 = vmatpush1.bf16.msra.mxu0 %v1202
        %1413 = vmatprep.subr.bf16.mxu0 0
        %1414 = vmatpush1.bf16.msra.mxu0 0
        %1415 = vmatprep.subr.bf16.mxu0 0
        %1416 = vmatpush1.bf16.msra.mxu0 0
        %1417 = vmatprep.subr.bf16.mxu0 0
        %1418 = vmatpush1.bf16.msra.mxu0 0
        %1419 = vmatprep.subr.bf16.mxu0 0
        %1420 = vmatpush1.bf16.msra.mxu0 0
        %1421 = vmatprep.subr.bf16.mxu0 0
        %1422 = vmatpush1.bf16.msra.mxu0 0
        %1423 = vmatprep.subr.bf16.mxu0 0
        %1424 = vmatpush1.bf16.msra.mxu0 0
        %1425 = vmatprep.subr.bf16.mxu0 0
        %1426 = vmatpush1.bf16.msra.mxu0 0
        %1427 = vmatprep.subr.bf16.mxu0 0
        %1428 = vmatpush1.bf16.msra.mxu0 0
        %1429 = vmatprep.subr.bf16.mxu0 0
        %1430 = vmatpush1.bf16.msra.mxu0 0
        %1431 = vmatprep.subr.bf16.mxu0 0
        %1432 = vmatpush1.bf16.msra.mxu0 0
        %1433 = vmatprep.subr.bf16.mxu0 0
        %1434 = vmatpush1.bf16.msra.mxu0 0
        %1435 = vmatprep.subr.bf16.mxu0 0
        %1436 = vmatpush1.bf16.msra.mxu0 0
        %1437 = vmatprep.subr.bf16.mxu0 0
        %1438 = vmatpush1.bf16.msra.mxu0 0
        %1439 = vmatprep.subr.bf16.mxu0 0
        %1440 = vmatpush1.bf16.msra.mxu0 0
        %1441 = vmatprep.mubr.bf16.mxu0 0
        %1442 = vmatmul.mubr.bf16.gmra.mrb[0].mxu0 %v1243
        %v1443 = vpop.f32.mrb[0].mxu0
        %v1444 = vadd.f32 %v1037, %v1443
        %v1445 = vpop.f32.mrb[0].mxu0
        %v1446 = vadd.f32 %v1041, %v1445
        %v1447 = vpop.f32.mrb[0].mxu0
        %v1448 = vpop.f32.mrb[0].mxu0
        %1449 = vdwg.mxu0
        %1450 = vmatprep.subr.bf16.mxu0 %v1189
        %1451 = vmatpush1.bf16.msra.mxu0 %v1188
        %1452 = vmatprep.subr.bf16.mxu0 %v1205
        %1453 = vmatpush1.bf16.msra.mxu0 %v1204
        %1454 = vmatprep.subr.bf16.mxu0 0
        %1455 = vmatpush1.bf16.msra.mxu0 0
        %1456 = vmatprep.subr.bf16.mxu0 0
        %1457 = vmatpush1.bf16.msra.mxu0 0
        %1458 = vmatprep.subr.bf16.mxu0 0
        %1459 = vmatpush1.bf16.msra.mxu0 0
        %1460 = vmatprep.subr.bf16.mxu0 0
        %1461 = vmatpush1.bf16.msra.mxu0 0
        %1462 = vmatprep.subr.bf16.mxu0 0
        %1463 = vmatpush1.bf16.msra.mxu0 0
        %1464 = vmatprep.subr.bf16.mxu0 0
        %1465 = vmatpush1.bf16.msra.mxu0 0
        %1466 = vmatprep.subr.bf16.mxu0 0
        %1467 = vmatpush1.bf16.msra.mxu0 0
        %1468 = vmatprep.subr.bf16.mxu0 0
        %1469 = vmatpush1.bf16.msra.mxu0 0
        %1470 = vmatprep.subr.bf16.mxu0 0
        %1471 = vmatpush1.bf16.msra.mxu0 0
        %1472 = vmatprep.subr.bf16.mxu0 0
        %1473 = vmatpush1.bf16.msra.mxu0 0
        %1474 = vmatprep.subr.bf16.mxu0 0
        %1475 = vmatpush1.bf16.msra.mxu0 0
        %1476 = vmatprep.subr.bf16.mxu0 0
        %1477 = vmatpush1.bf16.msra.mxu0 0
        %1478 = vmatprep.subr.bf16.mxu0 0
        %1479 = vmatpush1.bf16.msra.mxu0 0
        %1480 = vmatprep.subr.bf16.mxu0 0
        %1481 = vmatpush1.bf16.msra.mxu0 0
        %1482 = vmatprep.mubr.bf16.mxu0 0
        %1483 = vmatmul.mubr.bf16.gmra.mrb[0].mxu0 %v1243
        %v1484 = vpop.f32.mrb[0].mxu0
        %v1485 = vadd.f32 %v1045, %v1484
        %v1486 = vpop.f32.mrb[0].mxu0
        %v1487 = vadd.f32 %v1049, %v1486
        %v1488 = vpop.f32.mrb[0].mxu0
        %v1489 = vpop.f32.mrb[0].mxu0
        %1490 = vdwg.mxu0
        %1491 = vmatprep.subr.bf16.mxu0 %v1191
        %1492 = vmatpush1.bf16.msra.mxu0 %v1190
        %1493 = vmatprep.subr.bf16.mxu0 %v1207
        %1494 = vmatpush1.bf16.msra.mxu0 %v1206
        %1495 = vmatprep.subr.bf16.mxu0 0
        %1496 = vmatpush1.bf16.msra.mxu0 0
        %1497 = vmatprep.subr.bf16.mxu0 0
        %1498 = vmatpush1.bf16.msra.mxu0 0
        %1499 = vmatprep.subr.bf16.mxu0 0
        %1500 = vmatpush1.bf16.msra.mxu0 0
        %1501 = vmatprep.subr.bf16.mxu0 0
        %1502 = vmatpush1.bf16.msra.mxu0 0
        %1503 = vmatprep.subr.bf16.mxu0 0
        %1504 = vmatpush1.bf16.msra.mxu0 0
        %1505 = vmatprep.subr.bf16.mxu0 0
        %1506 = vmatpush1.bf16.msra.mxu0 0
        %1507 = vmatprep.subr.bf16.mxu0 0
        %1508 = vmatpush1.bf16.msra.mxu0 0
        %1509 = vmatprep.subr.bf16.mxu0 0
        %1510 = vmatpush1.bf16.msra.mxu0 0
        %1511 = vmatprep.subr.bf16.mxu0 0
        %1512 = vmatpush1.bf16.msra.mxu0 0
        %1513 = vmatprep.subr.bf16.mxu0 0
        %1514 = vmatpush1.bf16.msra.mxu0 0
        %1515 = vmatprep.subr.bf16.mxu0 0
        %1516 = vmatpush1.bf16.msra.mxu0 0
        %1517 = vmatprep.subr.bf16.mxu0 0
        %1518 = vmatpush1.bf16.msra.mxu0 0
        %1519 = vmatprep.subr.bf16.mxu0 0
        %1520 = vmatpush1.bf16.msra.mxu0 0
        %1521 = vmatprep.subr.bf16.mxu0 0
        %1522 = vmatpush1.bf16.msra.mxu0 0
        %1523 = vmatprep.mubr.bf16.mxu0 0
        %1524 = vmatmul.mubr.bf16.gmra.mrb[0].mxu0 %v1243
        %v1525 = vpop.f32.mrb[0].mxu0
        %v1526 = vadd.f32 %v1053, %v1525
        %v1527 = vpop.f32.mrb[0].mxu0
        %v1528 = vadd.f32 %v1057, %v1527
        %v1529 = vpop.f32.mrb[0].mxu0
        %v1530 = vpop.f32.mrb[0].mxu0
        %1531 = vdwg.mxu0
        %1532 = vmatprep.subr.bf16.mxu0 %v1193
        %1533 = vmatpush1.bf16.msra.mxu0 %v1192
        %1534 = vmatprep.subr.bf16.mxu0 %v1209
        %1535 = vmatpush1.bf16.msra.mxu0 %v1208
        %1536 = vmatprep.subr.bf16.mxu0 0
        %1537 = vmatpush1.bf16.msra.mxu0 0
        %1538 = vmatprep.subr.bf16.mxu0 0
        %1539 = vmatpush1.bf16.msra.mxu0 0
        %1540 = vmatprep.subr.bf16.mxu0 0
        %1541 = vmatpush1.bf16.msra.mxu0 0
        %1542 = vmatprep.subr.bf16.mxu0 0
        %1543 = vmatpush1.bf16.msra.mxu0 0
        %1544 = vmatprep.subr.bf16.mxu0 0
        %1545 = vmatpush1.bf16.msra.mxu0 0
        %1546 = vmatprep.subr.bf16.mxu0 0
        %1547 = vmatpush1.bf16.msra.mxu0 0
        %1548 = vmatprep.subr.bf16.mxu0 0
        %1549 = vmatpush1.bf16.msra.mxu0 0
        %1550 = vmatprep.subr.bf16.mxu0 0
        %1551 = vmatpush1.bf16.msra.mxu0 0
        %1552 = vmatprep.subr.bf16.mxu0 0
        %1553 = vmatpush1.bf16.msra.mxu0 0
        %1554 = vmatprep.subr.bf16.mxu0 0
        %1555 = vmatpush1.bf16.msra.mxu0 0
        %1556 = vmatprep.subr.bf16.mxu0 0
        %1557 = vmatpush1.bf16.msra.mxu0 0
        %1558 = vmatprep.subr.bf16.mxu0 0
        %1559 = vmatpush1.bf16.msra.mxu0 0
        %1560 = vmatprep.subr.bf16.mxu0 0
        %1561 = vmatpush1.bf16.msra.mxu0 0
        %1562 = vmatprep.subr.bf16.mxu0 0
        %1563 = vmatpush1.bf16.msra.mxu0 0
        %1564 = vmatprep.mubr.bf16.mxu0 0
        %1565 = vmatmul.mubr.bf16.gmra.mrb[0].mxu0 %v1243
        %v1566 = vpop.f32.mrb[0].mxu0
        %v1567 = vadd.f32 %v1061, %v1566
        %v1568 = vpop.f32.mrb[0].mxu0
        %v1569 = vadd.f32 %v1065, %v1568
        %v1570 = vpop.f32.mrb[0].mxu0
        %v1571 = vpop.f32.mrb[0].mxu0
        %1572 = vdwg.mxu0
        %v1573 = vmul.f32 %v1280, 0.5
        %v1574 = vmul.f32 %v1282, 0.5
        %v1575 = vmul.f32 %v1321, 0.5
        %v1576 = vmul.f32 %v1323, 0.5
        %v1577 = vmul.f32 %v1362, 0.5
        %v1578 = vmul.f32 %v1364, 0.5
        %v1579 = vmul.f32 %v1403, 0.5
        %v1580 = vmul.f32 %v1405, 0.5
        %v1581 = vmul.f32 %v1444, 0.5
        %v1582 = vmul.f32 %v1446, 0.5
        %v1583 = vmul.f32 %v1485, 0.5
        %v1584 = vmul.f32 %v1487, 0.5
        %v1585 = vmul.f32 %v1526, 0.5
        %v1586 = vmul.f32 %v1528, 0.5
        %v1587 = vmul.f32 %v1567, 0.5
        %v1588 = vmul.f32 %v1569, 0.5
        %v1589 = vmul.f32 %v1280, 0.70710677
        %v1590 = vmul.f32 %v1282, 0.70710677
        %v1591 = vmul.f32 %v1321, 0.70710677
        %v1592 = vmul.f32 %v1323, 0.70710677
        %v1593 = vmul.f32 %v1362, 0.70710677
        %v1594 = vmul.f32 %v1364, 0.70710677
        %v1595 = vmul.f32 %v1403, 0.70710677
        %v1596 = vmul.f32 %v1405, 0.70710677
        %v1597 = vmul.f32 %v1444, 0.70710677
        %v1598 = vmul.f32 %v1446, 0.70710677
        %v1599 = vmul.f32 %v1485, 0.70710677
        %v1600 = vmul.f32 %v1487, 0.70710677
        %v1601 = vmul.f32 %v1526, 0.70710677
        %v1602 = vmul.f32 %v1528, 0.70710677
        %v1603 = vmul.f32 %v1567, 0.70710677
        %v1604 = vmul.f32 %v1569, 0.70710677
        %vm1605 = vcmp.ge.f32.partialorder %v1589, 0.0
        %vm1606 = vcmp.ge.f32.partialorder %v1590, 0.0
        %vm1607 = vcmp.ge.f32.partialorder %v1591, 0.0
        %vm1608 = vcmp.ge.f32.partialorder %v1592, 0.0
        %vm1609 = vcmp.ge.f32.partialorder %v1593, 0.0
        %vm1610 = vcmp.ge.f32.partialorder %v1594, 0.0
        %vm1611 = vcmp.ge.f32.partialorder %v1595, 0.0
        %vm1612 = vcmp.ge.f32.partialorder %v1596, 0.0
        %vm1613 = vcmp.ge.f32.partialorder %v1597, 0.0
        %vm1614 = vcmp.ge.f32.partialorder %v1598, 0.0
        %vm1615 = vcmp.ge.f32.partialorder %v1599, 0.0
        %vm1616 = vcmp.ge.f32.partialorder %v1600, 0.0
        %vm1617 = vcmp.ge.f32.partialorder %v1601, 0.0
        %vm1618 = vcmp.ge.f32.partialorder %v1602, 0.0
        %vm1619 = vcmp.ge.f32.partialorder %v1603, 0.0
        %vm1620 = vcmp.ge.f32.partialorder %v1604, 0.0
        %v1621 = vsel %vm1605, 1.0, -1.0
        %v1622 = vsel %vm1606, 1.0, -1.0
        %v1623 = vsel %vm1607, 1.0, -1.0
        %v1624 = vsel %vm1608, 1.0, -1.0
        %v1625 = vsel %vm1609, 1.0, -1.0
        %v1626 = vsel %vm1610, 1.0, -1.0
        %v1627 = vsel %vm1611, 1.0, -1.0
        %v1628 = vsel %vm1612, 1.0, -1.0
        %v1629 = vsel %vm1613, 1.0, -1.0
        %v1630 = vsel %vm1614, 1.0, -1.0
        %v1631 = vsel %vm1615, 1.0, -1.0
        %v1632 = vsel %vm1616, 1.0, -1.0
        %v1633 = vsel %vm1617, 1.0, -1.0
        %v1634 = vsel %vm1618, 1.0, -1.0
        %v1635 = vsel %vm1619, 1.0, -1.0
        %v1636 = vsel %vm1620, 1.0, -1.0
        %v1637 = vand.u32 2147483647, %v1589
        %v1638 = vand.u32 2147483647, %v1590
        %v1639 = vand.u32 2147483647, %v1591
        %v1640 = vand.u32 2147483647, %v1592
        %v1641 = vand.u32 2147483647, %v1593
        %v1642 = vand.u32 2147483647, %v1594
        %v1643 = vand.u32 2147483647, %v1595
        %v1644 = vand.u32 2147483647, %v1596
        %v1645 = vand.u32 2147483647, %v1597
        %v1646 = vand.u32 2147483647, %v1598
        %v1647 = vand.u32 2147483647, %v1599
        %v1648 = vand.u32 2147483647, %v1600
        %v1649 = vand.u32 2147483647, %v1601
        %v1650 = vand.u32 2147483647, %v1602
        %v1651 = vand.u32 2147483647, %v1603
        %v1652 = vand.u32 2147483647, %v1604
        %v1653 = vmul.f32 %v1637, 0.3275911
        %v1654 = vmul.f32 %v1638, 0.3275911
        %v1655 = vmul.f32 %v1639, 0.3275911
        %v1656 = vmul.f32 %v1640, 0.3275911
        %v1657 = vmul.f32 %v1641, 0.3275911
        %v1658 = vmul.f32 %v1642, 0.3275911
        %v1659 = vmul.f32 %v1643, 0.3275911
        %v1660 = vmul.f32 %v1644, 0.3275911
        %v1661 = vmul.f32 %v1645, 0.3275911
        %v1662 = vmul.f32 %v1646, 0.3275911
        %v1663 = vmul.f32 %v1647, 0.3275911
        %v1664 = vmul.f32 %v1648, 0.3275911
        %v1665 = vmul.f32 %v1649, 0.3275911
        %v1666 = vmul.f32 %v1650, 0.3275911
        %v1667 = vmul.f32 %v1651, 0.3275911
        %v1668 = vmul.f32 %v1652, 0.3275911
        %v1669 = vadd.f32 %v1653, 1.0
        %v1670 = vadd.f32 %v1654, 1.0
        %v1671 = vadd.f32 %v1655, 1.0
        %v1672 = vadd.f32 %v1656, 1.0
        %v1673 = vadd.f32 %v1657, 1.0
        %v1674 = vadd.f32 %v1658, 1.0
        %v1675 = vadd.f32 %v1659, 1.0
        %v1676 = vadd.f32 %v1660, 1.0
        %v1677 = vadd.f32 %v1661, 1.0
        %v1678 = vadd.f32 %v1662, 1.0
        %v1679 = vadd.f32 %v1663, 1.0
        %v1680 = vadd.f32 %v1664, 1.0
        %v1681 = vadd.f32 %v1665, 1.0
        %v1682 = vadd.f32 %v1666, 1.0
        %v1683 = vadd.f32 %v1667, 1.0
        %v1684 = vadd.f32 %v1668, 1.0
        %v1685 = vrcp.pop %v1669
        %v1686 = vmul.f32 1.0, %v1685
        %v1687 = vrcp.pop %v1670
        %v1688 = vmul.f32 1.0, %v1687
        %v1689 = vrcp.pop %v1671
        %v1690 = vmul.f32 1.0, %v1689
        %v1691 = vrcp.pop %v1672
        %v1692 = vmul.f32 1.0, %v1691
        %v1693 = vrcp.pop %v1673
        %v1694 = vmul.f32 1.0, %v1693
        %v1695 = vrcp.pop %v1674
        %v1696 = vmul.f32 1.0, %v1695
        %v1697 = vrcp.pop %v1675
        %v1698 = vmul.f32 1.0, %v1697
        %v1699 = vrcp.pop %v1676
        %v1700 = vmul.f32 1.0, %v1699
        %v1701 = vrcp.pop %v1677
        %v1702 = vmul.f32 1.0, %v1701
        %v1703 = vrcp.pop %v1678
        %v1704 = vmul.f32 1.0, %v1703
        %v1705 = vrcp.pop %v1679
        %v1706 = vmul.f32 1.0, %v1705
        %v1707 = vrcp.pop %v1680
        %v1708 = vmul.f32 1.0, %v1707
        %v1709 = vrcp.pop %v1681
        %v1710 = vmul.f32 1.0, %v1709
        %v1711 = vrcp.pop %v1682
        %v1712 = vmul.f32 1.0, %v1711
        %v1713 = vrcp.pop %v1683
        %v1714 = vmul.f32 1.0, %v1713
        %v1715 = vrcp.pop %v1684
        %v1716 = vmul.f32 1.0, %v1715
        %v1717 = vmul.f32 %v1686, 1.0614054
        %v1718 = vmul.f32 %v1688, 1.0614054
        %v1719 = vmul.f32 %v1690, 1.0614054
        %v1720 = vmul.f32 %v1692, 1.0614054
        %v1721 = vmul.f32 %v1694, 1.0614054
        %v1722 = vmul.f32 %v1696, 1.0614054
        %v1723 = vmul.f32 %v1698, 1.0614054
        %v1724 = vmul.f32 %v1700, 1.0614054
        %v1725 = vmul.f32 %v1702, 1.0614054
        %v1726 = vmul.f32 %v1704, 1.0614054
        %v1727 = vmul.f32 %v1706, 1.0614054
        %v1728 = vmul.f32 %v1708, 1.0614054
        %v1729 = vmul.f32 %v1710, 1.0614054
        %v1730 = vmul.f32 %v1712, 1.0614054
        %v1731 = vmul.f32 %v1714, 1.0614054
        %v1732 = vmul.f32 %v1716, 1.0614054
        %v1733 = vadd.f32 %v1717, -1.4531521
        %v1734 = vadd.f32 %v1718, -1.4531521
        %v1735 = vadd.f32 %v1719, -1.4531521
        %v1736 = vadd.f32 %v1720, -1.4531521
        %v1737 = vadd.f32 %v1721, -1.4531521
        %v1738 = vadd.f32 %v1722, -1.4531521
        %v1739 = vadd.f32 %v1723, -1.4531521
        %v1740 = vadd.f32 %v1724, -1.4531521
        %v1741 = vadd.f32 %v1725, -1.4531521
        %v1742 = vadd.f32 %v1726, -1.4531521
        %v1743 = vadd.f32 %v1727, -1.4531521
        %v1744 = vadd.f32 %v1728, -1.4531521
        %v1745 = vadd.f32 %v1729, -1.4531521
        %v1746 = vadd.f32 %v1730, -1.4531521
        %v1747 = vadd.f32 %v1731, -1.4531521
        %v1748 = vadd.f32 %v1732, -1.4531521
        %v1749 = vmul.f32 %v1733, %v1686
        %v1750 = vmul.f32 %v1734, %v1688
        %v1751 = vmul.f32 %v1735, %v1690
        %v1752 = vmul.f32 %v1736, %v1692
        %v1753 = vmul.f32 %v1737, %v1694
        %v1754 = vmul.f32 %v1738, %v1696
        %v1755 = vmul.f32 %v1739, %v1698
        %v1756 = vmul.f32 %v1740, %v1700
        %v1757 = vmul.f32 %v1741, %v1702
        %v1758 = vmul.f32 %v1742, %v1704
        %v1759 = vmul.f32 %v1743, %v1706
        %v1760 = vmul.f32 %v1744, %v1708
        %v1761 = vmul.f32 %v1745, %v1710
        %v1762 = vmul.f32 %v1746, %v1712
        %v1763 = vmul.f32 %v1747, %v1714
        %v1764 = vmul.f32 %v1748, %v1716
        %v1765 = vadd.f32 %v1749, 1.4214138
        %v1766 = vadd.f32 %v1750, 1.4214138
        %v1767 = vadd.f32 %v1751, 1.4214138
        %v1768 = vadd.f32 %v1752, 1.4214138
        %v1769 = vadd.f32 %v1753, 1.4214138
        %v1770 = vadd.f32 %v1754, 1.4214138
        %v1771 = vadd.f32 %v1755, 1.4214138
        %v1772 = vadd.f32 %v1756, 1.4214138
        %v1773 = vadd.f32 %v1757, 1.4214138
        %v1774 = vadd.f32 %v1758, 1.4214138
        %v1775 = vadd.f32 %v1759, 1.4214138
        %v1776 = vadd.f32 %v1760, 1.4214138
        %v1777 = vadd.f32 %v1761, 1.4214138
        %v1778 = vadd.f32 %v1762, 1.4214138
        %v1779 = vadd.f32 %v1763, 1.4214138
        %v1780 = vadd.f32 %v1764, 1.4214138
        %v1781 = vmul.f32 %v1765, %v1686
        %v1782 = vmul.f32 %v1766, %v1688
        %v1783 = vmul.f32 %v1767, %v1690
        %v1784 = vmul.f32 %v1768, %v1692
        %v1785 = vmul.f32 %v1769, %v1694
        %v1786 = vmul.f32 %v1770, %v1696
        %v1787 = vmul.f32 %v1771, %v1698
        %v1788 = vmul.f32 %v1772, %v1700
        %v1789 = vmul.f32 %v1773, %v1702
        %v1790 = vmul.f32 %v1774, %v1704
        %v1791 = vmul.f32 %v1775, %v1706
        %v1792 = vmul.f32 %v1776, %v1708
        %v1793 = vmul.f32 %v1777, %v1710
        %v1794 = vmul.f32 %v1778, %v1712
        %v1795 = vmul.f32 %v1779, %v1714
        %v1796 = vmul.f32 %v1780, %v1716
        %v1797 = vadd.f32 %v1781, -0.28449672
        %v1798 = vadd.f32 %v1782, -0.28449672
        %v1799 = vadd.f32 %v1783, -0.28449672
        %v1800 = vadd.f32 %v1784, -0.28449672
        %v1801 = vadd.f32 %v1785, -0.28449672
        %v1802 = vadd.f32 %v1786, -0.28449672
        %v1803 = vadd.f32 %v1787, -0.28449672
        %v1804 = vadd.f32 %v1788, -0.28449672
        %v1805 = vadd.f32 %v1789, -0.28449672
        %v1806 = vadd.f32 %v1790, -0.28449672
        %v1807 = vadd.f32 %v1791, -0.28449672
        %v1808 = vadd.f32 %v1792, -0.28449672
        %v1809 = vadd.f32 %v1793, -0.28449672
        %v1810 = vadd.f32 %v1794, -0.28449672
        %v1811 = vadd.f32 %v1795, -0.28449672
        %v1812 = vadd.f32 %v1796, -0.28449672
        %v1813 = vmul.f32 %v1797, %v1686
        %v1814 = vmul.f32 %v1798, %v1688
        %v1815 = vmul.f32 %v1799, %v1690
        %v1816 = vmul.f32 %v1800, %v1692
        %v1817 = vmul.f32 %v1801, %v1694
        %v1818 = vmul.f32 %v1802, %v1696
        %v1819 = vmul.f32 %v1803, %v1698
        %v1820 = vmul.f32 %v1804, %v1700
        %v1821 = vmul.f32 %v1805, %v1702
        %v1822 = vmul.f32 %v1806, %v1704
        %v1823 = vmul.f32 %v1807, %v1706
        %v1824 = vmul.f32 %v1808, %v1708
        %v1825 = vmul.f32 %v1809, %v1710
        %v1826 = vmul.f32 %v1810, %v1712
        %v1827 = vmul.f32 %v1811, %v1714
        %v1828 = vmul.f32 %v1812, %v1716
        %v1829 = vadd.f32 %v1813, 0.2548296
        %v1830 = vadd.f32 %v1814, 0.2548296
        %v1831 = vadd.f32 %v1815, 0.2548296
        %v1832 = vadd.f32 %v1816, 0.2548296
        %v1833 = vadd.f32 %v1817, 0.2548296
        %v1834 = vadd.f32 %v1818, 0.2548296
        %v1835 = vadd.f32 %v1819, 0.2548296
        %v1836 = vadd.f32 %v1820, 0.2548296
        %v1837 = vadd.f32 %v1821, 0.2548296
        %v1838 = vadd.f32 %v1822, 0.2548296
        %v1839 = vadd.f32 %v1823, 0.2548296
        %v1840 = vadd.f32 %v1824, 0.2548296
        %v1841 = vadd.f32 %v1825, 0.2548296
        %v1842 = vadd.f32 %v1826, 0.2548296
        %v1843 = vadd.f32 %v1827, 0.2548296
        %v1844 = vadd.f32 %v1828, 0.2548296
        %v1845 = vmul.f32 %v1829, %v1686
        %v1846 = vmul.f32 %v1830, %v1688
        %v1847 = vmul.f32 %v1831, %v1690
        %v1848 = vmul.f32 %v1832, %v1692
        %v1849 = vmul.f32 %v1833, %v1694
        %v1850 = vmul.f32 %v1834, %v1696
        %v1851 = vmul.f32 %v1835, %v1698
        %v1852 = vmul.f32 %v1836, %v1700
        %v1853 = vmul.f32 %v1837, %v1702
        %v1854 = vmul.f32 %v1838, %v1704
        %v1855 = vmul.f32 %v1839, %v1706
        %v1856 = vmul.f32 %v1840, %v1708
        %v1857 = vmul.f32 %v1841, %v1710
        %v1858 = vmul.f32 %v1842, %v1712
        %v1859 = vmul.f32 %v1843, %v1714
        %v1860 = vmul.f32 %v1844, %v1716
        %v1861 = vsub.f32 0.0, %v1637
        %v1862 = vsub.f32 0.0, %v1638
        %v1863 = vsub.f32 0.0, %v1639
        %v1864 = vsub.f32 0.0, %v1640
        %v1865 = vsub.f32 0.0, %v1641
        %v1866 = vsub.f32 0.0, %v1642
        %v1867 = vsub.f32 0.0, %v1643
        %v1868 = vsub.f32 0.0, %v1644
        %v1869 = vsub.f32 0.0, %v1645
        %v1870 = vsub.f32 0.0, %v1646
        %v1871 = vsub.f32 0.0, %v1647
        %v1872 = vsub.f32 0.0, %v1648
        %v1873 = vsub.f32 0.0, %v1649
        %v1874 = vsub.f32 0.0, %v1650
        %v1875 = vsub.f32 0.0, %v1651
        %v1876 = vsub.f32 0.0, %v1652
        %v1877 = vmul.f32 %v1861, %v1637
        %v1878 = vmul.f32 %v1862, %v1638
        %v1879 = vmul.f32 %v1863, %v1639
        %v1880 = vmul.f32 %v1864, %v1640
        %v1881 = vmul.f32 %v1865, %v1641
        %v1882 = vmul.f32 %v1866, %v1642
        %v1883 = vmul.f32 %v1867, %v1643
        %v1884 = vmul.f32 %v1868, %v1644
        %v1885 = vmul.f32 %v1869, %v1645
        %v1886 = vmul.f32 %v1870, %v1646
        %v1887 = vmul.f32 %v1871, %v1647
        %v1888 = vmul.f32 %v1872, %v1648
        %v1889 = vmul.f32 %v1873, %v1649
        %v1890 = vmul.f32 %v1874, %v1650
        %v1891 = vmul.f32 %v1875, %v1651
        %v1892 = vmul.f32 %v1876, %v1652
        %v1893 = vmul.f32 %v1877, 1.442695
        %v1894 = vpow.pop %v1893
        %v1895 = vmul.f32 %v1878, 1.442695
        %v1896 = vpow.pop %v1895
        %v1897 = vmul.f32 %v1879, 1.442695
        %v1898 = vpow.pop %v1897
        %v1899 = vmul.f32 %v1880, 1.442695
        %v1900 = vpow.pop %v1899
        %v1901 = vmul.f32 %v1881, 1.442695
        %v1902 = vpow.pop %v1901
        %v1903 = vmul.f32 %v1882, 1.442695
        %v1904 = vpow.pop %v1903
        %v1905 = vmul.f32 %v1883, 1.442695
        %v1906 = vpow.pop %v1905
        %v1907 = vmul.f32 %v1884, 1.442695
        %v1908 = vpow.pop %v1907
        %v1909 = vmul.f32 %v1885, 1.442695
        %v1910 = vpow.pop %v1909
        %v1911 = vmul.f32 %v1886, 1.442695
        %v1912 = vpow.pop %v1911
        %v1913 = vmul.f32 %v1887, 1.442695
        %v1914 = vpow.pop %v1913
        %v1915 = vmul.f32 %v1888, 1.442695
        %v1916 = vpow.pop %v1915
        %v1917 = vmul.f32 %v1889, 1.442695
        %v1918 = vpow.pop %v1917
        %v1919 = vmul.f32 %v1890, 1.442695
        %v1920 = vpow.pop %v1919
        %v1921 = vmul.f32 %v1891, 1.442695
        %v1922 = vpow.pop %v1921
        %v1923 = vmul.f32 %v1892, 1.442695
        %v1924 = vpow.pop %v1923
        %v1925 = vmul.f32 %v1845, %v1894
        %v1926 = vmul.f32 %v1846, %v1896
        %v1927 = vmul.f32 %v1847, %v1898
        %v1928 = vmul.f32 %v1848, %v1900
        %v1929 = vmul.f32 %v1849, %v1902
        %v1930 = vmul.f32 %v1850, %v1904
        %v1931 = vmul.f32 %v1851, %v1906
        %v1932 = vmul.f32 %v1852, %v1908
        %v1933 = vmul.f32 %v1853, %v1910
        %v1934 = vmul.f32 %v1854, %v1912
        %v1935 = vmul.f32 %v1855, %v1914
        %v1936 = vmul.f32 %v1856, %v1916
        %v1937 = vmul.f32 %v1857, %v1918
        %v1938 = vmul.f32 %v1858, %v1920
        %v1939 = vmul.f32 %v1859, %v1922
        %v1940 = vmul.f32 %v1860, %v1924
        %v1941 = vsub.f32 1.0, %v1925
        %v1942 = vsub.f32 1.0, %v1926
        %v1943 = vsub.f32 1.0, %v1927
        %v1944 = vsub.f32 1.0, %v1928
        %v1945 = vsub.f32 1.0, %v1929
        %v1946 = vsub.f32 1.0, %v1930
        %v1947 = vsub.f32 1.0, %v1931
        %v1948 = vsub.f32 1.0, %v1932
        %v1949 = vsub.f32 1.0, %v1933
        %v1950 = vsub.f32 1.0, %v1934
        %v1951 = vsub.f32 1.0, %v1935
        %v1952 = vsub.f32 1.0, %v1936
        %v1953 = vsub.f32 1.0, %v1937
        %v1954 = vsub.f32 1.0, %v1938
        %v1955 = vsub.f32 1.0, %v1939
        %v1956 = vsub.f32 1.0, %v1940
        %v1957 = vmul.f32 %v1621, %v1941
        %v1958 = vmul.f32 %v1622, %v1942
        %v1959 = vmul.f32 %v1623, %v1943
        %v1960 = vmul.f32 %v1624, %v1944
        %v1961 = vmul.f32 %v1625, %v1945
        %v1962 = vmul.f32 %v1626, %v1946
        %v1963 = vmul.f32 %v1627, %v1947
        %v1964 = vmul.f32 %v1628, %v1948
        %v1965 = vmul.f32 %v1629, %v1949
        %v1966 = vmul.f32 %v1630, %v1950
        %v1967 = vmul.f32 %v1631, %v1951
        %v1968 = vmul.f32 %v1632, %v1952
        %v1969 = vmul.f32 %v1633, %v1953
        %v1970 = vmul.f32 %v1634, %v1954
        %v1971 = vmul.f32 %v1635, %v1955
        %v1972 = vmul.f32 %v1636, %v1956
        %v1973 = vadd.f32 %v1957, 1.0
        %v1974 = vadd.f32 %v1958, 1.0
        %v1975 = vadd.f32 %v1959, 1.0
        %v1976 = vadd.f32 %v1960, 1.0
        %v1977 = vadd.f32 %v1961, 1.0
        %v1978 = vadd.f32 %v1962, 1.0
        %v1979 = vadd.f32 %v1963, 1.0
        %v1980 = vadd.f32 %v1964, 1.0
        %v1981 = vadd.f32 %v1965, 1.0
        %v1982 = vadd.f32 %v1966, 1.0
        %v1983 = vadd.f32 %v1967, 1.0
        %v1984 = vadd.f32 %v1968, 1.0
        %v1985 = vadd.f32 %v1969, 1.0
        %v1986 = vadd.f32 %v1970, 1.0
        %v1987 = vadd.f32 %v1971, 1.0
        %v1988 = vadd.f32 %v1972, 1.0
        %v1989 = vmul.f32 %v1573, %v1973
        %v1990 = vmul.f32 %v1574, %v1974
        %v1991 = vmul.f32 %v1575, %v1975
        %v1992 = vmul.f32 %v1576, %v1976
        %v1993 = vmul.f32 %v1577, %v1977
        %v1994 = vmul.f32 %v1578, %v1978
        %v1995 = vmul.f32 %v1579, %v1979
        %v1996 = vmul.f32 %v1580, %v1980
        %v1997 = vmul.f32 %v1581, %v1981
        %v1998 = vmul.f32 %v1582, %v1982
        %v1999 = vmul.f32 %v1583, %v1983
        %v2000 = vmul.f32 %v1584, %v1984
        %v2001 = vmul.f32 %v1585, %v1985
        %v2002 = vmul.f32 %v1586, %v1986
        %v2003 = vmul.f32 %v1587, %v1987
        %v2004 = vmul.f32 %v1588, %v1988
        %v2005 = vpack.c.bf16 %v1989, %v1989
        %v2006 = vpack.c.bf16 %v1990, %v1990
        %v2007 = vpack.c.bf16 %v1991, %v1991
        %v2008 = vpack.c.bf16 %v1992, %v1992
        %v2009 = vpack.c.bf16 %v1993, %v1993
        %v2010 = vpack.c.bf16 %v1994, %v1994
        %v2011 = vpack.c.bf16 %v1995, %v1995
        %v2012 = vpack.c.bf16 %v1996, %v1996
        %v2013 = vpack.c.bf16 %v1997, %v1997
        %v2014 = vpack.c.bf16 %v1998, %v1998
        %v2015 = vpack.c.bf16 %v1999, %v1999
        %v2016 = vpack.c.bf16 %v2000, %v2000
        %v2017 = vpack.c.bf16 %v2001, %v2001
        %v2018 = vpack.c.bf16 %v2002, %v2002
        %v2019 = vpack.c.bf16 %v2003, %v2003
        %v2020 = vpack.c.bf16 %v2004, %v2004
        %s2021 = smul.u32 %s26, 256
        %s2022 = smul.addr %s2021, 4
        %s2023 = scalar_lea.vmem %s4, %s2022
        %v2024 = vld [vmem:[%s2023] sm:$0xf]
        %v2025 = vld [vmem:[%s2023 + $0x4] sm:$0xf]
        %v2026 = vld [vmem:[%s2023 + $0x8] sm:$0xf]
        %v2027 = vld [vmem:[%s2023 + $0xc] sm:$0xf]
        %v2028 = vld [vmem:[%s2023 + $0x10] sm:$0xf]
        %v2029 = vld [vmem:[%s2023 + $0x14] sm:$0xf]
        %v2030 = vld [vmem:[%s2023 + $0x18] sm:$0xf]
        %v2031 = vld [vmem:[%s2023 + $0x1c] sm:$0xf]
        %v2032 = vld [vmem:[%s2023 + $0x20] sm:$0xf]
        %v2033 = vld [vmem:[%s2023 + $0x24] sm:$0xf]
        %v2034 = vld [vmem:[%s2023 + $0x28] sm:$0xf]
        %v2035 = vld [vmem:[%s2023 + $0x2c] sm:$0xf]
        %v2036 = vld [vmem:[%s2023 + $0x30] sm:$0xf]
        %v2037 = vld [vmem:[%s2023 + $0x34] sm:$0xf]
        %v2038 = vld [vmem:[%s2023 + $0x38] sm:$0xf]
        %v2039 = vld [vmem:[%s2023 + $0x3c] sm:$0xf]
        %v2040 = vld [vmem:[%s2023 + $0x40] sm:$0xf]
        %v2041 = vld [vmem:[%s2023 + $0x44] sm:$0xf]
        %v2042 = vld [vmem:[%s2023 + $0x48] sm:$0xf]
        %v2043 = vld [vmem:[%s2023 + $0x4c] sm:$0xf]
        %v2044 = vld [vmem:[%s2023 + $0x50] sm:$0xf]
        %v2045 = vld [vmem:[%s2023 + $0x54] sm:$0xf]
        %v2046 = vld [vmem:[%s2023 + $0x58] sm:$0xf]
        %v2047 = vld [vmem:[%s2023 + $0x5c] sm:$0xf]
        %v2048 = vld [vmem:[%s2023 + $0x60] sm:$0xf]
        %v2049 = vld [vmem:[%s2023 + $0x64] sm:$0xf]
        %v2050 = vld [vmem:[%s2023 + $0x68] sm:$0xf]
        %v2051 = vld [vmem:[%s2023 + $0x6c] sm:$0xf]
        %v2052 = vld [vmem:[%s2023 + $0x70] sm:$0xf]
        %v2053 = vld [vmem:[%s2023 + $0x74] sm:$0xf]
        %v2054 = vld [vmem:[%s2023 + $0x78] sm:$0xf]
        %v2055 = vld [vmem:[%s2023 + $0x7c] sm:$0xf]
        %v2056 = vld [vmem:[%s2023 + $0x80] sm:$0xf]
        %v2057 = vld [vmem:[%s2023 + $0x84] sm:$0xf]
        %v2058 = vld [vmem:[%s2023 + $0x88] sm:$0xf]
        %v2059 = vld [vmem:[%s2023 + $0x8c] sm:$0xf]
        %v2060 = vld [vmem:[%s2023 + $0x90] sm:$0xf]
        %v2061 = vld [vmem:[%s2023 + $0x94] sm:$0xf]
        %v2062 = vld [vmem:[%s2023 + $0x98] sm:$0xf]
        %v2063 = vld [vmem:[%s2023 + $0x9c] sm:$0xf]
        %v2064 = vld [vmem:[%s2023 + $0xa0] sm:$0xf]
        %v2065 = vld [vmem:[%s2023 + $0xa4] sm:$0xf]
        %v2066 = vld [vmem:[%s2023 + $0xa8] sm:$0xf]
        %v2067 = vld [vmem:[%s2023 + $0xac] sm:$0xf]
        %v2068 = vld [vmem:[%s2023 + $0xb0] sm:$0xf]
        %v2069 = vld [vmem:[%s2023 + $0xb4] sm:$0xf]
        %v2070 = vld [vmem:[%s2023 + $0xb8] sm:$0xf]
        %v2071 = vld [vmem:[%s2023 + $0xbc] sm:$0xf]
        %v2072 = vld [vmem:[%s2023 + $0xc0] sm:$0xf]
        %v2073 = vld [vmem:[%s2023 + $0xc4] sm:$0xf]
        %v2074 = vld [vmem:[%s2023 + $0xc8] sm:$0xf]
        %v2075 = vld [vmem:[%s2023 + $0xcc] sm:$0xf]
        %v2076 = vld [vmem:[%s2023 + $0xd0] sm:$0xf]
        %v2077 = vld [vmem:[%s2023 + $0xd4] sm:$0xf]
        %v2078 = vld [vmem:[%s2023 + $0xd8] sm:$0xf]
        %v2079 = vld [vmem:[%s2023 + $0xdc] sm:$0xf]
        %v2080 = vld [vmem:[%s2023 + $0xe0] sm:$0xf]
        %v2081 = vld [vmem:[%s2023 + $0xe4] sm:$0xf]
        %v2082 = vld [vmem:[%s2023 + $0xe8] sm:$0xf]
        %v2083 = vld [vmem:[%s2023 + $0xec] sm:$0xf]
        %v2084 = vld [vmem:[%s2023 + $0xf0] sm:$0xf]
        %v2085 = vld [vmem:[%s2023 + $0xf4] sm:$0xf]
        %v2086 = vld [vmem:[%s2023 + $0xf8] sm:$0xf]
        %v2087 = vld [vmem:[%s2023 + $0xfc] sm:$0xf]
        %v2088 = vld [vmem:[%s2023 + $0x100] sm:$0xf]
        %v2089 = vld [vmem:[%s2023 + $0x104] sm:$0xf]
        %v2090 = vld [vmem:[%s2023 + $0x108] sm:$0xf]
        %v2091 = vld [vmem:[%s2023 + $0x10c] sm:$0xf]
        %v2092 = vld [vmem:[%s2023 + $0x110] sm:$0xf]
        %v2093 = vld [vmem:[%s2023 + $0x114] sm:$0xf]
        %v2094 = vld [vmem:[%s2023 + $0x118] sm:$0xf]
        %v2095 = vld [vmem:[%s2023 + $0x11c] sm:$0xf]
        %v2096 = vld [vmem:[%s2023 + $0x120] sm:$0xf]
        %v2097 = vld [vmem:[%s2023 + $0x124] sm:$0xf]
        %v2098 = vld [vmem:[%s2023 + $0x128] sm:$0xf]
        %v2099 = vld [vmem:[%s2023 + $0x12c] sm:$0xf]
        %v2100 = vld [vmem:[%s2023 + $0x130] sm:$0xf]
        %v2101 = vld [vmem:[%s2023 + $0x134] sm:$0xf]
        %v2102 = vld [vmem:[%s2023 + $0x138] sm:$0xf]
        %v2103 = vld [vmem:[%s2023 + $0x13c] sm:$0xf]
        %v2104 = vld [vmem:[%s2023 + $0x140] sm:$0xf]
        %v2105 = vld [vmem:[%s2023 + $0x144] sm:$0xf]
        %v2106 = vld [vmem:[%s2023 + $0x148] sm:$0xf]
        %v2107 = vld [vmem:[%s2023 + $0x14c] sm:$0xf]
        %v2108 = vld [vmem:[%s2023 + $0x150] sm:$0xf]
        %v2109 = vld [vmem:[%s2023 + $0x154] sm:$0xf]
        %v2110 = vld [vmem:[%s2023 + $0x158] sm:$0xf]
        %v2111 = vld [vmem:[%s2023 + $0x15c] sm:$0xf]
        %v2112 = vld [vmem:[%s2023 + $0x160] sm:$0xf]
        %v2113 = vld [vmem:[%s2023 + $0x164] sm:$0xf]
        %v2114 = vld [vmem:[%s2023 + $0x168] sm:$0xf]
        %v2115 = vld [vmem:[%s2023 + $0x16c] sm:$0xf]
        %v2116 = vld [vmem:[%s2023 + $0x170] sm:$0xf]
        %v2117 = vld [vmem:[%s2023 + $0x174] sm:$0xf]
        %v2118 = vld [vmem:[%s2023 + $0x178] sm:$0xf]
        %v2119 = vld [vmem:[%s2023 + $0x17c] sm:$0xf]
        %v2120 = vld [vmem:[%s2023 + $0x180] sm:$0xf]
        %v2121 = vld [vmem:[%s2023 + $0x184] sm:$0xf]
        %v2122 = vld [vmem:[%s2023 + $0x188] sm:$0xf]
        %v2123 = vld [vmem:[%s2023 + $0x18c] sm:$0xf]
        %v2124 = vld [vmem:[%s2023 + $0x190] sm:$0xf]
        %v2125 = vld [vmem:[%s2023 + $0x194] sm:$0xf]
        %v2126 = vld [vmem:[%s2023 + $0x198] sm:$0xf]
        %v2127 = vld [vmem:[%s2023 + $0x19c] sm:$0xf]
        %v2128 = vld [vmem:[%s2023 + $0x1a0] sm:$0xf]
        %v2129 = vld [vmem:[%s2023 + $0x1a4] sm:$0xf]
        %v2130 = vld [vmem:[%s2023 + $0x1a8] sm:$0xf]
        %v2131 = vld [vmem:[%s2023 + $0x1ac] sm:$0xf]
        %v2132 = vld [vmem:[%s2023 + $0x1b0] sm:$0xf]
        %v2133 = vld [vmem:[%s2023 + $0x1b4] sm:$0xf]
        %v2134 = vld [vmem:[%s2023 + $0x1b8] sm:$0xf]
        %v2135 = vld [vmem:[%s2023 + $0x1bc] sm:$0xf]
        %v2136 = vld [vmem:[%s2023 + $0x1c0] sm:$0xf]
        %v2137 = vld [vmem:[%s2023 + $0x1c4] sm:$0xf]
        %v2138 = vld [vmem:[%s2023 + $0x1c8] sm:$0xf]
        %v2139 = vld [vmem:[%s2023 + $0x1cc] sm:$0xf]
        %v2140 = vld [vmem:[%s2023 + $0x1d0] sm:$0xf]
        %v2141 = vld [vmem:[%s2023 + $0x1d4] sm:$0xf]
        %v2142 = vld [vmem:[%s2023 + $0x1d8] sm:$0xf]
        %v2143 = vld [vmem:[%s2023 + $0x1dc] sm:$0xf]
        %v2144 = vld [vmem:[%s2023 + $0x1e0] sm:$0xf]
        %v2145 = vld [vmem:[%s2023 + $0x1e4] sm:$0xf]
        %v2146 = vld [vmem:[%s2023 + $0x1e8] sm:$0xf]
        %v2147 = vld [vmem:[%s2023 + $0x1ec] sm:$0xf]
        %v2148 = vld [vmem:[%s2023 + $0x1f0] sm:$0xf]
        %v2149 = vld [vmem:[%s2023 + $0x1f4] sm:$0xf]
        %v2150 = vld [vmem:[%s2023 + $0x1f8] sm:$0xf]
        %v2151 = vld [vmem:[%s2023 + $0x1fc] sm:$0xf]
        %v2152 = vld [vmem:[%s2023 + $0x200] sm:$0xf]
        %v2153 = vld [vmem:[%s2023 + $0x204] sm:$0xf]
        %v2154 = vld [vmem:[%s2023 + $0x208] sm:$0xf]
        %v2155 = vld [vmem:[%s2023 + $0x20c] sm:$0xf]
        %v2156 = vld [vmem:[%s2023 + $0x210] sm:$0xf]
        %v2157 = vld [vmem:[%s2023 + $0x214] sm:$0xf]
        %v2158 = vld [vmem:[%s2023 + $0x218] sm:$0xf]
        %v2159 = vld [vmem:[%s2023 + $0x21c] sm:$0xf]
        %v2160 = vld [vmem:[%s2023 + $0x220] sm:$0xf]
        %v2161 = vld [vmem:[%s2023 + $0x224] sm:$0xf]
        %v2162 = vld [vmem:[%s2023 + $0x228] sm:$0xf]
        %v2163 = vld [vmem:[%s2023 + $0x22c] sm:$0xf]
        %v2164 = vld [vmem:[%s2023 + $0x230] sm:$0xf]
        %v2165 = vld [vmem:[%s2023 + $0x234] sm:$0xf]
        %v2166 = vld [vmem:[%s2023 + $0x238] sm:$0xf]
        %v2167 = vld [vmem:[%s2023 + $0x23c] sm:$0xf]
        %v2168 = vld [vmem:[%s2023 + $0x240] sm:$0xf]
        %v2169 = vld [vmem:[%s2023 + $0x244] sm:$0xf]
        %v2170 = vld [vmem:[%s2023 + $0x248] sm:$0xf]
        %v2171 = vld [vmem:[%s2023 + $0x24c] sm:$0xf]
        %v2172 = vld [vmem:[%s2023 + $0x250] sm:$0xf]
        %v2173 = vld [vmem:[%s2023 + $0x254] sm:$0xf]
        %v2174 = vld [vmem:[%s2023 + $0x258] sm:$0xf]
        %v2175 = vld [vmem:[%s2023 + $0x25c] sm:$0xf]
        %v2176 = vld [vmem:[%s2023 + $0x260] sm:$0xf]
        %v2177 = vld [vmem:[%s2023 + $0x264] sm:$0xf]
        %v2178 = vld [vmem:[%s2023 + $0x268] sm:$0xf]
        %v2179 = vld [vmem:[%s2023 + $0x26c] sm:$0xf]
        %v2180 = vld [vmem:[%s2023 + $0x270] sm:$0xf]
        %v2181 = vld [vmem:[%s2023 + $0x274] sm:$0xf]
        %v2182 = vld [vmem:[%s2023 + $0x278] sm:$0xf]
        %v2183 = vld [vmem:[%s2023 + $0x27c] sm:$0xf]
        %v2184 = vld [vmem:[%s2023 + $0x280] sm:$0xf]
        %v2185 = vld [vmem:[%s2023 + $0x284] sm:$0xf]
        %v2186 = vld [vmem:[%s2023 + $0x288] sm:$0xf]
        %v2187 = vld [vmem:[%s2023 + $0x28c] sm:$0xf]
        %v2188 = vld [vmem:[%s2023 + $0x290] sm:$0xf]
        %v2189 = vld [vmem:[%s2023 + $0x294] sm:$0xf]
        %v2190 = vld [vmem:[%s2023 + $0x298] sm:$0xf]
        %v2191 = vld [vmem:[%s2023 + $0x29c] sm:$0xf]
        %v2192 = vld [vmem:[%s2023 + $0x2a0] sm:$0xf]
        %v2193 = vld [vmem:[%s2023 + $0x2a4] sm:$0xf]
        %v2194 = vld [vmem:[%s2023 + $0x2a8] sm:$0xf]
        %v2195 = vld [vmem:[%s2023 + $0x2ac] sm:$0xf]
        %v2196 = vld [vmem:[%s2023 + $0x2b0] sm:$0xf]
        %v2197 = vld [vmem:[%s2023 + $0x2b4] sm:$0xf]
        %v2198 = vld [vmem:[%s2023 + $0x2b8] sm:$0xf]
        %v2199 = vld [vmem:[%s2023 + $0x2bc] sm:$0xf]
        %v2200 = vld [vmem:[%s2023 + $0x2c0] sm:$0xf]
        %v2201 = vld [vmem:[%s2023 + $0x2c4] sm:$0xf]
        %v2202 = vld [vmem:[%s2023 + $0x2c8] sm:$0xf]
        %v2203 = vld [vmem:[%s2023 + $0x2cc] sm:$0xf]
        %v2204 = vld [vmem:[%s2023 + $0x2d0] sm:$0xf]
        %v2205 = vld [vmem:[%s2023 + $0x2d4] sm:$0xf]
        %v2206 = vld [vmem:[%s2023 + $0x2d8] sm:$0xf]
        %v2207 = vld [vmem:[%s2023 + $0x2dc] sm:$0xf]
        %v2208 = vld [vmem:[%s2023 + $0x2e0] sm:$0xf]
        %v2209 = vld [vmem:[%s2023 + $0x2e4] sm:$0xf]
        %v2210 = vld [vmem:[%s2023 + $0x2e8] sm:$0xf]
        %v2211 = vld [vmem:[%s2023 + $0x2ec] sm:$0xf]
        %v2212 = vld [vmem:[%s2023 + $0x2f0] sm:$0xf]
        %v2213 = vld [vmem:[%s2023 + $0x2f4] sm:$0xf]
        %v2214 = vld [vmem:[%s2023 + $0x2f8] sm:$0xf]
        %v2215 = vld [vmem:[%s2023 + $0x2fc] sm:$0xf]
        %v2216 = vld [vmem:[%s2023 + $0x300] sm:$0xf]
        %v2217 = vld [vmem:[%s2023 + $0x304] sm:$0xf]
        %v2218 = vld [vmem:[%s2023 + $0x308] sm:$0xf]
        %v2219 = vld [vmem:[%s2023 + $0x30c] sm:$0xf]
        %v2220 = vld [vmem:[%s2023 + $0x310] sm:$0xf]
        %v2221 = vld [vmem:[%s2023 + $0x314] sm:$0xf]
        %v2222 = vld [vmem:[%s2023 + $0x318] sm:$0xf]
        %v2223 = vld [vmem:[%s2023 + $0x31c] sm:$0xf]
        %v2224 = vld [vmem:[%s2023 + $0x320] sm:$0xf]
        %v2225 = vld [vmem:[%s2023 + $0x324] sm:$0xf]
        %v2226 = vld [vmem:[%s2023 + $0x328] sm:$0xf]
        %v2227 = vld [vmem:[%s2023 + $0x32c] sm:$0xf]
        %v2228 = vld [vmem:[%s2023 + $0x330] sm:$0xf]
        %v2229 = vld [vmem:[%s2023 + $0x334] sm:$0xf]
        %v2230 = vld [vmem:[%s2023 + $0x338] sm:$0xf]
        %v2231 = vld [vmem:[%s2023 + $0x33c] sm:$0xf]
        %v2232 = vld [vmem:[%s2023 + $0x340] sm:$0xf]
        %v2233 = vld [vmem:[%s2023 + $0x344] sm:$0xf]
        %v2234 = vld [vmem:[%s2023 + $0x348] sm:$0xf]
        %v2235 = vld [vmem:[%s2023 + $0x34c] sm:$0xf]
        %v2236 = vld [vmem:[%s2023 + $0x350] sm:$0xf]
        %v2237 = vld [vmem:[%s2023 + $0x354] sm:$0xf]
        %v2238 = vld [vmem:[%s2023 + $0x358] sm:$0xf]
        %v2239 = vld [vmem:[%s2023 + $0x35c] sm:$0xf]
        %v2240 = vld [vmem:[%s2023 + $0x360] sm:$0xf]
        %v2241 = vld [vmem:[%s2023 + $0x364] sm:$0xf]
        %v2242 = vld [vmem:[%s2023 + $0x368] sm:$0xf]
        %v2243 = vld [vmem:[%s2023 + $0x36c] sm:$0xf]
        %v2244 = vld [vmem:[%s2023 + $0x370] sm:$0xf]
        %v2245 = vld [vmem:[%s2023 + $0x374] sm:$0xf]
        %v2246 = vld [vmem:[%s2023 + $0x378] sm:$0xf]
        %v2247 = vld [vmem:[%s2023 + $0x37c] sm:$0xf]
        %v2248 = vld [vmem:[%s2023 + $0x380] sm:$0xf]
        %v2249 = vld [vmem:[%s2023 + $0x384] sm:$0xf]
        %v2250 = vld [vmem:[%s2023 + $0x388] sm:$0xf]
        %v2251 = vld [vmem:[%s2023 + $0x38c] sm:$0xf]
        %v2252 = vld [vmem:[%s2023 + $0x390] sm:$0xf]
        %v2253 = vld [vmem:[%s2023 + $0x394] sm:$0xf]
        %v2254 = vld [vmem:[%s2023 + $0x398] sm:$0xf]
        %v2255 = vld [vmem:[%s2023 + $0x39c] sm:$0xf]
        %v2256 = vld [vmem:[%s2023 + $0x3a0] sm:$0xf]
        %v2257 = vld [vmem:[%s2023 + $0x3a4] sm:$0xf]
        %v2258 = vld [vmem:[%s2023 + $0x3a8] sm:$0xf]
        %v2259 = vld [vmem:[%s2023 + $0x3ac] sm:$0xf]
        %v2260 = vld [vmem:[%s2023 + $0x3b0] sm:$0xf]
        %v2261 = vld [vmem:[%s2023 + $0x3b4] sm:$0xf]
        %v2262 = vld [vmem:[%s2023 + $0x3b8] sm:$0xf]
        %v2263 = vld [vmem:[%s2023 + $0x3bc] sm:$0xf]
        %v2264 = vld [vmem:[%s2023 + $0x3c0] sm:$0xf]
        %v2265 = vld [vmem:[%s2023 + $0x3c4] sm:$0xf]
        %v2266 = vld [vmem:[%s2023 + $0x3c8] sm:$0xf]
        %v2267 = vld [vmem:[%s2023 + $0x3cc] sm:$0xf]
        %v2268 = vld [vmem:[%s2023 + $0x3d0] sm:$0xf]
        %v2269 = vld [vmem:[%s2023 + $0x3d4] sm:$0xf]
        %v2270 = vld [vmem:[%s2023 + $0x3d8] sm:$0xf]
        %v2271 = vld [vmem:[%s2023 + $0x3dc] sm:$0xf]
        %v2272 = vld [vmem:[%s2023 + $0x3e0] sm:$0xf]
        %v2273 = vld [vmem:[%s2023 + $0x3e4] sm:$0xf]
        %v2274 = vld [vmem:[%s2023 + $0x3e8] sm:$0xf]
        %v2275 = vld [vmem:[%s2023 + $0x3ec] sm:$0xf]
        %v2276 = vld [vmem:[%s2023 + $0x3f0] sm:$0xf]
        %v2277 = vld [vmem:[%s2023 + $0x3f4] sm:$0xf]
        %v2278 = vld [vmem:[%s2023 + $0x3f8] sm:$0xf]
        %v2279 = vld [vmem:[%s2023 + $0x3fc] sm:$0xf]
        %v2280 = vlaneseq
        %v2281 = vshrl.u32 %v2280, 7
        %v2282 = vsub.s32 5, %v2281
        %v2283 = vrot.slane %v297, %v2282
        %v2540 = vunpack.c.l.b16 %v2024
        %v2541 = vunpack.c.l.b16 %v2025
        %v2542 = vunpack.c.l.b16 %v2026
        %v2543 = vunpack.c.l.b16 %v2027
        %v2544 = vunpack.c.l.b16 %v2028
        %v2545 = vunpack.c.l.b16 %v2029
        %v2546 = vunpack.c.l.b16 %v2030
        %v2547 = vunpack.c.l.b16 %v2031
        %v2548 = vunpack.c.l.b16 %v2032
        %v2549 = vunpack.c.l.b16 %v2033
        %v2550 = vunpack.c.l.b16 %v2034
        %v2551 = vunpack.c.l.b16 %v2035
        %v2552 = vunpack.c.l.b16 %v2036
        %v2553 = vunpack.c.l.b16 %v2037
        %v2554 = vunpack.c.l.b16 %v2038
        %v2555 = vunpack.c.l.b16 %v2039
        %v2556 = vunpack.c.l.b16 %v2040
        %v2557 = vunpack.c.l.b16 %v2041
        %v2558 = vunpack.c.l.b16 %v2042
        %v2559 = vunpack.c.l.b16 %v2043
        %v2560 = vunpack.c.l.b16 %v2044
        %v2561 = vunpack.c.l.b16 %v2045
        %v2562 = vunpack.c.l.b16 %v2046
        %v2563 = vunpack.c.l.b16 %v2047
        %v2564 = vunpack.c.l.b16 %v2048
        %v2565 = vunpack.c.l.b16 %v2049
        %v2566 = vunpack.c.l.b16 %v2050
        %v2567 = vunpack.c.l.b16 %v2051
        %v2568 = vunpack.c.l.b16 %v2052
        %v2569 = vunpack.c.l.b16 %v2053
        %v2570 = vunpack.c.l.b16 %v2054
        %v2571 = vunpack.c.l.b16 %v2055
        %v2572 = vunpack.c.l.b16 %v2056
        %v2573 = vunpack.c.l.b16 %v2057
        %v2574 = vunpack.c.l.b16 %v2058
        %v2575 = vunpack.c.l.b16 %v2059
        %v2576 = vunpack.c.l.b16 %v2060
        %v2577 = vunpack.c.l.b16 %v2061
        %v2578 = vunpack.c.l.b16 %v2062
        %v2579 = vunpack.c.l.b16 %v2063
        %v2580 = vunpack.c.l.b16 %v2064
        %v2581 = vunpack.c.l.b16 %v2065
        %v2582 = vunpack.c.l.b16 %v2066
        %v2583 = vunpack.c.l.b16 %v2067
        %v2584 = vunpack.c.l.b16 %v2068
        %v2585 = vunpack.c.l.b16 %v2069
        %v2586 = vunpack.c.l.b16 %v2070
        %v2587 = vunpack.c.l.b16 %v2071
        %v2588 = vunpack.c.l.b16 %v2072
        %v2589 = vunpack.c.l.b16 %v2073
        %v2590 = vunpack.c.l.b16 %v2074
        %v2591 = vunpack.c.l.b16 %v2075
        %v2592 = vunpack.c.l.b16 %v2076
        %v2593 = vunpack.c.l.b16 %v2077
        %v2594 = vunpack.c.l.b16 %v2078
        %v2595 = vunpack.c.l.b16 %v2079
        %v2596 = vunpack.c.l.b16 %v2080
        %v2597 = vunpack.c.l.b16 %v2081
        %v2598 = vunpack.c.l.b16 %v2082
        %v2599 = vunpack.c.l.b16 %v2083
        %v2600 = vunpack.c.l.b16 %v2084
        %v2601 = vunpack.c.l.b16 %v2085
        %v2602 = vunpack.c.l.b16 %v2086
        %v2603 = vunpack.c.l.b16 %v2087
        %v2604 = vunpack.c.l.b16 %v2088
        %v2605 = vunpack.c.l.b16 %v2089
        %v2606 = vunpack.c.l.b16 %v2090
        %v2607 = vunpack.c.l.b16 %v2091
        %v2608 = vunpack.c.l.b16 %v2092
        %v2609 = vunpack.c.l.b16 %v2093
        %v2610 = vunpack.c.l.b16 %v2094
        %v2611 = vunpack.c.l.b16 %v2095
        %v2612 = vunpack.c.l.b16 %v2096
        %v2613 = vunpack.c.l.b16 %v2097
        %v2614 = vunpack.c.l.b16 %v2098
        %v2615 = vunpack.c.l.b16 %v2099
        %v2616 = vunpack.c.l.b16 %v2100
        %v2617 = vunpack.c.l.b16 %v2101
        %v2618 = vunpack.c.l.b16 %v2102
        %v2619 = vunpack.c.l.b16 %v2103
        %v2620 = vunpack.c.l.b16 %v2104
        %v2621 = vunpack.c.l.b16 %v2105
        %v2622 = vunpack.c.l.b16 %v2106
        %v2623 = vunpack.c.l.b16 %v2107
        %v2624 = vunpack.c.l.b16 %v2108
        %v2625 = vunpack.c.l.b16 %v2109
        %v2626 = vunpack.c.l.b16 %v2110
        %v2627 = vunpack.c.l.b16 %v2111
        %v2628 = vunpack.c.l.b16 %v2112
        %v2629 = vunpack.c.l.b16 %v2113
        %v2630 = vunpack.c.l.b16 %v2114
        %v2631 = vunpack.c.l.b16 %v2115
        %v2632 = vunpack.c.l.b16 %v2116
        %v2633 = vunpack.c.l.b16 %v2117
        %v2634 = vunpack.c.l.b16 %v2118
        %v2635 = vunpack.c.l.b16 %v2119
        %v2636 = vunpack.c.l.b16 %v2120
        %v2637 = vunpack.c.l.b16 %v2121
        %v2638 = vunpack.c.l.b16 %v2122
        %v2639 = vunpack.c.l.b16 %v2123
        %v2640 = vunpack.c.l.b16 %v2124
        %v2641 = vunpack.c.l.b16 %v2125
        %v2642 = vunpack.c.l.b16 %v2126
        %v2643 = vunpack.c.l.b16 %v2127
        %v2644 = vunpack.c.l.b16 %v2128
        %v2645 = vunpack.c.l.b16 %v2129
        %v2646 = vunpack.c.l.b16 %v2130
        %v2647 = vunpack.c.l.b16 %v2131
        %v2648 = vunpack.c.l.b16 %v2132
        %v2649 = vunpack.c.l.b16 %v2133
        %v2650 = vunpack.c.l.b16 %v2134
        %v2651 = vunpack.c.l.b16 %v2135
        %v2652 = vunpack.c.l.b16 %v2136
        %v2653 = vunpack.c.l.b16 %v2137
        %v2654 = vunpack.c.l.b16 %v2138
        %v2655 = vunpack.c.l.b16 %v2139
        %v2656 = vunpack.c.l.b16 %v2140
        %v2657 = vunpack.c.l.b16 %v2141
        %v2658 = vunpack.c.l.b16 %v2142
        %v2659 = vunpack.c.l.b16 %v2143
        %v2660 = vunpack.c.l.b16 %v2144
        %v2661 = vunpack.c.l.b16 %v2145
        %v2662 = vunpack.c.l.b16 %v2146
        %v2663 = vunpack.c.l.b16 %v2147
        %v2664 = vunpack.c.l.b16 %v2148
        %v2665 = vunpack.c.l.b16 %v2149
        %v2666 = vunpack.c.l.b16 %v2150
        %v2667 = vunpack.c.l.b16 %v2151
        %v2668 = vunpack.c.l.b16 %v2152
        %v2669 = vunpack.c.l.b16 %v2153
        %v2670 = vunpack.c.l.b16 %v2154
        %v2671 = vunpack.c.l.b16 %v2155
        %v2672 = vunpack.c.l.b16 %v2156
        %v2673 = vunpack.c.l.b16 %v2157
        %v2674 = vunpack.c.l.b16 %v2158
        %v2675 = vunpack.c.l.b16 %v2159
        %v2676 = vunpack.c.l.b16 %v2160
        %v2677 = vunpack.c.l.b16 %v2161
        %v2678 = vunpack.c.l.b16 %v2162
        %v2679 = vunpack.c.l.b16 %v2163
        %v2680 = vunpack.c.l.b16 %v2164
        %v2681 = vunpack.c.l.b16 %v2165
        %v2682 = vunpack.c.l.b16 %v2166
        %v2683 = vunpack.c.l.b16 %v2167
        %v2684 = vunpack.c.l.b16 %v2168
        %v2685 = vunpack.c.l.b16 %v2169
        %v2686 = vunpack.c.l.b16 %v2170
        %v2687 = vunpack.c.l.b16 %v2171
        %v2688 = vunpack.c.l.b16 %v2172
        %v2689 = vunpack.c.l.b16 %v2173
        %v2690 = vunpack.c.l.b16 %v2174
        %v2691 = vunpack.c.l.b16 %v2175
        %v2692 = vunpack.c.l.b16 %v2176
        %v2693 = vunpack.c.l.b16 %v2177
        %v2694 = vunpack.c.l.b16 %v2178
        %v2695 = vunpack.c.l.b16 %v2179
        %v2696 = vunpack.c.l.b16 %v2180
        %v2697 = vunpack.c.l.b16 %v2181
        %v2698 = vunpack.c.l.b16 %v2182
        %v2699 = vunpack.c.l.b16 %v2183
        %v2700 = vunpack.c.l.b16 %v2184
        %v2701 = vunpack.c.l.b16 %v2185
        %v2702 = vunpack.c.l.b16 %v2186
        %v2703 = vunpack.c.l.b16 %v2187
        %v2704 = vunpack.c.l.b16 %v2188
        %v2705 = vunpack.c.l.b16 %v2189
        %v2706 = vunpack.c.l.b16 %v2190
        %v2707 = vunpack.c.l.b16 %v2191
        %v2708 = vunpack.c.l.b16 %v2192
        %v2709 = vunpack.c.l.b16 %v2193
        %v2710 = vunpack.c.l.b16 %v2194
        %v2711 = vunpack.c.l.b16 %v2195
        %v2712 = vunpack.c.l.b16 %v2196
        %v2713 = vunpack.c.l.b16 %v2197
        %v2714 = vunpack.c.l.b16 %v2198
        %v2715 = vunpack.c.l.b16 %v2199
        %v2716 = vunpack.c.l.b16 %v2200
        %v2717 = vunpack.c.l.b16 %v2201
        %v2718 = vunpack.c.l.b16 %v2202
        %v2719 = vunpack.c.l.b16 %v2203
        %v2720 = vunpack.c.l.b16 %v2204
        %v2721 = vunpack.c.l.b16 %v2205
        %v2722 = vunpack.c.l.b16 %v2206
        %v2723 = vunpack.c.l.b16 %v2207
        %v2724 = vunpack.c.l.b16 %v2208
        %v2725 = vunpack.c.l.b16 %v2209
        %v2726 = vunpack.c.l.b16 %v2210
        %v2727 = vunpack.c.l.b16 %v2211
        %v2728 = vunpack.c.l.b16 %v2212
        %v2729 = vunpack.c.l.b16 %v2213
        %v2730 = vunpack.c.l.b16 %v2214
        %v2731 = vunpack.c.l.b16 %v2215
        %v2732 = vunpack.c.l.b16 %v2216
        %v2733 = vunpack.c.l.b16 %v2217
        %v2734 = vunpack.c.l.b16 %v2218
        %v2735 = vunpack.c.l.b16 %v2219
        %v2736 = vunpack.c.l.b16 %v2220
        %v2737 = vunpack.c.l.b16 %v2221
        %v2738 = vunpack.c.l.b16 %v2222
        %v2739 = vunpack.c.l.b16 %v2223
        %v2740 = vunpack.c.l.b16 %v2224
        %v2741 = vunpack.c.l.b16 %v2225
        %v2742 = vunpack.c.l.b16 %v2226
        %v2743 = vunpack.c.l.b16 %v2227
        %v2744 = vunpack.c.l.b16 %v2228
        %v2745 = vunpack.c.l.b16 %v2229
        %v2746 = vunpack.c.l.b16 %v2230
        %v2747 = vunpack.c.l.b16 %v2231
        %v2748 = vunpack.c.l.b16 %v2232
        %v2749 = vunpack.c.l.b16 %v2233
        %v2750 = vunpack.c.l.b16 %v2234
        %v2751 = vunpack.c.l.b16 %v2235
        %v2752 = vunpack.c.l.b16 %v2236
        %v2753 = vunpack.c.l.b16 %v2237
        %v2754 = vunpack.c.l.b16 %v2238
        %v2755 = vunpack.c.l.b16 %v2239
        %v2756 = vunpack.c.l.b16 %v2240
        %v2757 = vunpack.c.l.b16 %v2241
        %v2758 = vunpack.c.l.b16 %v2242
        %v2759 = vunpack.c.l.b16 %v2243
        %v2760 = vunpack.c.l.b16 %v2244
        %v2761 = vunpack.c.l.b16 %v2245
        %v2762 = vunpack.c.l.b16 %v2246
        %v2763 = vunpack.c.l.b16 %v2247
        %v2764 = vunpack.c.l.b16 %v2248
        %v2765 = vunpack.c.l.b16 %v2249
        %v2766 = vunpack.c.l.b16 %v2250
        %v2767 = vunpack.c.l.b16 %v2251
        %v2768 = vunpack.c.l.b16 %v2252
        %v2769 = vunpack.c.l.b16 %v2253
        %v2770 = vunpack.c.l.b16 %v2254
        %v2771 = vunpack.c.l.b16 %v2255
        %v2772 = vunpack.c.l.b16 %v2256
        %v2773 = vunpack.c.l.b16 %v2257
        %v2774 = vunpack.c.l.b16 %v2258
        %v2775 = vunpack.c.l.b16 %v2259
        %v2776 = vunpack.c.l.b16 %v2260
        %v2777 = vunpack.c.l.b16 %v2261
        %v2778 = vunpack.c.l.b16 %v2262
        %v2779 = vunpack.c.l.b16 %v2263
        %v2780 = vunpack.c.l.b16 %v2264
        %v2781 = vunpack.c.l.b16 %v2265
        %v2782 = vunpack.c.l.b16 %v2266
        %v2783 = vunpack.c.l.b16 %v2267
        %v2784 = vunpack.c.l.b16 %v2268
        %v2785 = vunpack.c.l.b16 %v2269
        %v2786 = vunpack.c.l.b16 %v2270
        %v2787 = vunpack.c.l.b16 %v2271
        %v2788 = vunpack.c.l.b16 %v2272
        %v2789 = vunpack.c.l.b16 %v2273
        %v2790 = vunpack.c.l.b16 %v2274
        %v2791 = vunpack.c.l.b16 %v2275
        %v2792 = vunpack.c.l.b16 %v2276
        %v2793 = vunpack.c.l.b16 %v2277
        %v2794 = vunpack.c.l.b16 %v2278
        %v2795 = vunpack.c.l.b16 %v2279
        %v2796 = vpack.c.b16 %v2541, %v2540
        %v2797 = vpack.c.b16 %v2543, %v2542
        %v2798 = vpack.c.b16 %v2545, %v2544
        %v2799 = vpack.c.b16 %v2547, %v2546
        %v2800 = vpack.c.b16 %v2549, %v2548
        %v2801 = vpack.c.b16 %v2551, %v2550
        %v2802 = vpack.c.b16 %v2553, %v2552
        %v2803 = vpack.c.b16 %v2555, %v2554
        %v2804 = vpack.c.b16 %v2557, %v2556
        %v2805 = vpack.c.b16 %v2559, %v2558
        %v2806 = vpack.c.b16 %v2561, %v2560
        %v2807 = vpack.c.b16 %v2563, %v2562
        %v2808 = vpack.c.b16 %v2565, %v2564
        %v2809 = vpack.c.b16 %v2567, %v2566
        %v2810 = vpack.c.b16 %v2569, %v2568
        %v2811 = vpack.c.b16 %v2571, %v2570
        %v2812 = vpack.c.b16 %v2573, %v2572
        %v2813 = vpack.c.b16 %v2575, %v2574
        %v2814 = vpack.c.b16 %v2577, %v2576
        %v2815 = vpack.c.b16 %v2579, %v2578
        %v2816 = vpack.c.b16 %v2581, %v2580
        %v2817 = vpack.c.b16 %v2583, %v2582
        %v2818 = vpack.c.b16 %v2585, %v2584
        %v2819 = vpack.c.b16 %v2587, %v2586
        %v2820 = vpack.c.b16 %v2589, %v2588
        %v2821 = vpack.c.b16 %v2591, %v2590
        %v2822 = vpack.c.b16 %v2593, %v2592
        %v2823 = vpack.c.b16 %v2595, %v2594
        %v2824 = vpack.c.b16 %v2597, %v2596
        %v2825 = vpack.c.b16 %v2599, %v2598
        %v2826 = vpack.c.b16 %v2601, %v2600
        %v2827 = vpack.c.b16 %v2603, %v2602
        %v2828 = vpack.c.b16 %v2605, %v2604
        %v2829 = vpack.c.b16 %v2607, %v2606
        %v2830 = vpack.c.b16 %v2609, %v2608
        %v2831 = vpack.c.b16 %v2611, %v2610
        %v2832 = vpack.c.b16 %v2613, %v2612
        %v2833 = vpack.c.b16 %v2615, %v2614
        %v2834 = vpack.c.b16 %v2617, %v2616
        %v2835 = vpack.c.b16 %v2619, %v2618
        %v2836 = vpack.c.b16 %v2621, %v2620
        %v2837 = vpack.c.b16 %v2623, %v2622
        %v2838 = vpack.c.b16 %v2625, %v2624
        %v2839 = vpack.c.b16 %v2627, %v2626
        %v2840 = vpack.c.b16 %v2629, %v2628
        %v2841 = vpack.c.b16 %v2631, %v2630
        %v2842 = vpack.c.b16 %v2633, %v2632
        %v2843 = vpack.c.b16 %v2635, %v2634
        %v2844 = vpack.c.b16 %v2637, %v2636
        %v2845 = vpack.c.b16 %v2639, %v2638
        %v2846 = vpack.c.b16 %v2641, %v2640
        %v2847 = vpack.c.b16 %v2643, %v2642
        %v2848 = vpack.c.b16 %v2645, %v2644
        %v2849 = vpack.c.b16 %v2647, %v2646
        %v2850 = vpack.c.b16 %v2649, %v2648
        %v2851 = vpack.c.b16 %v2651, %v2650
        %v2852 = vpack.c.b16 %v2653, %v2652
        %v2853 = vpack.c.b16 %v2655, %v2654
        %v2854 = vpack.c.b16 %v2657, %v2656
        %v2855 = vpack.c.b16 %v2659, %v2658
        %v2856 = vpack.c.b16 %v2661, %v2660
        %v2857 = vpack.c.b16 %v2663, %v2662
        %v2858 = vpack.c.b16 %v2665, %v2664
        %v2859 = vpack.c.b16 %v2667, %v2666
        %v2860 = vpack.c.b16 %v2669, %v2668
        %v2861 = vpack.c.b16 %v2671, %v2670
        %v2862 = vpack.c.b16 %v2673, %v2672
        %v2863 = vpack.c.b16 %v2675, %v2674
        %v2864 = vpack.c.b16 %v2677, %v2676
        %v2865 = vpack.c.b16 %v2679, %v2678
        %v2866 = vpack.c.b16 %v2681, %v2680
        %v2867 = vpack.c.b16 %v2683, %v2682
        %v2868 = vpack.c.b16 %v2685, %v2684
        %v2869 = vpack.c.b16 %v2687, %v2686
        %v2870 = vpack.c.b16 %v2689, %v2688
        %v2871 = vpack.c.b16 %v2691, %v2690
        %v2872 = vpack.c.b16 %v2693, %v2692
        %v2873 = vpack.c.b16 %v2695, %v2694
        %v2874 = vpack.c.b16 %v2697, %v2696
        %v2875 = vpack.c.b16 %v2699, %v2698
        %v2876 = vpack.c.b16 %v2701, %v2700
        %v2877 = vpack.c.b16 %v2703, %v2702
        %v2878 = vpack.c.b16 %v2705, %v2704
        %v2879 = vpack.c.b16 %v2707, %v2706
        %v2880 = vpack.c.b16 %v2709, %v2708
        %v2881 = vpack.c.b16 %v2711, %v2710
        %v2882 = vpack.c.b16 %v2713, %v2712
        %v2883 = vpack.c.b16 %v2715, %v2714
        %v2884 = vpack.c.b16 %v2717, %v2716
        %v2885 = vpack.c.b16 %v2719, %v2718
        %v2886 = vpack.c.b16 %v2721, %v2720
        %v2887 = vpack.c.b16 %v2723, %v2722
        %v2888 = vpack.c.b16 %v2725, %v2724
        %v2889 = vpack.c.b16 %v2727, %v2726
        %v2890 = vpack.c.b16 %v2729, %v2728
        %v2891 = vpack.c.b16 %v2731, %v2730
        %v2892 = vpack.c.b16 %v2733, %v2732
        %v2893 = vpack.c.b16 %v2735, %v2734
        %v2894 = vpack.c.b16 %v2737, %v2736
        %v2895 = vpack.c.b16 %v2739, %v2738
        %v2896 = vpack.c.b16 %v2741, %v2740
        %v2897 = vpack.c.b16 %v2743, %v2742
        %v2898 = vpack.c.b16 %v2745, %v2744
        %v2899 = vpack.c.b16 %v2747, %v2746
        %v2900 = vpack.c.b16 %v2749, %v2748
        %v2901 = vpack.c.b16 %v2751, %v2750
        %v2902 = vpack.c.b16 %v2753, %v2752
        %v2903 = vpack.c.b16 %v2755, %v2754
        %v2904 = vpack.c.b16 %v2757, %v2756
        %v2905 = vpack.c.b16 %v2759, %v2758
        %v2906 = vpack.c.b16 %v2761, %v2760
        %v2907 = vpack.c.b16 %v2763, %v2762
        %v2908 = vpack.c.b16 %v2765, %v2764
        %v2909 = vpack.c.b16 %v2767, %v2766
        %v2910 = vpack.c.b16 %v2769, %v2768
        %v2911 = vpack.c.b16 %v2771, %v2770
        %v2912 = vpack.c.b16 %v2773, %v2772
        %v2913 = vpack.c.b16 %v2775, %v2774
        %v2914 = vpack.c.b16 %v2777, %v2776
        %v2915 = vpack.c.b16 %v2779, %v2778
        %v2916 = vpack.c.b16 %v2781, %v2780
        %v2917 = vpack.c.b16 %v2783, %v2782
        %v2918 = vpack.c.b16 %v2785, %v2784
        %v2919 = vpack.c.b16 %v2787, %v2786
        %v2920 = vpack.c.b16 %v2789, %v2788
        %v2921 = vpack.c.b16 %v2791, %v2790
        %v2922 = vpack.c.b16 %v2793, %v2792
        %v2923 = vpack.c.b16 %v2795, %v2794
        %3052 = vmatprep.subr.bf16.mxu0 0
        %3053 = vmatpush1.bf16.msra.mxu0 %v2796
        %3054 = vmatprep.subr.bf16.mxu0 0
        %3055 = vmatpush1.bf16.msra.mxu0 %v2797
        %3056 = vmatprep.subr.bf16.mxu0 0
        %3057 = vmatpush1.bf16.msra.mxu0 %v2798
        %3058 = vmatprep.subr.bf16.mxu0 0
        %3059 = vmatpush1.bf16.msra.mxu0 %v2799
        %3060 = vmatprep.subr.bf16.mxu0 0
        %3061 = vmatpush1.bf16.msra.mxu0 %v2800
        %3062 = vmatprep.subr.bf16.mxu0 0
        %3063 = vmatpush1.bf16.msra.mxu0 %v2801
        %3064 = vmatprep.subr.bf16.mxu0 0
        %3065 = vmatpush1.bf16.msra.mxu0 %v2802
        %3066 = vmatprep.subr.bf16.mxu0 0
        %3067 = vmatpush1.bf16.msra.mxu0 %v2803
        %3068 = vmatprep.subr.bf16.mxu0 0
        %3069 = vmatpush1.bf16.msra.mxu0 %v2804
        %3070 = vmatprep.subr.bf16.mxu0 0
        %3071 = vmatpush1.bf16.msra.mxu0 %v2805
        %3072 = vmatprep.subr.bf16.mxu0 0
        %3073 = vmatpush1.bf16.msra.mxu0 %v2806
        %3074 = vmatprep.subr.bf16.mxu0 0
        %3075 = vmatpush1.bf16.msra.mxu0 %v2807
        %3076 = vmatprep.subr.bf16.mxu0 0
        %3077 = vmatpush1.bf16.msra.mxu0 %v2808
        %3078 = vmatprep.subr.bf16.mxu0 0
        %3079 = vmatpush1.bf16.msra.mxu0 %v2809
        %3080 = vmatprep.subr.bf16.mxu0 0
        %3081 = vmatpush1.bf16.msra.mxu0 %v2810
        %3082 = vmatprep.subr.bf16.mxu0 0
        %3083 = vmatpush1.bf16.msra.mxu0 %v2811
        %3084 = vmatprep.mubr.bf16.mxu0 %v2006
        %3085 = vmatmul.mubr.bf16.gmra.mrb[0].mxu0 %v2005
        %v3086 = vpop.f32.mrb[0].mxu0
        %v3087 = vadd.f32 %v2283, %v3086
        %v3088 = vpop.f32.mrb[0].mxu0
        %v3089 = vpop.f32.mrb[0].mxu0
        %v3090 = vpop.f32.mrb[0].mxu0
        %3091 = vdwg.mxu0
        %3092 = vmatprep.subr.bf16.mxu0 0
        %3093 = vmatpush1.bf16.msra.mxu0 %v2812
        %3094 = vmatprep.subr.bf16.mxu0 0
        %3095 = vmatpush1.bf16.msra.mxu0 %v2813
        %3096 = vmatprep.subr.bf16.mxu0 0
        %3097 = vmatpush1.bf16.msra.mxu0 %v2814
        %3098 = vmatprep.subr.bf16.mxu0 0
        %3099 = vmatpush1.bf16.msra.mxu0 %v2815
        %3100 = vmatprep.subr.bf16.mxu0 0
        %3101 = vmatpush1.bf16.msra.mxu0 %v2816
        %3102 = vmatprep.subr.bf16.mxu0 0
        %3103 = vmatpush1.bf16.msra.mxu0 %v2817
        %3104 = vmatprep.subr.bf16.mxu0 0
        %3105 = vmatpush1.bf16.msra.mxu0 %v2818
        %3106 = vmatprep.subr.bf16.mxu0 0
        %3107 = vmatpush1.bf16.msra.mxu0 %v2819
        %3108 = vmatprep.subr.bf16.mxu0 0
        %3109 = vmatpush1.bf16.msra.mxu0 %v2820
        %3110 = vmatprep.subr.bf16.mxu0 0
        %3111 = vmatpush1.bf16.msra.mxu0 %v2821
        %3112 = vmatprep.subr.bf16.mxu0 0
        %3113 = vmatpush1.bf16.msra.mxu0 %v2822
        %3114 = vmatprep.subr.bf16.mxu0 0
        %3115 = vmatpush1.bf16.msra.mxu0 %v2823
        %3116 = vmatprep.subr.bf16.mxu0 0
        %3117 = vmatpush1.bf16.msra.mxu0 %v2824
        %3118 = vmatprep.subr.bf16.mxu0 0
        %3119 = vmatpush1.bf16.msra.mxu0 %v2825
        %3120 = vmatprep.subr.bf16.mxu0 0
        %3121 = vmatpush1.bf16.msra.mxu0 %v2826
        %3122 = vmatprep.subr.bf16.mxu0 0
        %3123 = vmatpush1.bf16.msra.mxu0 %v2827
        %3124 = vmatprep.mubr.bf16.mxu0 %v2008
        %3125 = vmatmul.mubr.bf16.gmra.mrb[0].mxu0 %v2007
        %v3126 = vpop.f32.mrb[0].mxu0
        %v3127 = vadd.f32 %v3087, %v3126
        %v3128 = vpop.f32.mrb[0].mxu0
        %v3129 = vpop.f32.mrb[0].mxu0
        %v3130 = vpop.f32.mrb[0].mxu0
        %3131 = vdwg.mxu0
        %3132 = vmatprep.subr.bf16.mxu0 0
        %3133 = vmatpush1.bf16.msra.mxu0 %v2828
        %3134 = vmatprep.subr.bf16.mxu0 0
        %3135 = vmatpush1.bf16.msra.mxu0 %v2829
        %3136 = vmatprep.subr.bf16.mxu0 0
        %3137 = vmatpush1.bf16.msra.mxu0 %v2830
        %3138 = vmatprep.subr.bf16.mxu0 0
        %3139 = vmatpush1.bf16.msra.mxu0 %v2831
        %3140 = vmatprep.subr.bf16.mxu0 0
        %3141 = vmatpush1.bf16.msra.mxu0 %v2832
        %3142 = vmatprep.subr.bf16.mxu0 0
        %3143 = vmatpush1.bf16.msra.mxu0 %v2833
        %3144 = vmatprep.subr.bf16.mxu0 0
        %3145 = vmatpush1.bf16.msra.mxu0 %v2834
        %3146 = vmatprep.subr.bf16.mxu0 0
        %3147 = vmatpush1.bf16.msra.mxu0 %v2835
        %3148 = vmatprep.subr.bf16.mxu0 0
        %3149 = vmatpush1.bf16.msra.mxu0 %v2836
        %3150 = vmatprep.subr.bf16.mxu0 0
        %3151 = vmatpush1.bf16.msra.mxu0 %v2837
        %3152 = vmatprep.subr.bf16.mxu0 0
        %3153 = vmatpush1.bf16.msra.mxu0 %v2838
        %3154 = vmatprep.subr.bf16.mxu0 0
        %3155 = vmatpush1.bf16.msra.mxu0 %v2839
        %3156 = vmatprep.subr.bf16.mxu0 0
        %3157 = vmatpush1.bf16.msra.mxu0 %v2840
        %3158 = vmatprep.subr.bf16.mxu0 0
        %3159 = vmatpush1.bf16.msra.mxu0 %v2841
        %3160 = vmatprep.subr.bf16.mxu0 0
        %3161 = vmatpush1.bf16.msra.mxu0 %v2842
        %3162 = vmatprep.subr.bf16.mxu0 0
        %3163 = vmatpush1.bf16.msra.mxu0 %v2843
        %3164 = vmatprep.mubr.bf16.mxu0 %v2010
        %3165 = vmatmul.mubr.bf16.gmra.mrb[0].mxu0 %v2009
        %v3166 = vpop.f32.mrb[0].mxu0
        %v3167 = vadd.f32 %v3127, %v3166
        %v3168 = vpop.f32.mrb[0].mxu0
        %v3169 = vpop.f32.mrb[0].mxu0
        %v3170 = vpop.f32.mrb[0].mxu0
        %3171 = vdwg.mxu0
        %3172 = vmatprep.subr.bf16.mxu0 0
        %3173 = vmatpush1.bf16.msra.mxu0 %v2844
        %3174 = vmatprep.subr.bf16.mxu0 0
        %3175 = vmatpush1.bf16.msra.mxu0 %v2845
        %3176 = vmatprep.subr.bf16.mxu0 0
        %3177 = vmatpush1.bf16.msra.mxu0 %v2846
        %3178 = vmatprep.subr.bf16.mxu0 0
        %3179 = vmatpush1.bf16.msra.mxu0 %v2847
        %3180 = vmatprep.subr.bf16.mxu0 0
        %3181 = vmatpush1.bf16.msra.mxu0 %v2848
        %3182 = vmatprep.subr.bf16.mxu0 0
        %3183 = vmatpush1.bf16.msra.mxu0 %v2849
        %3184 = vmatprep.subr.bf16.mxu0 0
        %3185 = vmatpush1.bf16.msra.mxu0 %v2850
        %3186 = vmatprep.subr.bf16.mxu0 0
        %3187 = vmatpush1.bf16.msra.mxu0 %v2851
        %3188 = vmatprep.subr.bf16.mxu0 0
        %3189 = vmatpush1.bf16.msra.mxu0 %v2852
        %3190 = vmatprep.subr.bf16.mxu0 0
        %3191 = vmatpush1.bf16.msra.mxu0 %v2853
        %3192 = vmatprep.subr.bf16.mxu0 0
        %3193 = vmatpush1.bf16.msra.mxu0 %v2854
        %3194 = vmatprep.subr.bf16.mxu0 0
        %3195 = vmatpush1.bf16.msra.mxu0 %v2855
        %3196 = vmatprep.subr.bf16.mxu0 0
        %3197 = vmatpush1.bf16.msra.mxu0 %v2856
        %3198 = vmatprep.subr.bf16.mxu0 0
        %3199 = vmatpush1.bf16.msra.mxu0 %v2857
        %3200 = vmatprep.subr.bf16.mxu0 0
        %3201 = vmatpush1.bf16.msra.mxu0 %v2858
        %3202 = vmatprep.subr.bf16.mxu0 0
        %3203 = vmatpush1.bf16.msra.mxu0 %v2859
        %3204 = vmatprep.mubr.bf16.mxu0 %v2012
        %3205 = vmatmul.mubr.bf16.gmra.mrb[0].mxu0 %v2011
        %v3206 = vpop.f32.mrb[0].mxu0
        %v3207 = vadd.f32 %v3167, %v3206
        %v3208 = vpop.f32.mrb[0].mxu0
        %v3209 = vpop.f32.mrb[0].mxu0
        %v3210 = vpop.f32.mrb[0].mxu0
        %3211 = vdwg.mxu0
        %3212 = vmatprep.subr.bf16.mxu0 0
        %3213 = vmatpush1.bf16.msra.mxu0 %v2860
        %3214 = vmatprep.subr.bf16.mxu0 0
        %3215 = vmatpush1.bf16.msra.mxu0 %v2861
        %3216 = vmatprep.subr.bf16.mxu0 0
        %3217 = vmatpush1.bf16.msra.mxu0 %v2862
        %3218 = vmatprep.subr.bf16.mxu0 0
        %3219 = vmatpush1.bf16.msra.mxu0 %v2863
        %3220 = vmatprep.subr.bf16.mxu0 0
        %3221 = vmatpush1.bf16.msra.mxu0 %v2864
        %3222 = vmatprep.subr.bf16.mxu0 0
        %3223 = vmatpush1.bf16.msra.mxu0 %v2865
        %3224 = vmatprep.subr.bf16.mxu0 0
        %3225 = vmatpush1.bf16.msra.mxu0 %v2866
        %3226 = vmatprep.subr.bf16.mxu0 0
        %3227 = vmatpush1.bf16.msra.mxu0 %v2867
        %3228 = vmatprep.subr.bf16.mxu0 0
        %3229 = vmatpush1.bf16.msra.mxu0 %v2868
        %3230 = vmatprep.subr.bf16.mxu0 0
        %3231 = vmatpush1.bf16.msra.mxu0 %v2869
        %3232 = vmatprep.subr.bf16.mxu0 0
        %3233 = vmatpush1.bf16.msra.mxu0 %v2870
        %3234 = vmatprep.subr.bf16.mxu0 0
        %3235 = vmatpush1.bf16.msra.mxu0 %v2871
        %3236 = vmatprep.subr.bf16.mxu0 0
        %3237 = vmatpush1.bf16.msra.mxu0 %v2872
        %3238 = vmatprep.subr.bf16.mxu0 0
        %3239 = vmatpush1.bf16.msra.mxu0 %v2873
        %3240 = vmatprep.subr.bf16.mxu0 0
        %3241 = vmatpush1.bf16.msra.mxu0 %v2874
        %3242 = vmatprep.subr.bf16.mxu0 0
        %3243 = vmatpush1.bf16.msra.mxu0 %v2875
        %3244 = vmatprep.mubr.bf16.mxu0 %v2014
        %3245 = vmatmul.mubr.bf16.gmra.mrb[0].mxu0 %v2013
        %v3246 = vpop.f32.mrb[0].mxu0
        %v3247 = vadd.f32 %v3207, %v3246
        %v3248 = vpop.f32.mrb[0].mxu0
        %v3249 = vpop.f32.mrb[0].mxu0
        %v3250 = vpop.f32.mrb[0].mxu0
        %3251 = vdwg.mxu0
        %3252 = vmatprep.subr.bf16.mxu0 0
        %3253 = vmatpush1.bf16.msra.mxu0 %v2876
        %3254 = vmatprep.subr.bf16.mxu0 0
        %3255 = vmatpush1.bf16.msra.mxu0 %v2877
        %3256 = vmatprep.subr.bf16.mxu0 0
        %3257 = vmatpush1.bf16.msra.mxu0 %v2878
        %3258 = vmatprep.subr.bf16.mxu0 0
        %3259 = vmatpush1.bf16.msra.mxu0 %v2879
        %3260 = vmatprep.subr.bf16.mxu0 0
        %3261 = vmatpush1.bf16.msra.mxu0 %v2880
        %3262 = vmatprep.subr.bf16.mxu0 0
        %3263 = vmatpush1.bf16.msra.mxu0 %v2881
        %3264 = vmatprep.subr.bf16.mxu0 0
        %3265 = vmatpush1.bf16.msra.mxu0 %v2882
        %3266 = vmatprep.subr.bf16.mxu0 0
        %3267 = vmatpush1.bf16.msra.mxu0 %v2883
        %3268 = vmatprep.subr.bf16.mxu0 0
        %3269 = vmatpush1.bf16.msra.mxu0 %v2884
        %3270 = vmatprep.subr.bf16.mxu0 0
        %3271 = vmatpush1.bf16.msra.mxu0 %v2885
        %3272 = vmatprep.subr.bf16.mxu0 0
        %3273 = vmatpush1.bf16.msra.mxu0 %v2886
        %3274 = vmatprep.subr.bf16.mxu0 0
        %3275 = vmatpush1.bf16.msra.mxu0 %v2887
        %3276 = vmatprep.subr.bf16.mxu0 0
        %3277 = vmatpush1.bf16.msra.mxu0 %v2888
        %3278 = vmatprep.subr.bf16.mxu0 0
        %3279 = vmatpush1.bf16.msra.mxu0 %v2889
        %3280 = vmatprep.subr.bf16.mxu0 0
        %3281 = vmatpush1.bf16.msra.mxu0 %v2890
        %3282 = vmatprep.subr.bf16.mxu0 0
        %3283 = vmatpush1.bf16.msra.mxu0 %v2891
        %3284 = vmatprep.mubr.bf16.mxu0 %v2016
        %3285 = vmatmul.mubr.bf16.gmra.mrb[0].mxu0 %v2015
        %v3286 = vpop.f32.mrb[0].mxu0
        %v3287 = vadd.f32 %v3247, %v3286
        %v3288 = vpop.f32.mrb[0].mxu0
        %v3289 = vpop.f32.mrb[0].mxu0
        %v3290 = vpop.f32.mrb[0].mxu0
        %3291 = vdwg.mxu0
        %3292 = vmatprep.subr.bf16.mxu0 0
        %3293 = vmatpush1.bf16.msra.mxu0 %v2892
        %3294 = vmatprep.subr.bf16.mxu0 0
        %3295 = vmatpush1.bf16.msra.mxu0 %v2893
        %3296 = vmatprep.subr.bf16.mxu0 0
        %3297 = vmatpush1.bf16.msra.mxu0 %v2894
        %3298 = vmatprep.subr.bf16.mxu0 0
        %3299 = vmatpush1.bf16.msra.mxu0 %v2895
        %3300 = vmatprep.subr.bf16.mxu0 0
        %3301 = vmatpush1.bf16.msra.mxu0 %v2896
        %3302 = vmatprep.subr.bf16.mxu0 0
        %3303 = vmatpush1.bf16.msra.mxu0 %v2897
        %3304 = vmatprep.subr.bf16.mxu0 0
        %3305 = vmatpush1.bf16.msra.mxu0 %v2898
        %3306 = vmatprep.subr.bf16.mxu0 0
        %3307 = vmatpush1.bf16.msra.mxu0 %v2899
        %3308 = vmatprep.subr.bf16.mxu0 0
        %3309 = vmatpush1.bf16.msra.mxu0 %v2900
        %3310 = vmatprep.subr.bf16.mxu0 0
        %3311 = vmatpush1.bf16.msra.mxu0 %v2901
        %3312 = vmatprep.subr.bf16.mxu0 0
        %3313 = vmatpush1.bf16.msra.mxu0 %v2902
        %3314 = vmatprep.subr.bf16.mxu0 0
        %3315 = vmatpush1.bf16.msra.mxu0 %v2903
        %3316 = vmatprep.subr.bf16.mxu0 0
        %3317 = vmatpush1.bf16.msra.mxu0 %v2904
        %3318 = vmatprep.subr.bf16.mxu0 0
        %3319 = vmatpush1.bf16.msra.mxu0 %v2905
        %3320 = vmatprep.subr.bf16.mxu0 0
        %3321 = vmatpush1.bf16.msra.mxu0 %v2906
        %3322 = vmatprep.subr.bf16.mxu0 0
        %3323 = vmatpush1.bf16.msra.mxu0 %v2907
        %3324 = vmatprep.mubr.bf16.mxu0 %v2018
        %3325 = vmatmul.mubr.bf16.gmra.mrb[0].mxu0 %v2017
        %v3326 = vpop.f32.mrb[0].mxu0
        %v3327 = vadd.f32 %v3287, %v3326
        %v3328 = vpop.f32.mrb[0].mxu0
        %v3329 = vpop.f32.mrb[0].mxu0
        %v3330 = vpop.f32.mrb[0].mxu0
        %3331 = vdwg.mxu0
        %3332 = vmatprep.subr.bf16.mxu0 0
        %3333 = vmatpush1.bf16.msra.mxu0 %v2908
        %3334 = vmatprep.subr.bf16.mxu0 0
        %3335 = vmatpush1.bf16.msra.mxu0 %v2909
        %3336 = vmatprep.subr.bf16.mxu0 0
        %3337 = vmatpush1.bf16.msra.mxu0 %v2910
        %3338 = vmatprep.subr.bf16.mxu0 0
        %3339 = vmatpush1.bf16.msra.mxu0 %v2911
        %3340 = vmatprep.subr.bf16.mxu0 0
        %3341 = vmatpush1.bf16.msra.mxu0 %v2912
        %3342 = vmatprep.subr.bf16.mxu0 0
        %3343 = vmatpush1.bf16.msra.mxu0 %v2913
        %3344 = vmatprep.subr.bf16.mxu0 0
        %3345 = vmatpush1.bf16.msra.mxu0 %v2914
        %3346 = vmatprep.subr.bf16.mxu0 0
        %3347 = vmatpush1.bf16.msra.mxu0 %v2915
        %3348 = vmatprep.subr.bf16.mxu0 0
        %3349 = vmatpush1.bf16.msra.mxu0 %v2916
        %3350 = vmatprep.subr.bf16.mxu0 0
        %3351 = vmatpush1.bf16.msra.mxu0 %v2917
        %3352 = vmatprep.subr.bf16.mxu0 0
        %3353 = vmatpush1.bf16.msra.mxu0 %v2918
        %3354 = vmatprep.subr.bf16.mxu0 0
        %3355 = vmatpush1.bf16.msra.mxu0 %v2919
        %3356 = vmatprep.subr.bf16.mxu0 0
        %3357 = vmatpush1.bf16.msra.mxu0 %v2920
        %3358 = vmatprep.subr.bf16.mxu0 0
        %3359 = vmatpush1.bf16.msra.mxu0 %v2921
        %3360 = vmatprep.subr.bf16.mxu0 0
        %3361 = vmatpush1.bf16.msra.mxu0 %v2922
        %3362 = vmatprep.subr.bf16.mxu0 0
        %3363 = vmatpush1.bf16.msra.mxu0 %v2923
        %3364 = vmatprep.mubr.bf16.mxu0 %v2020
        %3365 = vmatmul.mubr.bf16.gmra.mrb[0].mxu0 %v2019
        %v3366 = vpop.f32.mrb[0].mxu0
        %v3367 = vadd.f32 %v3327, %v3366
        %v3368 = vpop.f32.mrb[0].mxu0
        %v3369 = vpop.f32.mrb[0].mxu0
        %v3370 = vpop.f32.mrb[0].mxu0
        %3371 = vdwg.mxu0
        %v3372 = vadd.f32 %v3367, %v936
        %3373 = vst.msk [vmem:[%s281] sm:$0xff] %vm298, %v3372
        %s3374 = sand.u32 %s193, 1
        %s3375 = scalar_lea.sflag [#allocation3], %s3374
        %s3376 = sand.u32 %s193, 1
        %s3377 = smul.addr %s3376, 8
        %s3378 = scalar_lea.vmem [#allocation2], %s3377
        // Predicated region
        $region53: #{transformer_forward.1} parent=47 // pred_check
          %p3379 = pneg %p203
        $region54: #{transformer_forward.1} parent=47 // pred_check_branch
          %3381 = sbr.rel (%p3379) target = $region56
        $region55: #{transformer_forward.1} parent=47 // pred_region
          %s3383 = ssub.s32 128, 128
          %3384 = vsyncadd %s3375, %s3383
          %s3385 = smul.addr %s25, 128
          %s3386 = scalar_lea.hbm %s7, %s3385
          %s3388 = sshll.u32 %s3378, 4
          %s3389 = int_to_ptr.vmem [resolvable:$true] %s3388
          %3391 = dma.vmem_to_hbm [thread:$0]  %s3389, 128, %s3386, %s3375
        $region56: #{transformer_forward.1} parent=47 // pred_fallthru
          _
      $region48: #{transformer_forward.1} parent=5 // pred_fallthru
        _
      %p3392 = scmp.le.s32.totalorder 2, %s16
      // Predicated region
      $region57: #{transformer_forward.1} parent=5 // pred_check
        %p3393 = pneg %p3392
      $region58: #{transformer_forward.1} parent=5 // pred_check_branch
        %3395 = sbr.rel (%p3393) target = $region60
      $region59: #{transformer_forward.1} parent=5 // pred_region
        %s3396 = ssub.s32 %s16, 2
        // Predicated region
        $region61: #{transformer_forward.1} parent=59 // pred_check
          %p3397 = pneg %p209
        $region62: #{transformer_forward.1} parent=59 // pred_check_branch
          %3399 = sbr.rel (%p3397) target = $region64
        $region63: #{transformer_forward.1} parent=59 // pred_region
          %s3400 = sand.u32 %s194, 1
          %s3401 = scalar_lea.sflag [#allocation3], %s3400
          %s3402 = sand.u32 %s194, 1
          %s3403 = smul.addr %s3402, 8
          %s3404 = scalar_lea.vmem [#allocation2], %s3403
          %3405 = dma.done %s3401, 128
        $region64: #{transformer_forward.1} parent=59 // pred_fallthru
          _
      $region60: #{transformer_forward.1} parent=5 // pred_fallthru
        _
    $region6: #{transformer_forward.1} parent=1 // loop_footer
      %s20 = sadd.s32 1, %s16
    $region7: #{transformer_forward.1} parent=1 // loop_footer_branch
      %15 = sbr.rel target = $region3
    $region8: #{transformer_forward.1} parent=1 // loop_exit
      _
    %3406 = vsyncpa [#allocation3], 1
    %s3407 = scalar_lea.sflag [#allocation3], 1
    %3408 = vsyncpa %s3407, 1

</llo_original>
